<compile_context>
chip_gen: v7x
topology: tpu7x:2x2x1
jax: 0.10.0
libtpu: 0.0.40
codegen_flags: <defaults>
</compile_context>

<pallas_src>
import functools

import jax
import jax.numpy as jnp
from jax.experimental import pallas as pl
from jax.experimental.pallas import tpu as pltpu


def _mha_kernel(x_ref, w_in_t_ref, b_in_ref, w_out_t_ref, b_out_ref, o_ref, *,
                num_heads):
    """Multi-head self-attention over a (block_n, T, C) block.

    x_ref:      (Bn, T, C)   activations
    w_in_t_ref: (C, 3C)      in_proj weight, pre-transposed, Q part pre-scaled
    b_in_ref:   (1, 3C)      in_proj bias, Q part pre-scaled
    w_out_t_ref:(C, C)       out_proj weight, pre-transposed
    b_out_ref:  (1, C)       out_proj bias
    o_ref:      (Bn, T, C)
    """
    Bn, T, C = x_ref.shape
    H = num_heads
    D = C // H

    w_in_t = w_in_t_ref[...]
    x2d = x_ref[...].reshape(Bn * T, C).astype(w_in_t.dtype)

    # Fused QKV projection: one MXU matmul with a 3C-wide output.
    # (1/sqrt(D) scale is already folded into the Q columns of w/b.)
    qkv = jnp.dot(x2d, w_in_t, preferred_element_type=jnp.float32)
    qkv = qkv + b_in_ref[...]                      # (Bn*T, 3C), f32
    qkv = qkv.reshape(Bn, T, 3 * C)

    acc = jnp.zeros((Bn * T, C), dtype=jnp.float32)
    for h in range(H):                             # static unroll over heads
        qh = qkv[:, :, h * D:(h + 1) * D]                      # (Bn, T, D)
        kh = qkv[:, :, C + h * D:C + (h + 1) * D]              # (Bn, T, D)
        vh = qkv[:, :, 2 * C + h * D:2 * C + (h + 1) * D]      # (Bn, T, D)

        # Batched QK^T over the block (one dot_general, no per-row loop).
        s = jnp.einsum('btd,bsd->bts', qh, kh,
                       preferred_element_type=jnp.float32)     # (Bn, T, T)
        s = s - jnp.max(s, axis=-1, keepdims=True)
        p = jnp.exp(s)
        # Deferred normalization: divide once after the PV matmul, on the
        # (T, D)-sized result instead of the (T, T)-sized probabilities.
        inv_l = pl.reciprocal(jnp.sum(p, axis=-1, keepdims=True), approx=False)

        o_h = jnp.einsum('bts,bsd->btd', p, vh,
                         preferred_element_type=jnp.float32)   # (Bn, T, D)
        o_h = o_h * inv_l

        # Accumulate through the head's out_proj rows: equivalent to
        # concat(heads) @ W_out^T but with no lane-dim concatenation.
        w_slab = w_out_t_ref[h * D:(h + 1) * D, :]             # (D, C)
        acc = acc + jnp.dot(o_h.reshape(Bn * T, D).astype(w_slab.dtype), w_slab,
                            preferred_element_type=jnp.float32)

    out = acc + b_out_ref[...]
    o_ref[...] = out.reshape(Bn, T, C).astype(o_ref.dtype)


def mha_pallas(xn, w_in, b_in, w_out, b_out, num_heads, *,
               block_n=None, matmul_dtype=None):
    """xn: (N, T, C) -> (N, T, C) multi-head self-attention.

    w_in: (3C, C), b_in: (1, 3C) or (3C,), w_out: (C, C), b_out: (1, C) or (C,)
    (PyTorch nn.MultiheadAttention parameter convention: y = x @ W^T + b.)
    """
    N, T, C = xn.shape
    H = num_heads
    assert C % H == 0
    D = C // H
    scale = 1.0 / float(D) ** 0.5

    # One-time weight prep (outside the grid loop):
    #  - pre-transpose so the kernel computes x @ W (no in-kernel transposes)
    #  - fold the 1/sqrt(D) softmax scale into the Q projection
    w_in_t = jnp.asarray(w_in).T                       # (C, 3C)
    w_in_t = w_in_t.at[:, :C].multiply(scale)
    b_in_s = jnp.asarray(b_in).reshape(1, 3 * C)
    b_in_s = b_in_s.at[:, :C].multiply(scale)
    w_out_t = jnp.asarray(w_out).T                     # (C, C)
    b_out_s = jnp.asarray(b_out).reshape(1, C)

    if matmul_dtype is not None:
        # bf16 MXU path; accumulation stays f32, softmax stays f32 in-kernel.
        w_in_t = w_in_t.astype(matmul_dtype)
        w_out_t = w_out_t.astype(matmul_dtype)

    # Batch many attention rows per grid step; size against the default scoped
    # VMEM limit (conservative ~8 MiB live-footprint budget, cap 512 rows so a
    # block also fits comfortably on v7x's 64 MiB VMEM).
    if block_n is None:
        per_row_bytes = 4 * (8 * T * C + 2 * T * T + 2 * T * D)
        block_n = int(max(1, min(512, N, (8 << 20) // max(per_row_bytes, 1))))
    n_blocks = pl.cdiv(N, block_n)
    N_pad = n_blocks * block_n
    if N_pad != N:
        # Zero-pad tail block; padded rows are computed (finite) and sliced off.
        xn = jnp.pad(xn, ((0, N_pad - N), (0, 0), (0, 0)))

    kernel = functools.partial(_mha_kernel, num_heads=num_heads)
    out = pl.pallas_call(
        kernel,
        out_shape=jax.ShapeDtypeStruct((N_pad, T, C), xn.dtype),
        grid=(n_blocks,),
        in_specs=[
            pl.BlockSpec((block_n, T, C), lambda n: (n, 0, 0)),
            pl.BlockSpec((C, 3 * C), lambda n: (0, 0)),
            pl.BlockSpec((1, 3 * C), lambda n: (0, 0)),
            pl.BlockSpec((C, C), lambda n: (0, 0)),
            pl.BlockSpec((1, C), lambda n: (0, 0)),
        ],
        out_specs=pl.BlockSpec((block_n, T, C), lambda n: (n, 0, 0)),
        compiler_params=pltpu.CompilerParams(
            dimension_semantics=("parallel",)),
    )(xn, w_in_t, b_in_s, w_out_t, b_out_s)

    return out[:N] if N_pad != N else out


def spatial_multihead_attention(x, params, spatial_tokens, num_heads,
                                matmul_dtype=None):
    """Mirror of SpatialMultiheadAttention.forward.

    x: (s, b, c)  ->  returns (s // spatial_tokens, spatial_tokens, b, c)
    """
    s, b, c = x.shape
    T = spatial_tokens
    assert s % T == 0
    G = s // T

    # Exactly one transpose on each side of the kernel (the one the module's
    # (G,T) <-> (T,G) permute implies); attention batch index n = g*b + bi.
    xn = x.reshape(G, T, b, c).transpose(0, 2, 1, 3).reshape(G * b, T, c)

    out_n = mha_pallas(xn, params["w_in"], params["b_in"],
                       params["w_out"], params["b_out"], num_heads,
                       matmul_dtype=matmul_dtype)

    # (N, T, C) -> (G, b, T, c) -> (G, T, b, c), matching the module's output.
    out = out_n.reshape(G, b, T, c).transpose(0, 2, 1, 3)
    return out


def reference_spatial_mha(x, params, spatial_tokens, num_heads):
    """Pure-JAX reference (matches torch.nn.MultiheadAttention math, dropout=0)."""
    s, b, c = x.shape
    T, G = spatial_tokens, s // spatial_tokens
    xr = x.reshape(G, T, b, c).transpose(1, 0, 2, 3).reshape(T, G * b, c)  # (T, N, C)
    N = G * b
    D = c // num_heads
    scale = 1.0 / (D ** 0.5)

    qkv = jnp.einsum('tnc,oc->tno', xr, params["w_in"]) + params["b_in"][0]
    q, k, v = qkv[..., :c], qkv[..., c:2 * c], qkv[..., 2 * c:]

    def split(t):  # (T, N, C) -> (N, H, T, D)
        return t.reshape(T, N, num_heads, D).transpose(1, 2, 0, 3)

    qh, kh, vh = split(q) * scale, split(k), split(v)
    logits = jnp.einsum('nhtd,nhsd->nhts', qh, kh)
    p = jax.nn.softmax(logits, axis=-1)
    o = jnp.einsum('nhts,nhsd->nhtd', p, vh)          # (N, H, T, D)
    o = o.transpose(2, 0, 1, 3).reshape(T, N, c)
    out = jnp.einsum('tnc,oc->tno', o, params["w_out"]) + params["b_out"][0]
    return out.reshape(T, G, b, c).transpose(1, 0, 2, 3)


if __name__ == "__main__":
    # small shapes consistent with the module's forward
    spatial_tokens = 8     # T
    seq = 16               # s  (so G = 2)
    batch = 2              # b
    embed = 32             # c
    num_heads = 4          # head_dim = 8

    key = jax.random.PRNGKey(0)
    k_x, k_wi, k_bi, k_wo, k_bo = jax.random.split(key, 5)

    x = jax.random.normal(k_x, (seq, batch, embed), dtype=jnp.float32)

    # deterministic synthetic parameters (shapes from nn.MultiheadAttention)
    params = {
        "w_in": jax.random.normal(k_wi, (3 * embed, embed), dtype=jnp.float32)
                * (1.0 / jnp.sqrt(embed)),
        "b_in": jax.random.normal(k_bi, (1, 3 * embed), dtype=jnp.float32) * 0.02,
        "w_out": jax.random.normal(k_wo, (embed, embed), dtype=jnp.float32)
                 * (1.0 / jnp.sqrt(embed)),
        "b_out": jax.random.normal(k_bo, (1, embed), dtype=jnp.float32) * 0.02,
    }

    out = spatial_multihead_attention(x, params, spatial_tokens, num_heads)
    out = jax.block_until_ready(out)

    ref = reference_spatial_mha(x, params, spatial_tokens, num_heads)
    assert out.shape == (seq // spatial_tokens, spatial_tokens, batch, embed), out.shape
    assert jnp.allclose(out, ref, atol=1e-4, rtol=1e-4), \
        float(jnp.max(jnp.abs(out - ref)))

    print("KERNEL_OK")
</pallas_src>

<mosaic_0001>
module attributes {stable_mosaic.version = 11 : i64} {
  func.func @_mha_kernel(%arg0: i32, %arg1: memref<4x8x32xf32, #tpu.memory_space<vmem>>, %arg2: memref<32x96xf32, #tpu.memory_space<vmem>>, %arg3: memref<1x96xf32, #tpu.memory_space<vmem>>, %arg4: memref<32x32xf32, #tpu.memory_space<vmem>>, %arg5: memref<1x32xf32, #tpu.memory_space<vmem>>, %arg6: memref<4x8x32xf32, #tpu.memory_space<vmem>>) attributes {dimension_semantics = [#tpu.dimension_semantics<parallel>], iteration_bounds = array<i64: 1>, scalar_prefetch = 0 : i64, scratch_operands = 0 : i64, tpu.core_type = #tpu.core_type<tc>, window_params = [{transform_indices = @transform_0, window_bounds = array<i64: 4, 8, 32>}, {pipeline_mode = #tpu.pipeline_mode<synchronous>, transform_indices = @transform_1, window_bounds = array<i64: 32, 96>}, {pipeline_mode = #tpu.pipeline_mode<synchronous>, transform_indices = @transform_2, window_bounds = array<i64: 1, 96>}, {pipeline_mode = #tpu.pipeline_mode<synchronous>, transform_indices = @transform_3, window_bounds = array<i64: 32, 32>}, {pipeline_mode = #tpu.pipeline_mode<synchronous>, transform_indices = @transform_4, window_bounds = array<i64: 1, 32>}, {transform_indices = @transform_5, window_bounds = array<i64: 4, 8, 32>}]} {
    %c0 = arith.constant 0 : index
    %c0_0 = arith.constant 0 : index
    %0 = vector.load %arg2[%c0, %c0_0] : memref<32x96xf32, #tpu.memory_space<vmem>>, vector<32x96xf32>
    %c0_1 = arith.constant 0 : index
    %c0_2 = arith.constant 0 : index
    %c0_3 = arith.constant 0 : index
    %1 = vector.load %arg1[%c0_1, %c0_2, %c0_3] : memref<4x8x32xf32, #tpu.memory_space<vmem>>, vector<4x8x32xf32>
    %2 = vector.shape_cast %1 : vector<4x8x32xf32> to vector<32x32xf32>
    %cst = arith.constant dense<0.000000e+00> : vector<32x96xf32>
    %3 = tpu.matmul %2, %0, %cst {dimension_numbers = #tpu.dot_dimension_numbers<[1], [0], [0], [1], [0, 0, 1, 1], [], []>} : vector<32x32xf32>, vector<32x96xf32>, vector<32x96xf32> -> vector<32x96xf32>
    %c0_4 = arith.constant 0 : index
    %c0_5 = arith.constant 0 : index
    %4 = vector.load %arg3[%c0_4, %c0_5] : memref<1x96xf32, #tpu.memory_space<vmem>>, vector<1x96xf32>
    %5 = vector.broadcast %4 : vector<1x96xf32> to vector<32x96xf32>
    %6 = arith.addf %3, %5 : vector<32x96xf32>
    %7 = vector.shape_cast %6 : vector<32x96xf32> to vector<4x8x96xf32>
    %cst_6 = arith.constant 0.000000e+00 : f32
    %8 = vector.broadcast %cst_6 : f32 to vector<32x32xf32>
    %9 = vector.extract_strided_slice %7 {offsets = [0, 0, 0], sizes = [4, 8, 8], strides = [1, 1, 1]} : vector<4x8x96xf32> to vector<4x8x8xf32>
    %10 = vector.extract_strided_slice %7 {offsets = [0, 0, 32], sizes = [4, 8, 8], strides = [1, 1, 1]} : vector<4x8x96xf32> to vector<4x8x8xf32>
    %11 = vector.extract_strided_slice %7 {offsets = [0, 0, 64], sizes = [4, 8, 8], strides = [1, 1, 1]} : vector<4x8x96xf32> to vector<4x8x8xf32>
    "tpu.trace_start"() <{level = 10 : i32, message = "btd,bsd->bts"}> : () -> ()
    %cst_7 = arith.constant dense<0.000000e+00> : vector<4x8x8xf32>
    %12 = tpu.matmul %9, %10, %cst_7 {dimension_numbers = #tpu.dot_dimension_numbers<[2], [2], [1], [1], [0, 0, 0, 1, 1, 1], [0], [0]>} : vector<4x8x8xf32>, vector<4x8x8xf32>, vector<4x8x8xf32> -> vector<4x8x8xf32>
    "tpu.trace_stop"() : () -> ()
    %cst_8 = arith.constant dense<0xFF800000> : vector<4x8xf32>
    %13 = vector.multi_reduction <maximumf>, %12, %cst_8 [2] : vector<4x8x8xf32> to vector<4x8xf32>
    %14 = vector.shape_cast %13 : vector<4x8xf32> to vector<4x8x1xf32>
    %15 = vector.broadcast %14 : vector<4x8x1xf32> to vector<4x8x8xf32>
    %16 = arith.subf %12, %15 : vector<4x8x8xf32>
    %17 = math.exp %16 : vector<4x8x8xf32>
    %cst_9 = arith.constant dense<0.000000e+00> : vector<4x8xf32>
    %18 = vector.multi_reduction <add>, %17, %cst_9 [2] : vector<4x8x8xf32> to vector<4x8xf32>
    %19 = vector.shape_cast %18 : vector<4x8xf32> to vector<4x8x1xf32>
    %20 = tpu.reciprocal %19 : vector<4x8x1xf32> -> vector<4x8x1xf32>
    "tpu.trace_start"() <{level = 10 : i32, message = "bts,bsd->btd"}> : () -> ()
    %cst_10 = arith.constant dense<0.000000e+00> : vector<4x8x8xf32>
    %21 = tpu.matmul %17, %11, %cst_10 {dimension_numbers = #tpu.dot_dimension_numbers<[2], [1], [1], [2], [0, 0, 0, 1, 1, 2], [0], [0]>} : vector<4x8x8xf32>, vector<4x8x8xf32>, vector<4x8x8xf32> -> vector<4x8x8xf32>
    "tpu.trace_stop"() : () -> ()
    %22 = vector.broadcast %20 : vector<4x8x1xf32> to vector<4x8x8xf32>
    %23 = arith.mulf %21, %22 : vector<4x8x8xf32>
    %c0_11 = arith.constant 0 : index
    %c0_12 = arith.constant 0 : index
    %24 = vector.load %arg4[%c0_11, %c0_12] : memref<32x32xf32, #tpu.memory_space<vmem>>, vector<8x32xf32>
    %25 = vector.shape_cast %23 : vector<4x8x8xf32> to vector<32x8xf32>
    %cst_13 = arith.constant dense<0.000000e+00> : vector<32x32xf32>
    %26 = tpu.matmul %25, %24, %cst_13 {dimension_numbers = #tpu.dot_dimension_numbers<[1], [0], [0], [1], [0, 0, 1, 1], [], []>} : vector<32x8xf32>, vector<8x32xf32>, vector<32x32xf32> -> vector<32x32xf32>
    %27 = arith.addf %8, %26 : vector<32x32xf32>
    %28 = vector.extract_strided_slice %7 {offsets = [0, 0, 8], sizes = [4, 8, 8], strides = [1, 1, 1]} : vector<4x8x96xf32> to vector<4x8x8xf32>
    %29 = vector.extract_strided_slice %7 {offsets = [0, 0, 40], sizes = [4, 8, 8], strides = [1, 1, 1]} : vector<4x8x96xf32> to vector<4x8x8xf32>
    %30 = vector.extract_strided_slice %7 {offsets = [0, 0, 72], sizes = [4, 8, 8], strides = [1, 1, 1]} : vector<4x8x96xf32> to vector<4x8x8xf32>
    "tpu.trace_start"() <{level = 10 : i32, message = "btd,bsd->bts"}> : () -> ()
    %cst_14 = arith.constant dense<0.000000e+00> : vector<4x8x8xf32>
    %31 = tpu.matmul %28, %29, %cst_14 {dimension_numbers = #tpu.dot_dimension_numbers<[2], [2], [1], [1], [0, 0, 0, 1, 1, 1], [0], [0]>} : vector<4x8x8xf32>, vector<4x8x8xf32>, vector<4x8x8xf32> -> vector<4x8x8xf32>
    "tpu.trace_stop"() : () -> ()
    %cst_15 = arith.constant dense<0xFF800000> : vector<4x8xf32>
    %32 = vector.multi_reduction <maximumf>, %31, %cst_15 [2] : vector<4x8x8xf32> to vector<4x8xf32>
    %33 = vector.shape_cast %32 : vector<4x8xf32> to vector<4x8x1xf32>
    %34 = vector.broadcast %33 : vector<4x8x1xf32> to vector<4x8x8xf32>
    %35 = arith.subf %31, %34 : vector<4x8x8xf32>
    %36 = math.exp %35 : vector<4x8x8xf32>
    %cst_16 = arith.constant dense<0.000000e+00> : vector<4x8xf32>
    %37 = vector.multi_reduction <add>, %36, %cst_16 [2] : vector<4x8x8xf32> to vector<4x8xf32>
    %38 = vector.shape_cast %37 : vector<4x8xf32> to vector<4x8x1xf32>
    %39 = tpu.reciprocal %38 : vector<4x8x1xf32> -> vector<4x8x1xf32>
    "tpu.trace_start"() <{level = 10 : i32, message = "bts,bsd->btd"}> : () -> ()
    %cst_17 = arith.constant dense<0.000000e+00> : vector<4x8x8xf32>
    %40 = tpu.matmul %36, %30, %cst_17 {dimension_numbers = #tpu.dot_dimension_numbers<[2], [1], [1], [2], [0, 0, 0, 1, 1, 2], [0], [0]>} : vector<4x8x8xf32>, vector<4x8x8xf32>, vector<4x8x8xf32> -> vector<4x8x8xf32>
    "tpu.trace_stop"() : () -> ()
    %41 = vector.broadcast %39 : vector<4x8x1xf32> to vector<4x8x8xf32>
    %42 = arith.mulf %40, %41 : vector<4x8x8xf32>
    %c8 = arith.constant 8 : index
    %c0_18 = arith.constant 0 : index
    %43 = vector.load %arg4[%c8, %c0_18] : memref<32x32xf32, #tpu.memory_space<vmem>>, vector<8x32xf32>
    %44 = vector.shape_cast %42 : vector<4x8x8xf32> to vector<32x8xf32>
    %cst_19 = arith.constant dense<0.000000e+00> : vector<32x32xf32>
    %45 = tpu.matmul %44, %43, %cst_19 {dimension_numbers = #tpu.dot_dimension_numbers<[1], [0], [0], [1], [0, 0, 1, 1], [], []>} : vector<32x8xf32>, vector<8x32xf32>, vector<32x32xf32> -> vector<32x32xf32>
    %46 = arith.addf %27, %45 : vector<32x32xf32>
    %47 = vector.extract_strided_slice %7 {offsets = [0, 0, 16], sizes = [4, 8, 8], strides = [1, 1, 1]} : vector<4x8x96xf32> to vector<4x8x8xf32>
    %48 = vector.extract_strided_slice %7 {offsets = [0, 0, 48], sizes = [4, 8, 8], strides = [1, 1, 1]} : vector<4x8x96xf32> to vector<4x8x8xf32>
    %49 = vector.extract_strided_slice %7 {offsets = [0, 0, 80], sizes = [4, 8, 8], strides = [1, 1, 1]} : vector<4x8x96xf32> to vector<4x8x8xf32>
    "tpu.trace_start"() <{level = 10 : i32, message = "btd,bsd->bts"}> : () -> ()
    %cst_20 = arith.constant dense<0.000000e+00> : vector<4x8x8xf32>
    %50 = tpu.matmul %47, %48, %cst_20 {dimension_numbers = #tpu.dot_dimension_numbers<[2], [2], [1], [1], [0, 0, 0, 1, 1, 1], [0], [0]>} : vector<4x8x8xf32>, vector<4x8x8xf32>, vector<4x8x8xf32> -> vector<4x8x8xf32>
    "tpu.trace_stop"() : () -> ()
    %cst_21 = arith.constant dense<0xFF800000> : vector<4x8xf32>
    %51 = vector.multi_reduction <maximumf>, %50, %cst_21 [2] : vector<4x8x8xf32> to vector<4x8xf32>
    %52 = vector.shape_cast %51 : vector<4x8xf32> to vector<4x8x1xf32>
    %53 = vector.broadcast %52 : vector<4x8x1xf32> to vector<4x8x8xf32>
    %54 = arith.subf %50, %53 : vector<4x8x8xf32>
    %55 = math.exp %54 : vector<4x8x8xf32>
    %cst_22 = arith.constant dense<0.000000e+00> : vector<4x8xf32>
    %56 = vector.multi_reduction <add>, %55, %cst_22 [2] : vector<4x8x8xf32> to vector<4x8xf32>
    %57 = vector.shape_cast %56 : vector<4x8xf32> to vector<4x8x1xf32>
    %58 = tpu.reciprocal %57 : vector<4x8x1xf32> -> vector<4x8x1xf32>
    "tpu.trace_start"() <{level = 10 : i32, message = "bts,bsd->btd"}> : () -> ()
    %cst_23 = arith.constant dense<0.000000e+00> : vector<4x8x8xf32>
    %59 = tpu.matmul %55, %49, %cst_23 {dimension_numbers = #tpu.dot_dimension_numbers<[2], [1], [1], [2], [0, 0, 0, 1, 1, 2], [0], [0]>} : vector<4x8x8xf32>, vector<4x8x8xf32>, vector<4x8x8xf32> -> vector<4x8x8xf32>
    "tpu.trace_stop"() : () -> ()
    %60 = vector.broadcast %58 : vector<4x8x1xf32> to vector<4x8x8xf32>
    %61 = arith.mulf %59, %60 : vector<4x8x8xf32>
    %c16 = arith.constant 16 : index
    %c0_24 = arith.constant 0 : index
    %62 = vector.load %arg4[%c16, %c0_24] : memref<32x32xf32, #tpu.memory_space<vmem>>, vector<8x32xf32>
    %63 = vector.shape_cast %61 : vector<4x8x8xf32> to vector<32x8xf32>
    %cst_25 = arith.constant dense<0.000000e+00> : vector<32x32xf32>
    %64 = tpu.matmul %63, %62, %cst_25 {dimension_numbers = #tpu.dot_dimension_numbers<[1], [0], [0], [1], [0, 0, 1, 1], [], []>} : vector<32x8xf32>, vector<8x32xf32>, vector<32x32xf32> -> vector<32x32xf32>
    %65 = arith.addf %46, %64 : vector<32x32xf32>
    %66 = vector.extract_strided_slice %7 {offsets = [0, 0, 24], sizes = [4, 8, 8], strides = [1, 1, 1]} : vector<4x8x96xf32> to vector<4x8x8xf32>
    %67 = vector.extract_strided_slice %7 {offsets = [0, 0, 56], sizes = [4, 8, 8], strides = [1, 1, 1]} : vector<4x8x96xf32> to vector<4x8x8xf32>
    %68 = vector.extract_strided_slice %7 {offsets = [0, 0, 88], sizes = [4, 8, 8], strides = [1, 1, 1]} : vector<4x8x96xf32> to vector<4x8x8xf32>
    "tpu.trace_start"() <{level = 10 : i32, message = "btd,bsd->bts"}> : () -> ()
    %cst_26 = arith.constant dense<0.000000e+00> : vector<4x8x8xf32>
    %69 = tpu.matmul %66, %67, %cst_26 {dimension_numbers = #tpu.dot_dimension_numbers<[2], [2], [1], [1], [0, 0, 0, 1, 1, 1], [0], [0]>} : vector<4x8x8xf32>, vector<4x8x8xf32>, vector<4x8x8xf32> -> vector<4x8x8xf32>
    "tpu.trace_stop"() : () -> ()
    %cst_27 = arith.constant dense<0xFF800000> : vector<4x8xf32>
    %70 = vector.multi_reduction <maximumf>, %69, %cst_27 [2] : vector<4x8x8xf32> to vector<4x8xf32>
    %71 = vector.shape_cast %70 : vector<4x8xf32> to vector<4x8x1xf32>
    %72 = vector.broadcast %71 : vector<4x8x1xf32> to vector<4x8x8xf32>
    %73 = arith.subf %69, %72 : vector<4x8x8xf32>
    %74 = math.exp %73 : vector<4x8x8xf32>
    %cst_28 = arith.constant dense<0.000000e+00> : vector<4x8xf32>
    %75 = vector.multi_reduction <add>, %74, %cst_28 [2] : vector<4x8x8xf32> to vector<4x8xf32>
    %76 = vector.shape_cast %75 : vector<4x8xf32> to vector<4x8x1xf32>
    %77 = tpu.reciprocal %76 : vector<4x8x1xf32> -> vector<4x8x1xf32>
    "tpu.trace_start"() <{level = 10 : i32, message = "bts,bsd->btd"}> : () -> ()
    %cst_29 = arith.constant dense<0.000000e+00> : vector<4x8x8xf32>
    %78 = tpu.matmul %74, %68, %cst_29 {dimension_numbers = #tpu.dot_dimension_numbers<[2], [1], [1], [2], [0, 0, 0, 1, 1, 2], [0], [0]>} : vector<4x8x8xf32>, vector<4x8x8xf32>, vector<4x8x8xf32> -> vector<4x8x8xf32>
    "tpu.trace_stop"() : () -> ()
    %79 = vector.broadcast %77 : vector<4x8x1xf32> to vector<4x8x8xf32>
    %80 = arith.mulf %78, %79 : vector<4x8x8xf32>
    %c24 = arith.constant 24 : index
    %c0_30 = arith.constant 0 : index
    %81 = vector.load %arg4[%c24, %c0_30] : memref<32x32xf32, #tpu.memory_space<vmem>>, vector<8x32xf32>
    %82 = vector.shape_cast %80 : vector<4x8x8xf32> to vector<32x8xf32>
    %cst_31 = arith.constant dense<0.000000e+00> : vector<32x32xf32>
    %83 = tpu.matmul %82, %81, %cst_31 {dimension_numbers = #tpu.dot_dimension_numbers<[1], [0], [0], [1], [0, 0, 1, 1], [], []>} : vector<32x8xf32>, vector<8x32xf32>, vector<32x32xf32> -> vector<32x32xf32>
    %84 = arith.addf %65, %83 : vector<32x32xf32>
    %c0_32 = arith.constant 0 : index
    %c0_33 = arith.constant 0 : index
    %85 = vector.load %arg5[%c0_32, %c0_33] : memref<1x32xf32, #tpu.memory_space<vmem>>, vector<1x32xf32>
    %86 = vector.broadcast %85 : vector<1x32xf32> to vector<32x32xf32>
    %87 = arith.addf %84, %86 : vector<32x32xf32>
    %88 = vector.shape_cast %87 : vector<32x32xf32> to vector<4x8x32xf32>
    %c0_34 = arith.constant 0 : index
    %c0_35 = arith.constant 0 : index
    %c0_36 = arith.constant 0 : index
    %89 = vector.load %arg6[%c0_34, %c0_35, %c0_36] : memref<4x8x32xf32, #tpu.memory_space<vmem>>, vector<4x8x32xf32>
    tpu.vector_store %arg6[%c0_34, %c0_35, %c0_36], %88 {strides = array<i32>} : memref<4x8x32xf32, #tpu.memory_space<vmem>>, vector<4x8x32xf32>,
    return
  }
  func.func @transform_0(%arg0: i32) -> (i32, i32, i32) {
    %c0_i32 = arith.constant 0 : i32
    %c0_i32_0 = arith.constant 0 : i32
    %c0_i32_1 = arith.constant 0 : i32
    return %arg0, %c0_i32, %c0_i32_0 : i32, i32, i32
  }
  func.func @transform_1(%arg0: i32) -> (i32, i32) {
    %c0_i32 = arith.constant 0 : i32
    %c0_i32_0 = arith.constant 0 : i32
    %c0_i32_1 = arith.constant 0 : i32
    return %c0_i32, %c0_i32_0 : i32, i32
  }
  func.func @transform_2(%arg0: i32) -> (i32, i32) {
    %c0_i32 = arith.constant 0 : i32
    %c0_i32_0 = arith.constant 0 : i32
    %c0_i32_1 = arith.constant 0 : i32
    return %c0_i32, %c0_i32_0 : i32, i32
  }
  func.func @transform_3(%arg0: i32) -> (i32, i32) {
    %c0_i32 = arith.constant 0 : i32
    %c0_i32_0 = arith.constant 0 : i32
    %c0_i32_1 = arith.constant 0 : i32
    return %c0_i32, %c0_i32_0 : i32, i32
  }
  func.func @transform_4(%arg0: i32) -> (i32, i32) {
    %c0_i32 = arith.constant 0 : i32
    %c0_i32_0 = arith.constant 0 : i32
    %c0_i32_1 = arith.constant 0 : i32
    return %c0_i32, %c0_i32_0 : i32, i32
  }
  func.func @transform_5(%arg0: i32) -> (i32, i32, i32) {
    %c0_i32 = arith.constant 0 : i32
    %c0_i32_0 = arith.constant 0 : i32
    %c0_i32_1 = arith.constant 0 : i32
    return %arg0, %c0_i32, %c0_i32_0 : i32, i32, i32
  }
}

</mosaic_0001>

<llo_original>
// kernel: tpu_custom_call.1
$region0: #{tpu_custom_call.1}
  #allocation0 [shape = 'u32[]', space=smem, size = 0x4, offset = 0x4, fixed_abs, tag = 'smem constant byte address 0x4 - core index']
  #allocation1 [shape = 'u32[144,128]{1,0:T(1,128)}', space=vmem, size = 0x12000, scoped, tag = 'internal scratch']
  %s0 = inlined_call_operand.hbm [shape: f32[4,8,32], index: 0, kind: input, shape index: {}]
  %s1 = inlined_call_operand.hbm [shape: f32[32,96], index: 1, kind: input, shape index: {}]
  %s2 = inlined_call_operand.vmem [shape: f32[1,96], index: 2, kind: input, shape index: {}]
  %s3 = inlined_call_operand.hbm [shape: f32[32,32], index: 3, kind: input, shape index: {}]
  %s4 = inlined_call_operand.vmem [shape: f32[1,32], index: 4, kind: input, shape index: {}]
  %s5 = inlined_call_operand.hbm [shape: f32[4,8,32], index: 5, kind: output, shape index: {}]
  %s6 = sld [smem:[#allocation0]]
  $region42: #{tpu_custom_call.1} parent=0
    _
  %s8 = ssub.s32 1, %s6
  %s9 = scalar_select 0, %s8, %s6
  $region1: #{tpu_custom_call.1} parent=0
    #allocation2 [shape = 'u8[16384]{0}', space=vmem, size = 0x4000, scoped, tag = 'input window, operand 0, single buffered']
    #allocation3 [shape = 's32[1]{0}', space=sflag, size = 0x4, scoped, tag = 'scoped memory for tpu_custom_call.1']
    #allocation4 [shape = 's32[1]{0}', space=sflag, size = 0x4, scoped, tag = 'scoped memory for tpu_custom_call.1']
    #allocation5 [shape = 'u8[16384]{0}', space=vmem, size = 0x4000, scoped, tag = 'input window, operand 1, single buffered']
    #allocation6 [shape = 's32[1]{0}', space=sflag, size = 0x4, scoped, tag = 'scoped memory for tpu_custom_call.1']
    #allocation7 [shape = 'u8[16384]{0}', space=vmem, size = 0x4000, scoped, tag = 'input window, operand 3, single buffered']
    #allocation8 [shape = 'u8[16384]{0}', space=vmem, size = 0x4000, scoped, tag = 'output window, operand 0, single buffered']
    %10 = vsyncpa [#allocation3], 0
    %11 = vsyncpa [#allocation6], 0
    %12 = vsyncpa [#allocation4], 0
    // Predicated region
    $region2: #{tpu_custom_call.1} parent=1 // pred_check
      _
    $region3: #{tpu_custom_call.1} parent=1 // pred_check_branch
      %14 = sbr.rel (0) target = $region5
    $region4: #{tpu_custom_call.1} parent=1 // pred_region
      %s16 = ssub.s32 512, 512
      %17 = vsyncadd [#allocation3], %s16
      %s18 = sshll.u32 [#allocation2], 4
      %s19 = int_to_ptr.vmem [resolvable:$true] %s18
      %24 = dma.hbm_to_vmem [thread:$0]  %s0, 512, %s19, [#allocation3], 128, 128, 8
    $region5: #{tpu_custom_call.1} parent=1 // pred_fallthru
      _
    // Predicated region
    $region6: #{tpu_custom_call.1} parent=1 // pred_check
      _
    $region7: #{tpu_custom_call.1} parent=1 // pred_check_branch
      %26 = sbr.rel (0) target = $region9
    $region8: #{tpu_custom_call.1} parent=1 // pred_region
      %s28 = ssub.s32 512, 512
      %29 = vsyncadd [#allocation6], %s28
      %s30 = sshll.u32 [#allocation5], 4
      %s31 = int_to_ptr.vmem [resolvable:$true] %s30
      %36 = dma.hbm_to_vmem [thread:$0]  %s1, 512, %s31, [#allocation6], 128, 128, 8
    $region9: #{tpu_custom_call.1} parent=1 // pred_fallthru
      _
    // Predicated region
    $region10: #{tpu_custom_call.1} parent=1 // pred_check
      _
    $region11: #{tpu_custom_call.1} parent=1 // pred_check_branch
      %38 = sbr.rel (0) target = $region13
    $region12: #{tpu_custom_call.1} parent=1 // pred_region
      _
    $region13: #{tpu_custom_call.1} parent=1 // pred_fallthru
      _
    // Predicated region
    $region14: #{tpu_custom_call.1} parent=1 // pred_check
      _
    $region15: #{tpu_custom_call.1} parent=1 // pred_check_branch
      %40 = sbr.rel (0) target = $region17
    $region16: #{tpu_custom_call.1} parent=1 // pred_region
      %s42 = ssub.s32 512, 512
      %43 = vsyncadd [#allocation6], %s42
      %s44 = sshll.u32 [#allocation7], 4
      %s45 = int_to_ptr.vmem [resolvable:$true] %s44
      %50 = dma.hbm_to_vmem [thread:$0]  %s3, 512, %s45, [#allocation6], 128, 128, 8
    $region17: #{tpu_custom_call.1} parent=1 // pred_fallthru
      _
    // Predicated region
    $region18: #{tpu_custom_call.1} parent=1 // pred_check
      _
    $region19: #{tpu_custom_call.1} parent=1 // pred_check_branch
      %52 = sbr.rel (0) target = $region21
    $region20: #{tpu_custom_call.1} parent=1 // pred_region
      _
    $region21: #{tpu_custom_call.1} parent=1 // pred_fallthru
      _
    // Predicated region
    $region22: #{tpu_custom_call.1} parent=1 // pred_check
      _
    $region23: #{tpu_custom_call.1} parent=1 // pred_check_branch
      %54 = sbr.rel (0) target = $region25
    $region24: #{tpu_custom_call.1} parent=1 // pred_region
      %55 = dma.done [#allocation3], 512
    $region25: #{tpu_custom_call.1} parent=1 // pred_fallthru
      _
    // Predicated region
    $region26: #{tpu_custom_call.1} parent=1 // pred_check
      _
    $region27: #{tpu_custom_call.1} parent=1 // pred_check_branch
      %57 = sbr.rel (0) target = $region29
    $region28: #{tpu_custom_call.1} parent=1 // pred_region
      %58 = dma.done [#allocation6], 512
    $region29: #{tpu_custom_call.1} parent=1 // pred_fallthru
      _
    // Predicated region
    $region30: #{tpu_custom_call.1} parent=1 // pred_check
      _
    $region31: #{tpu_custom_call.1} parent=1 // pred_check_branch
      %60 = sbr.rel (0) target = $region33
    $region32: #{tpu_custom_call.1} parent=1 // pred_region
      %61 = dma.done [#allocation6], 512
    $region33: #{tpu_custom_call.1} parent=1 // pred_fallthru
      _
    %v62 = vld [vmem:[#allocation5] sm:$0xff]
    %v63 = vld [vmem:[#allocation5 + $0x8] sm:$0xff]
    %v64 = vld [vmem:[#allocation5 + $0x10] sm:$0xff]
    %v65 = vld [vmem:[#allocation5 + $0x18] sm:$0xff]
    %v66 = vld [vmem:[#allocation2] sm:$0xff]
    %v67 = vld [vmem:[#allocation2 + $0x8] sm:$0xff]
    %v68 = vld [vmem:[#allocation2 + $0x10] sm:$0xff]
    %v69 = vld [vmem:[#allocation2 + $0x18] sm:$0xff]
    %v70 = vld [vmem:[%s2] sm:$0x1]
    %v72 = vlaneseq
    %v73 = vshrl.u32 %v72, 7
    %v74 = vsub.s32 0, %v73
    %v75 = vrot.slane %v70, %v74
    %vm77 = vcmask 261120
    %v79 = vsel %vm77, %v66, 0
    %v82 = vsel %vm77, %v67, 0
    %v85 = vsel %vm77, %v68, 0
    %v88 = vsel %vm77, %v69, 0
    %90 = vmatprep.subr.mxu0 0.0
    %91 = vmatpush1.msra.mxu0 %v62
    %92 = vmatprep.subr.mxu0 0.0
    %93 = vmatpush1.msra.mxu0 %v63
    %94 = vmatprep.subr.mxu0 0.0
    %95 = vmatpush1.msra.mxu0 %v64
    %96 = vmatprep.subr.mxu0 0.0
    %97 = vmatpush1.msra.mxu0 %v65
    %98 = vmatprep.subr.mxu0 0.0
    %99 = vmatpush1.msra.mxu0 0.0
    %100 = vmatprep.subr.mxu0 0.0
    %101 = vmatpush1.msra.mxu0 0.0
    %102 = vmatprep.subr.mxu0 0.0
    %103 = vmatpush1.msra.mxu0 0.0
    %104 = vmatprep.subr.mxu0 0.0
    %105 = vmatpush1.msra.mxu0 0.0
    %106 = vmatprep.subr.mxu0 0.0
    %107 = vmatpush1.msra.mxu0 0.0
    %108 = vmatprep.subr.mxu0 0.0
    %109 = vmatpush1.msra.mxu0 0.0
    %110 = vmatprep.subr.mxu0 0.0
    %111 = vmatpush1.msra.mxu0 0.0
    %112 = vmatprep.subr.mxu0 0.0
    %113 = vmatpush1.msra.mxu0 0.0
    %114 = vmatprep.subr.mxu0 0.0
    %115 = vmatpush1.msra.mxu0 0.0
    %116 = vmatprep.subr.mxu0 0.0
    %117 = vmatpush1.msra.mxu0 0.0
    %118 = vmatprep.subr.mxu0 0.0
    %119 = vmatpush1.msra.mxu0 0.0
    %120 = vmatprep.subr.mxu0 0.0
    %121 = vmatpush1.msra.mxu0 0.0
    %122 = vmatprep.subr.mxu0 0.0
    %123 = vmatpush1.msra.mxu0 0.0
    %124 = vmatprep.subr.mxu0 0.0
    %125 = vmatpush1.msra.mxu0 0.0
    %126 = vmatprep.subr.mxu0 0.0
    %127 = vmatpush1.msra.mxu0 0.0
    %128 = vmatprep.subr.mxu0 0.0
    %129 = vmatpush1.msra.mxu0 0.0
    %130 = vmatprep.subr.mxu0 0.0
    %131 = vmatpush1.msra.mxu0 0.0
    %132 = vmatprep.subr.mxu0 0.0
    %133 = vmatpush1.msra.mxu0 0.0
    %134 = vmatprep.subr.mxu0 0.0
    %135 = vmatpush1.msra.mxu0 0.0
    %136 = vmatprep.subr.mxu0 0.0
    %137 = vmatpush1.msra.mxu0 0.0
    %138 = vmatprep.subr.mxu0 0.0
    %139 = vmatpush1.msra.mxu0 0.0
    %140 = vmatprep.subr.mxu0 0.0
    %141 = vmatpush1.msra.mxu0 0.0
    %142 = vmatprep.subr.mxu0 0.0
    %143 = vmatpush1.msra.mxu0 0.0
    %144 = vmatprep.subr.mxu0 0.0
    %145 = vmatpush1.msra.mxu0 0.0
    %146 = vmatprep.subr.mxu0 0.0
    %147 = vmatpush1.msra.mxu0 0.0
    %148 = vmatprep.subr.mxu0 0.0
    %149 = vmatpush1.msra.mxu0 0.0
    %150 = vmatprep.subr.mxu0 0.0
    %151 = vmatpush1.msra.mxu0 0.0
    %152 = vmatprep.subr.mxu0 0.0
    %153 = vmatpush1.msra.mxu0 0.0
    %154 = vmatprep.mubr.f32.mxu0 0.0
    %155 = vmatmul.mubr.f32.gmra.mrb[0].mxu0 %v79
    %v156 = vpop.f32.mrb[0].mxu0
    %v157 = vadd.f32 %v75, %v156
    %v158 = vpop.f32.mrb[0].mxu0
    %159 = vmatprep.mubr.f32.mxu0 0.0
    %160 = vmatmul.mubr.f32.gmra.mrb[0].mxu0 %v82
    %v161 = vpop.f32.mrb[0].mxu0
    %v162 = vadd.f32 %v75, %v161
    %v163 = vpop.f32.mrb[0].mxu0
    %164 = vmatprep.mubr.f32.mxu0 0.0
    %165 = vmatmul.mubr.f32.gmra.mrb[0].mxu0 %v85
    %v166 = vpop.f32.mrb[0].mxu0
    %v167 = vadd.f32 %v75, %v166
    %v168 = vpop.f32.mrb[0].mxu0
    %169 = vmatprep.mubr.f32.mxu0 0.0
    %170 = vmatmul.mubr.f32.gmra.mrb[0].mxu0 %v88
    %v171 = vpop.f32.mrb[0].mxu0
    %v172 = vadd.f32 %v75, %v171
    %v173 = vpop.f32.mrb[0].mxu0
    %174 = vdwg.mxu0
    %176 = vrot.lane.b32.xlu0 %v157, 96
    %v177 = vpop.permute.xlu0 %176
    %vm178 = vcmask 64512
    %v179 = vsel %vm178, %v157, 0
    %v181 = vsel %vm178, %v177, 0
    %183 = vmatprep.subr.mxu0 0.0
    %184 = vmatpush1.xpose.msra.mxu0 %v181
    %185 = vmatprep.subr.mxu0 0.0
    %186 = vmatpush1.xpose.msra.mxu0 0.0
    %187 = vmatprep.subr.mxu0 0.0
    %188 = vmatpush1.xpose.msra.mxu0 0.0
    %189 = vmatprep.subr.mxu0 0.0
    %190 = vmatpush1.xpose.msra.mxu0 0.0
    %191 = vmatprep.subr.mxu0 0.0
    %192 = vmatpush1.xpose.msra.mxu0 0.0
    %193 = vmatprep.subr.mxu0 0.0
    %194 = vmatpush1.xpose.msra.mxu0 0.0
    %195 = vmatprep.subr.mxu0 0.0
    %196 = vmatpush1.xpose.msra.mxu0 0.0
    %197 = vmatprep.subr.mxu0 0.0
    %198 = vmatpush1.xpose.msra.mxu0 0.0
    %199 = vmatprep.subr.mxu0 0.0
    %200 = vmatpush1.xpose.msra.mxu0 0.0
    %201 = vmatprep.subr.mxu0 0.0
    %202 = vmatpush1.xpose.msra.mxu0 0.0
    %203 = vmatprep.subr.mxu0 0.0
    %204 = vmatpush1.xpose.msra.mxu0 0.0
    %205 = vmatprep.subr.mxu0 0.0
    %206 = vmatpush1.xpose.msra.mxu0 0.0
    %207 = vmatprep.subr.mxu0 0.0
    %208 = vmatpush1.xpose.msra.mxu0 0.0
    %209 = vmatprep.subr.mxu0 0.0
    %210 = vmatpush1.xpose.msra.mxu0 0.0
    %211 = vmatprep.subr.mxu0 0.0
    %212 = vmatpush1.xpose.msra.mxu0 0.0
    %213 = vmatprep.subr.mxu0 0.0
    %214 = vmatpush1.xpose.msra.mxu0 0.0
    %215 = vmatprep.subr.mxu0 0.0
    %216 = vmatpush1.xpose.msra.mxu0 0.0
    %217 = vmatprep.subr.mxu0 0.0
    %218 = vmatpush1.xpose.msra.mxu0 0.0
    %219 = vmatprep.subr.mxu0 0.0
    %220 = vmatpush1.xpose.msra.mxu0 0.0
    %221 = vmatprep.subr.mxu0 0.0
    %222 = vmatpush1.xpose.msra.mxu0 0.0
    %223 = vmatprep.subr.mxu0 0.0
    %224 = vmatpush1.xpose.msra.mxu0 0.0
    %225 = vmatprep.subr.mxu0 0.0
    %226 = vmatpush1.xpose.msra.mxu0 0.0
    %227 = vmatprep.subr.mxu0 0.0
    %228 = vmatpush1.xpose.msra.mxu0 0.0
    %229 = vmatprep.subr.mxu0 0.0
    %230 = vmatpush1.xpose.msra.mxu0 0.0
    %231 = vmatprep.subr.mxu0 0.0
    %232 = vmatpush1.xpose.msra.mxu0 0.0
    %233 = vmatprep.subr.mxu0 0.0
    %234 = vmatpush1.xpose.msra.mxu0 0.0
    %235 = vmatprep.subr.mxu0 0.0
    %236 = vmatpush1.xpose.msra.mxu0 0.0
    %237 = vmatprep.subr.mxu0 0.0
    %238 = vmatpush1.xpose.msra.mxu0 0.0
    %239 = vmatprep.subr.mxu0 0.0
    %240 = vmatpush1.xpose.msra.mxu0 0.0
    %241 = vmatprep.subr.mxu0 0.0
    %242 = vmatpush1.xpose.msra.mxu0 0.0
    %243 = vmatprep.subr.mxu0 0.0
    %244 = vmatpush1.xpose.msra.mxu0 0.0
    %245 = vmatprep.subr.mxu0 0.0
    %246 = vmatpush1.xpose.msra.mxu0 0.0
    %247 = vmatprep.mubr.f32.mxu0 0.0
    %248 = vmatmul.mubr.f32.gmra.mrb[0].mxu0 %v179
    %v249 = vpop.f32.mrb[0].mxu0
    %v250 = vadd.f32 0.0, %v249
    %v251 = vpop.f32.mrb[0].mxu0
    %252 = vdwg.mxu0
    %254 = vrot.lane.b32.xlu0 %v162, 96
    %v255 = vpop.permute.xlu0 %254
    %v256 = vsel %vm178, %v162, 0
    %v258 = vsel %vm178, %v255, 0
    %260 = vmatprep.subr.mxu0 0.0
    %261 = vmatpush1.xpose.msra.mxu0 %v258
    %262 = vmatprep.subr.mxu0 0.0
    %263 = vmatpush1.xpose.msra.mxu0 0.0
    %264 = vmatprep.subr.mxu0 0.0
    %265 = vmatpush1.xpose.msra.mxu0 0.0
    %266 = vmatprep.subr.mxu0 0.0
    %267 = vmatpush1.xpose.msra.mxu0 0.0
    %268 = vmatprep.subr.mxu0 0.0
    %269 = vmatpush1.xpose.msra.mxu0 0.0
    %270 = vmatprep.subr.mxu0 0.0
    %271 = vmatpush1.xpose.msra.mxu0 0.0
    %272 = vmatprep.subr.mxu0 0.0
    %273 = vmatpush1.xpose.msra.mxu0 0.0
    %274 = vmatprep.subr.mxu0 0.0
    %275 = vmatpush1.xpose.msra.mxu0 0.0
    %276 = vmatprep.subr.mxu0 0.0
    %277 = vmatpush1.xpose.msra.mxu0 0.0
    %278 = vmatprep.subr.mxu0 0.0
    %279 = vmatpush1.xpose.msra.mxu0 0.0
    %280 = vmatprep.subr.mxu0 0.0
    %281 = vmatpush1.xpose.msra.mxu0 0.0
    %282 = vmatprep.subr.mxu0 0.0
    %283 = vmatpush1.xpose.msra.mxu0 0.0
    %284 = vmatprep.subr.mxu0 0.0
    %285 = vmatpush1.xpose.msra.mxu0 0.0
    %286 = vmatprep.subr.mxu0 0.0
    %287 = vmatpush1.xpose.msra.mxu0 0.0
    %288 = vmatprep.subr.mxu0 0.0
    %289 = vmatpush1.xpose.msra.mxu0 0.0
    %290 = vmatprep.subr.mxu0 0.0
    %291 = vmatpush1.xpose.msra.mxu0 0.0
    %292 = vmatprep.subr.mxu0 0.0
    %293 = vmatpush1.xpose.msra.mxu0 0.0
    %294 = vmatprep.subr.mxu0 0.0
    %295 = vmatpush1.xpose.msra.mxu0 0.0
    %296 = vmatprep.subr.mxu0 0.0
    %297 = vmatpush1.xpose.msra.mxu0 0.0
    %298 = vmatprep.subr.mxu0 0.0
    %299 = vmatpush1.xpose.msra.mxu0 0.0
    %300 = vmatprep.subr.mxu0 0.0
    %301 = vmatpush1.xpose.msra.mxu0 0.0
    %302 = vmatprep.subr.mxu0 0.0
    %303 = vmatpush1.xpose.msra.mxu0 0.0
    %304 = vmatprep.subr.mxu0 0.0
    %305 = vmatpush1.xpose.msra.mxu0 0.0
    %306 = vmatprep.subr.mxu0 0.0
    %307 = vmatpush1.xpose.msra.mxu0 0.0
    %308 = vmatprep.subr.mxu0 0.0
    %309 = vmatpush1.xpose.msra.mxu0 0.0
    %310 = vmatprep.subr.mxu0 0.0
    %311 = vmatpush1.xpose.msra.mxu0 0.0
    %312 = vmatprep.subr.mxu0 0.0
    %313 = vmatpush1.xpose.msra.mxu0 0.0
    %314 = vmatprep.subr.mxu0 0.0
    %315 = vmatpush1.xpose.msra.mxu0 0.0
    %316 = vmatprep.subr.mxu0 0.0
    %317 = vmatpush1.xpose.msra.mxu0 0.0
    %318 = vmatprep.subr.mxu0 0.0
    %319 = vmatpush1.xpose.msra.mxu0 0.0
    %320 = vmatprep.subr.mxu0 0.0
    %321 = vmatpush1.xpose.msra.mxu0 0.0
    %322 = vmatprep.subr.mxu0 0.0
    %323 = vmatpush1.xpose.msra.mxu0 0.0
    %324 = vmatprep.mubr.f32.mxu0 0.0
    %325 = vmatmul.mubr.f32.gmra.mrb[0].mxu0 %v256
    %v326 = vpop.f32.mrb[0].mxu0
    %v327 = vadd.f32 0.0, %v326
    %v328 = vpop.f32.mrb[0].mxu0
    %329 = vdwg.mxu0
    %331 = vrot.lane.b32.xlu0 %v167, 96
    %v332 = vpop.permute.xlu0 %331
    %v333 = vsel %vm178, %v167, 0
    %v335 = vsel %vm178, %v332, 0
    %337 = vmatprep.subr.mxu0 0.0
    %338 = vmatpush1.xpose.msra.mxu0 %v335
    %339 = vmatprep.subr.mxu0 0.0
    %340 = vmatpush1.xpose.msra.mxu0 0.0
    %341 = vmatprep.subr.mxu0 0.0
    %342 = vmatpush1.xpose.msra.mxu0 0.0
    %343 = vmatprep.subr.mxu0 0.0
    %344 = vmatpush1.xpose.msra.mxu0 0.0
    %345 = vmatprep.subr.mxu0 0.0
    %346 = vmatpush1.xpose.msra.mxu0 0.0
    %347 = vmatprep.subr.mxu0 0.0
    %348 = vmatpush1.xpose.msra.mxu0 0.0
    %349 = vmatprep.subr.mxu0 0.0
    %350 = vmatpush1.xpose.msra.mxu0 0.0
    %351 = vmatprep.subr.mxu0 0.0
    %352 = vmatpush1.xpose.msra.mxu0 0.0
    %353 = vmatprep.subr.mxu0 0.0
    %354 = vmatpush1.xpose.msra.mxu0 0.0
    %355 = vmatprep.subr.mxu0 0.0
    %356 = vmatpush1.xpose.msra.mxu0 0.0
    %357 = vmatprep.subr.mxu0 0.0
    %358 = vmatpush1.xpose.msra.mxu0 0.0
    %359 = vmatprep.subr.mxu0 0.0
    %360 = vmatpush1.xpose.msra.mxu0 0.0
    %361 = vmatprep.subr.mxu0 0.0
    %362 = vmatpush1.xpose.msra.mxu0 0.0
    %363 = vmatprep.subr.mxu0 0.0
    %364 = vmatpush1.xpose.msra.mxu0 0.0
    %365 = vmatprep.subr.mxu0 0.0
    %366 = vmatpush1.xpose.msra.mxu0 0.0
    %367 = vmatprep.subr.mxu0 0.0
    %368 = vmatpush1.xpose.msra.mxu0 0.0
    %369 = vmatprep.subr.mxu0 0.0
    %370 = vmatpush1.xpose.msra.mxu0 0.0
    %371 = vmatprep.subr.mxu0 0.0
    %372 = vmatpush1.xpose.msra.mxu0 0.0
    %373 = vmatprep.subr.mxu0 0.0
    %374 = vmatpush1.xpose.msra.mxu0 0.0
    %375 = vmatprep.subr.mxu0 0.0
    %376 = vmatpush1.xpose.msra.mxu0 0.0
    %377 = vmatprep.subr.mxu0 0.0
    %378 = vmatpush1.xpose.msra.mxu0 0.0
    %379 = vmatprep.subr.mxu0 0.0
    %380 = vmatpush1.xpose.msra.mxu0 0.0
    %381 = vmatprep.subr.mxu0 0.0
    %382 = vmatpush1.xpose.msra.mxu0 0.0
    %383 = vmatprep.subr.mxu0 0.0
    %384 = vmatpush1.xpose.msra.mxu0 0.0
    %385 = vmatprep.subr.mxu0 0.0
    %386 = vmatpush1.xpose.msra.mxu0 0.0
    %387 = vmatprep.subr.mxu0 0.0
    %388 = vmatpush1.xpose.msra.mxu0 0.0
    %389 = vmatprep.subr.mxu0 0.0
    %390 = vmatpush1.xpose.msra.mxu0 0.0
    %391 = vmatprep.subr.mxu0 0.0
    %392 = vmatpush1.xpose.msra.mxu0 0.0
    %393 = vmatprep.subr.mxu0 0.0
    %394 = vmatpush1.xpose.msra.mxu0 0.0
    %395 = vmatprep.subr.mxu0 0.0
    %396 = vmatpush1.xpose.msra.mxu0 0.0
    %397 = vmatprep.subr.mxu0 0.0
    %398 = vmatpush1.xpose.msra.mxu0 0.0
    %399 = vmatprep.subr.mxu0 0.0
    %400 = vmatpush1.xpose.msra.mxu0 0.0
    %401 = vmatprep.mubr.f32.mxu0 0.0
    %402 = vmatmul.mubr.f32.gmra.mrb[0].mxu0 %v333
    %v403 = vpop.f32.mrb[0].mxu0
    %v404 = vadd.f32 0.0, %v403
    %v405 = vpop.f32.mrb[0].mxu0
    %406 = vdwg.mxu0
    %408 = vrot.lane.b32.xlu0 %v172, 96
    %v409 = vpop.permute.xlu0 %408
    %v410 = vsel %vm178, %v172, 0
    %v412 = vsel %vm178, %v409, 0
    %414 = vmatprep.subr.mxu0 0.0
    %415 = vmatpush1.xpose.msra.mxu0 %v412
    %416 = vmatprep.subr.mxu0 0.0
    %417 = vmatpush1.xpose.msra.mxu0 0.0
    %418 = vmatprep.subr.mxu0 0.0
    %419 = vmatpush1.xpose.msra.mxu0 0.0
    %420 = vmatprep.subr.mxu0 0.0
    %421 = vmatpush1.xpose.msra.mxu0 0.0
    %422 = vmatprep.subr.mxu0 0.0
    %423 = vmatpush1.xpose.msra.mxu0 0.0
    %424 = vmatprep.subr.mxu0 0.0
    %425 = vmatpush1.xpose.msra.mxu0 0.0
    %426 = vmatprep.subr.mxu0 0.0
    %427 = vmatpush1.xpose.msra.mxu0 0.0
    %428 = vmatprep.subr.mxu0 0.0
    %429 = vmatpush1.xpose.msra.mxu0 0.0
    %430 = vmatprep.subr.mxu0 0.0
    %431 = vmatpush1.xpose.msra.mxu0 0.0
    %432 = vmatprep.subr.mxu0 0.0
    %433 = vmatpush1.xpose.msra.mxu0 0.0
    %434 = vmatprep.subr.mxu0 0.0
    %435 = vmatpush1.xpose.msra.mxu0 0.0
    %436 = vmatprep.subr.mxu0 0.0
    %437 = vmatpush1.xpose.msra.mxu0 0.0
    %438 = vmatprep.subr.mxu0 0.0
    %439 = vmatpush1.xpose.msra.mxu0 0.0
    %440 = vmatprep.subr.mxu0 0.0
    %441 = vmatpush1.xpose.msra.mxu0 0.0
    %442 = vmatprep.subr.mxu0 0.0
    %443 = vmatpush1.xpose.msra.mxu0 0.0
    %444 = vmatprep.subr.mxu0 0.0
    %445 = vmatpush1.xpose.msra.mxu0 0.0
    %446 = vmatprep.subr.mxu0 0.0
    %447 = vmatpush1.xpose.msra.mxu0 0.0
    %448 = vmatprep.subr.mxu0 0.0
    %449 = vmatpush1.xpose.msra.mxu0 0.0
    %450 = vmatprep.subr.mxu0 0.0
    %451 = vmatpush1.xpose.msra.mxu0 0.0
    %452 = vmatprep.subr.mxu0 0.0
    %453 = vmatpush1.xpose.msra.mxu0 0.0
    %454 = vmatprep.subr.mxu0 0.0
    %455 = vmatpush1.xpose.msra.mxu0 0.0
    %456 = vmatprep.subr.mxu0 0.0
    %457 = vmatpush1.xpose.msra.mxu0 0.0
    %458 = vmatprep.subr.mxu0 0.0
    %459 = vmatpush1.xpose.msra.mxu0 0.0
    %460 = vmatprep.subr.mxu0 0.0
    %461 = vmatpush1.xpose.msra.mxu0 0.0
    %462 = vmatprep.subr.mxu0 0.0
    %463 = vmatpush1.xpose.msra.mxu0 0.0
    %464 = vmatprep.subr.mxu0 0.0
    %465 = vmatpush1.xpose.msra.mxu0 0.0
    %466 = vmatprep.subr.mxu0 0.0
    %467 = vmatpush1.xpose.msra.mxu0 0.0
    %468 = vmatprep.subr.mxu0 0.0
    %469 = vmatpush1.xpose.msra.mxu0 0.0
    %470 = vmatprep.subr.mxu0 0.0
    %471 = vmatpush1.xpose.msra.mxu0 0.0
    %472 = vmatprep.subr.mxu0 0.0
    %473 = vmatpush1.xpose.msra.mxu0 0.0
    %474 = vmatprep.subr.mxu0 0.0
    %475 = vmatpush1.xpose.msra.mxu0 0.0
    %476 = vmatprep.subr.mxu0 0.0
    %477 = vmatpush1.xpose.msra.mxu0 0.0
    %478 = vmatprep.mubr.f32.mxu0 0.0
    %479 = vmatmul.mubr.f32.gmra.mrb[0].mxu0 %v410
    %v480 = vpop.f32.mrb[0].mxu0
    %v481 = vadd.f32 0.0, %v480
    %v482 = vpop.f32.mrb[0].mxu0
    %483 = vdwg.mxu0
    %v484 = vsel %vm178, %v250, -inf
    %485 = vmax.xlane.f32.xlu0 %v484
    %v486 = vpop.xlane.xlu0 %485
    %v487 = vsel %vm178, %v327, -inf
    %488 = vmax.xlane.f32.xlu0 %v487
    %v489 = vpop.xlane.xlu0 %488
    %v490 = vsel %vm178, %v404, -inf
    %491 = vmax.xlane.f32.xlu0 %v490
    %v492 = vpop.xlane.xlu0 %491
    %v493 = vsel %vm178, %v481, -inf
    %494 = vmax.xlane.f32.xlu0 %v493
    %v495 = vpop.xlane.xlu0 %494
    %v496 = vsub.f32 %v250, %v486
    %v497 = vsub.f32 %v327, %v489
    %v498 = vsub.f32 %v404, %v492
    %v499 = vsub.f32 %v481, %v495
    %v500 = vmul.f32 %v496, 1.442695
    %v501 = vpow.pop %v500
    %v502 = vmul.f32 %v497, 1.442695
    %v503 = vpow.pop %v502
    %v504 = vmul.f32 %v498, 1.442695
    %v505 = vpow.pop %v504
    %v506 = vmul.f32 %v499, 1.442695
    %v507 = vpow.pop %v506
    %v508 = vsel %vm178, %v501, 0.0
    %509 = vadd.xlane.f32.xlu0 %v508
    %v510 = vpop.xlane.xlu0 %509
    %v511 = vsel %vm178, %v503, 0.0
    %512 = vadd.xlane.f32.xlu0 %v511
    %v513 = vpop.xlane.xlu0 %512
    %v514 = vsel %vm178, %v505, 0.0
    %515 = vadd.xlane.f32.xlu0 %v514
    %v516 = vpop.xlane.xlu0 %515
    %v517 = vsel %vm178, %v507, 0.0
    %518 = vadd.xlane.f32.xlu0 %v517
    %v519 = vpop.xlane.xlu0 %518
    %v520 = vrcp.pop %v510
    %v521 = vrcp.pop %v513
    %v522 = vrcp.pop %v516
    %v523 = vrcp.pop %v519
    %524 = vrot.lane.b32.xlu0 %v157, 64
    %v525 = vpop.permute.xlu0 %524
    %v528 = vsel %vm178, %v501, 0
    %530 = vmatprep.subr.mxu0 0.0
    %531 = vmatpush1.msra.mxu0 %v525
    %532 = vmatprep.subr.mxu0 0.0
    %533 = vmatpush1.msra.mxu0 0.0
    %534 = vmatprep.subr.mxu0 0.0
    %535 = vmatpush1.msra.mxu0 0.0
    %536 = vmatprep.subr.mxu0 0.0
    %537 = vmatpush1.msra.mxu0 0.0
    %538 = vmatprep.subr.mxu0 0.0
    %539 = vmatpush1.msra.mxu0 0.0
    %540 = vmatprep.subr.mxu0 0.0
    %541 = vmatpush1.msra.mxu0 0.0
    %542 = vmatprep.subr.mxu0 0.0
    %543 = vmatpush1.msra.mxu0 0.0
    %544 = vmatprep.subr.mxu0 0.0
    %545 = vmatpush1.msra.mxu0 0.0
    %546 = vmatprep.subr.mxu0 0.0
    %547 = vmatpush1.msra.mxu0 0.0
    %548 = vmatprep.subr.mxu0 0.0
    %549 = vmatpush1.msra.mxu0 0.0
    %550 = vmatprep.subr.mxu0 0.0
    %551 = vmatpush1.msra.mxu0 0.0
    %552 = vmatprep.subr.mxu0 0.0
    %553 = vmatpush1.msra.mxu0 0.0
    %554 = vmatprep.subr.mxu0 0.0
    %555 = vmatpush1.msra.mxu0 0.0
    %556 = vmatprep.subr.mxu0 0.0
    %557 = vmatpush1.msra.mxu0 0.0
    %558 = vmatprep.subr.mxu0 0.0
    %559 = vmatpush1.msra.mxu0 0.0
    %560 = vmatprep.subr.mxu0 0.0
    %561 = vmatpush1.msra.mxu0 0.0
    %562 = vmatprep.subr.mxu0 0.0
    %563 = vmatpush1.msra.mxu0 0.0
    %564 = vmatprep.subr.mxu0 0.0
    %565 = vmatpush1.msra.mxu0 0.0
    %566 = vmatprep.subr.mxu0 0.0
    %567 = vmatpush1.msra.mxu0 0.0
    %568 = vmatprep.subr.mxu0 0.0
    %569 = vmatpush1.msra.mxu0 0.0
    %570 = vmatprep.subr.mxu0 0.0
    %571 = vmatpush1.msra.mxu0 0.0
    %572 = vmatprep.subr.mxu0 0.0
    %573 = vmatpush1.msra.mxu0 0.0
    %574 = vmatprep.subr.mxu0 0.0
    %575 = vmatpush1.msra.mxu0 0.0
    %576 = vmatprep.subr.mxu0 0.0
    %577 = vmatpush1.msra.mxu0 0.0
    %578 = vmatprep.subr.mxu0 0.0
    %579 = vmatpush1.msra.mxu0 0.0
    %580 = vmatprep.subr.mxu0 0.0
    %581 = vmatpush1.msra.mxu0 0.0
    %582 = vmatprep.subr.mxu0 0.0
    %583 = vmatpush1.msra.mxu0 0.0
    %584 = vmatprep.subr.mxu0 0.0
    %585 = vmatpush1.msra.mxu0 0.0
    %586 = vmatprep.subr.mxu0 0.0
    %587 = vmatpush1.msra.mxu0 0.0
    %588 = vmatprep.subr.mxu0 0.0
    %589 = vmatpush1.msra.mxu0 0.0
    %590 = vmatprep.subr.mxu0 0.0
    %591 = vmatpush1.msra.mxu0 0.0
    %592 = vmatprep.subr.mxu0 0.0
    %593 = vmatpush1.msra.mxu0 0.0
    %594 = vmatprep.mubr.f32.mxu0 0.0
    %595 = vmatmul.mubr.f32.gmra.mrb[0].mxu0 %v528
    %v596 = vpop.f32.mrb[0].mxu0
    %v597 = vadd.f32 0.0, %v596
    %v598 = vpop.f32.mrb[0].mxu0
    %599 = vdwg.mxu0
    %600 = vrot.lane.b32.xlu0 %v162, 64
    %v601 = vpop.permute.xlu0 %600
    %v604 = vsel %vm178, %v503, 0
    %606 = vmatprep.subr.mxu0 0.0
    %607 = vmatpush1.msra.mxu0 %v601
    %608 = vmatprep.subr.mxu0 0.0
    %609 = vmatpush1.msra.mxu0 0.0
    %610 = vmatprep.subr.mxu0 0.0
    %611 = vmatpush1.msra.mxu0 0.0
    %612 = vmatprep.subr.mxu0 0.0
    %613 = vmatpush1.msra.mxu0 0.0
    %614 = vmatprep.subr.mxu0 0.0
    %615 = vmatpush1.msra.mxu0 0.0
    %616 = vmatprep.subr.mxu0 0.0
    %617 = vmatpush1.msra.mxu0 0.0
    %618 = vmatprep.subr.mxu0 0.0
    %619 = vmatpush1.msra.mxu0 0.0
    %620 = vmatprep.subr.mxu0 0.0
    %621 = vmatpush1.msra.mxu0 0.0
    %622 = vmatprep.subr.mxu0 0.0
    %623 = vmatpush1.msra.mxu0 0.0
    %624 = vmatprep.subr.mxu0 0.0
    %625 = vmatpush1.msra.mxu0 0.0
    %626 = vmatprep.subr.mxu0 0.0
    %627 = vmatpush1.msra.mxu0 0.0
    %628 = vmatprep.subr.mxu0 0.0
    %629 = vmatpush1.msra.mxu0 0.0
    %630 = vmatprep.subr.mxu0 0.0
    %631 = vmatpush1.msra.mxu0 0.0
    %632 = vmatprep.subr.mxu0 0.0
    %633 = vmatpush1.msra.mxu0 0.0
    %634 = vmatprep.subr.mxu0 0.0
    %635 = vmatpush1.msra.mxu0 0.0
    %636 = vmatprep.subr.mxu0 0.0
    %637 = vmatpush1.msra.mxu0 0.0
    %638 = vmatprep.subr.mxu0 0.0
    %639 = vmatpush1.msra.mxu0 0.0
    %640 = vmatprep.subr.mxu0 0.0
    %641 = vmatpush1.msra.mxu0 0.0
    %642 = vmatprep.subr.mxu0 0.0
    %643 = vmatpush1.msra.mxu0 0.0
    %644 = vmatprep.subr.mxu0 0.0
    %645 = vmatpush1.msra.mxu0 0.0
    %646 = vmatprep.subr.mxu0 0.0
    %647 = vmatpush1.msra.mxu0 0.0
    %648 = vmatprep.subr.mxu0 0.0
    %649 = vmatpush1.msra.mxu0 0.0
    %650 = vmatprep.subr.mxu0 0.0
    %651 = vmatpush1.msra.mxu0 0.0
    %652 = vmatprep.subr.mxu0 0.0
    %653 = vmatpush1.msra.mxu0 0.0
    %654 = vmatprep.subr.mxu0 0.0
    %655 = vmatpush1.msra.mxu0 0.0
    %656 = vmatprep.subr.mxu0 0.0
    %657 = vmatpush1.msra.mxu0 0.0
    %658 = vmatprep.subr.mxu0 0.0
    %659 = vmatpush1.msra.mxu0 0.0
    %660 = vmatprep.subr.mxu0 0.0
    %661 = vmatpush1.msra.mxu0 0.0
    %662 = vmatprep.subr.mxu0 0.0
    %663 = vmatpush1.msra.mxu0 0.0
    %664 = vmatprep.subr.mxu0 0.0
    %665 = vmatpush1.msra.mxu0 0.0
    %666 = vmatprep.subr.mxu0 0.0
    %667 = vmatpush1.msra.mxu0 0.0
    %668 = vmatprep.subr.mxu0 0.0
    %669 = vmatpush1.msra.mxu0 0.0
    %670 = vmatprep.mubr.f32.mxu0 0.0
    %671 = vmatmul.mubr.f32.gmra.mrb[0].mxu0 %v604
    %v672 = vpop.f32.mrb[0].mxu0
    %v673 = vadd.f32 0.0, %v672
    %v674 = vpop.f32.mrb[0].mxu0
    %675 = vdwg.mxu0
    %676 = vrot.lane.b32.xlu0 %v167, 64
    %v677 = vpop.permute.xlu0 %676
    %v680 = vsel %vm178, %v505, 0
    %682 = vmatprep.subr.mxu0 0.0
    %683 = vmatpush1.msra.mxu0 %v677
    %684 = vmatprep.subr.mxu0 0.0
    %685 = vmatpush1.msra.mxu0 0.0
    %686 = vmatprep.subr.mxu0 0.0
    %687 = vmatpush1.msra.mxu0 0.0
    %688 = vmatprep.subr.mxu0 0.0
    %689 = vmatpush1.msra.mxu0 0.0
    %690 = vmatprep.subr.mxu0 0.0
    %691 = vmatpush1.msra.mxu0 0.0
    %692 = vmatprep.subr.mxu0 0.0
    %693 = vmatpush1.msra.mxu0 0.0
    %694 = vmatprep.subr.mxu0 0.0
    %695 = vmatpush1.msra.mxu0 0.0
    %696 = vmatprep.subr.mxu0 0.0
    %697 = vmatpush1.msra.mxu0 0.0
    %698 = vmatprep.subr.mxu0 0.0
    %699 = vmatpush1.msra.mxu0 0.0
    %700 = vmatprep.subr.mxu0 0.0
    %701 = vmatpush1.msra.mxu0 0.0
    %702 = vmatprep.subr.mxu0 0.0
    %703 = vmatpush1.msra.mxu0 0.0
    %704 = vmatprep.subr.mxu0 0.0
    %705 = vmatpush1.msra.mxu0 0.0
    %706 = vmatprep.subr.mxu0 0.0
    %707 = vmatpush1.msra.mxu0 0.0
    %708 = vmatprep.subr.mxu0 0.0
    %709 = vmatpush1.msra.mxu0 0.0
    %710 = vmatprep.subr.mxu0 0.0
    %711 = vmatpush1.msra.mxu0 0.0
    %712 = vmatprep.subr.mxu0 0.0
    %713 = vmatpush1.msra.mxu0 0.0
    %714 = vmatprep.subr.mxu0 0.0
    %715 = vmatpush1.msra.mxu0 0.0
    %716 = vmatprep.subr.mxu0 0.0
    %717 = vmatpush1.msra.mxu0 0.0
    %718 = vmatprep.subr.mxu0 0.0
    %719 = vmatpush1.msra.mxu0 0.0
    %720 = vmatprep.subr.mxu0 0.0
    %721 = vmatpush1.msra.mxu0 0.0
    %722 = vmatprep.subr.mxu0 0.0
    %723 = vmatpush1.msra.mxu0 0.0
    %724 = vmatprep.subr.mxu0 0.0
    %725 = vmatpush1.msra.mxu0 0.0
    %726 = vmatprep.subr.mxu0 0.0
    %727 = vmatpush1.msra.mxu0 0.0
    %728 = vmatprep.subr.mxu0 0.0
    %729 = vmatpush1.msra.mxu0 0.0
    %730 = vmatprep.subr.mxu0 0.0
    %731 = vmatpush1.msra.mxu0 0.0
    %732 = vmatprep.subr.mxu0 0.0
    %733 = vmatpush1.msra.mxu0 0.0
    %734 = vmatprep.subr.mxu0 0.0
    %735 = vmatpush1.msra.mxu0 0.0
    %736 = vmatprep.subr.mxu0 0.0
    %737 = vmatpush1.msra.mxu0 0.0
    %738 = vmatprep.subr.mxu0 0.0
    %739 = vmatpush1.msra.mxu0 0.0
    %740 = vmatprep.subr.mxu0 0.0
    %741 = vmatpush1.msra.mxu0 0.0
    %742 = vmatprep.subr.mxu0 0.0
    %743 = vmatpush1.msra.mxu0 0.0
    %744 = vmatprep.subr.mxu0 0.0
    %745 = vmatpush1.msra.mxu0 0.0
    %746 = vmatprep.mubr.f32.mxu0 0.0
    %747 = vmatmul.mubr.f32.gmra.mrb[0].mxu0 %v680
    %v748 = vpop.f32.mrb[0].mxu0
    %v749 = vadd.f32 0.0, %v748
    %v750 = vpop.f32.mrb[0].mxu0
    %751 = vdwg.mxu0
    %752 = vrot.lane.b32.xlu0 %v172, 64
    %v753 = vpop.permute.xlu0 %752
    %v756 = vsel %vm178, %v507, 0
    %758 = vmatprep.subr.mxu0 0.0
    %759 = vmatpush1.msra.mxu0 %v753
    %760 = vmatprep.subr.mxu0 0.0
    %761 = vmatpush1.msra.mxu0 0.0
    %762 = vmatprep.subr.mxu0 0.0
    %763 = vmatpush1.msra.mxu0 0.0
    %764 = vmatprep.subr.mxu0 0.0
    %765 = vmatpush1.msra.mxu0 0.0
    %766 = vmatprep.subr.mxu0 0.0
    %767 = vmatpush1.msra.mxu0 0.0
    %768 = vmatprep.subr.mxu0 0.0
    %769 = vmatpush1.msra.mxu0 0.0
    %770 = vmatprep.subr.mxu0 0.0
    %771 = vmatpush1.msra.mxu0 0.0
    %772 = vmatprep.subr.mxu0 0.0
    %773 = vmatpush1.msra.mxu0 0.0
    %774 = vmatprep.subr.mxu0 0.0
    %775 = vmatpush1.msra.mxu0 0.0
    %776 = vmatprep.subr.mxu0 0.0
    %777 = vmatpush1.msra.mxu0 0.0
    %778 = vmatprep.subr.mxu0 0.0
    %779 = vmatpush1.msra.mxu0 0.0
    %780 = vmatprep.subr.mxu0 0.0
    %781 = vmatpush1.msra.mxu0 0.0
    %782 = vmatprep.subr.mxu0 0.0
    %783 = vmatpush1.msra.mxu0 0.0
    %784 = vmatprep.subr.mxu0 0.0
    %785 = vmatpush1.msra.mxu0 0.0
    %786 = vmatprep.subr.mxu0 0.0
    %787 = vmatpush1.msra.mxu0 0.0
    %788 = vmatprep.subr.mxu0 0.0
    %789 = vmatpush1.msra.mxu0 0.0
    %790 = vmatprep.subr.mxu0 0.0
    %791 = vmatpush1.msra.mxu0 0.0
    %792 = vmatprep.subr.mxu0 0.0
    %793 = vmatpush1.msra.mxu0 0.0
    %794 = vmatprep.subr.mxu0 0.0
    %795 = vmatpush1.msra.mxu0 0.0
    %796 = vmatprep.subr.mxu0 0.0
    %797 = vmatpush1.msra.mxu0 0.0
    %798 = vmatprep.subr.mxu0 0.0
    %799 = vmatpush1.msra.mxu0 0.0
    %800 = vmatprep.subr.mxu0 0.0
    %801 = vmatpush1.msra.mxu0 0.0
    %802 = vmatprep.subr.mxu0 0.0
    %803 = vmatpush1.msra.mxu0 0.0
    %804 = vmatprep.subr.mxu0 0.0
    %805 = vmatpush1.msra.mxu0 0.0
    %806 = vmatprep.subr.mxu0 0.0
    %807 = vmatpush1.msra.mxu0 0.0
    %808 = vmatprep.subr.mxu0 0.0
    %809 = vmatpush1.msra.mxu0 0.0
    %810 = vmatprep.subr.mxu0 0.0
    %811 = vmatpush1.msra.mxu0 0.0
    %812 = vmatprep.subr.mxu0 0.0
    %813 = vmatpush1.msra.mxu0 0.0
    %814 = vmatprep.subr.mxu0 0.0
    %815 = vmatpush1.msra.mxu0 0.0
    %816 = vmatprep.subr.mxu0 0.0
    %817 = vmatpush1.msra.mxu0 0.0
    %818 = vmatprep.subr.mxu0 0.0
    %819 = vmatpush1.msra.mxu0 0.0
    %820 = vmatprep.subr.mxu0 0.0
    %821 = vmatpush1.msra.mxu0 0.0
    %822 = vmatprep.mubr.f32.mxu0 0.0
    %823 = vmatmul.mubr.f32.gmra.mrb[0].mxu0 %v756
    %v824 = vpop.f32.mrb[0].mxu0
    %v825 = vadd.f32 0.0, %v824
    %v826 = vpop.f32.mrb[0].mxu0
    %827 = vdwg.mxu0
    %v828 = vmul.f32 %v597, %v520
    %v829 = vmul.f32 %v673, %v521
    %v830 = vmul.f32 %v749, %v522
    %v831 = vmul.f32 %v825, %v523
    %v832 = vld [vmem:[#allocation7] sm:$0xff]
    %833 = vrot.lane.b32.xlu0 %v157, 120
    %v834 = vpop.permute.xlu0 %833
    %835 = vrot.lane.b32.xlu0 %v157, 88
    %v836 = vpop.permute.xlu0 %835
    %v837 = vsel %vm178, %v834, 0
    %v839 = vsel %vm178, %v836, 0
    %841 = vmatprep.subr.mxu0 0.0
    %842 = vmatpush1.xpose.msra.mxu0 %v839
    %843 = vmatprep.subr.mxu0 0.0
    %844 = vmatpush1.xpose.msra.mxu0 0.0
    %845 = vmatprep.subr.mxu0 0.0
    %846 = vmatpush1.xpose.msra.mxu0 0.0
    %847 = vmatprep.subr.mxu0 0.0
    %848 = vmatpush1.xpose.msra.mxu0 0.0
    %849 = vmatprep.subr.mxu0 0.0
    %850 = vmatpush1.xpose.msra.mxu0 0.0
    %851 = vmatprep.subr.mxu0 0.0
    %852 = vmatpush1.xpose.msra.mxu0 0.0
    %853 = vmatprep.subr.mxu0 0.0
    %854 = vmatpush1.xpose.msra.mxu0 0.0
    %855 = vmatprep.subr.mxu0 0.0
    %856 = vmatpush1.xpose.msra.mxu0 0.0
    %857 = vmatprep.subr.mxu0 0.0
    %858 = vmatpush1.xpose.msra.mxu0 0.0
    %859 = vmatprep.subr.mxu0 0.0
    %860 = vmatpush1.xpose.msra.mxu0 0.0
    %861 = vmatprep.subr.mxu0 0.0
    %862 = vmatpush1.xpose.msra.mxu0 0.0
    %863 = vmatprep.subr.mxu0 0.0
    %864 = vmatpush1.xpose.msra.mxu0 0.0
    %865 = vmatprep.subr.mxu0 0.0
    %866 = vmatpush1.xpose.msra.mxu0 0.0
    %867 = vmatprep.subr.mxu0 0.0
    %868 = vmatpush1.xpose.msra.mxu0 0.0
    %869 = vmatprep.subr.mxu0 0.0
    %870 = vmatpush1.xpose.msra.mxu0 0.0
    %871 = vmatprep.subr.mxu0 0.0
    %872 = vmatpush1.xpose.msra.mxu0 0.0
    %873 = vmatprep.subr.mxu0 0.0
    %874 = vmatpush1.xpose.msra.mxu0 0.0
    %875 = vmatprep.subr.mxu0 0.0
    %876 = vmatpush1.xpose.msra.mxu0 0.0
    %877 = vmatprep.subr.mxu0 0.0
    %878 = vmatpush1.xpose.msra.mxu0 0.0
    %879 = vmatprep.subr.mxu0 0.0
    %880 = vmatpush1.xpose.msra.mxu0 0.0
    %881 = vmatprep.subr.mxu0 0.0
    %882 = vmatpush1.xpose.msra.mxu0 0.0
    %883 = vmatprep.subr.mxu0 0.0
    %884 = vmatpush1.xpose.msra.mxu0 0.0
    %885 = vmatprep.subr.mxu0 0.0
    %886 = vmatpush1.xpose.msra.mxu0 0.0
    %887 = vmatprep.subr.mxu0 0.0
    %888 = vmatpush1.xpose.msra.mxu0 0.0
    %889 = vmatprep.subr.mxu0 0.0
    %890 = vmatpush1.xpose.msra.mxu0 0.0
    %891 = vmatprep.subr.mxu0 0.0
    %892 = vmatpush1.xpose.msra.mxu0 0.0
    %893 = vmatprep.subr.mxu0 0.0
    %894 = vmatpush1.xpose.msra.mxu0 0.0
    %895 = vmatprep.subr.mxu0 0.0
    %896 = vmatpush1.xpose.msra.mxu0 0.0
    %897 = vmatprep.subr.mxu0 0.0
    %898 = vmatpush1.xpose.msra.mxu0 0.0
    %899 = vmatprep.subr.mxu0 0.0
    %900 = vmatpush1.xpose.msra.mxu0 0.0
    %901 = vmatprep.subr.mxu0 0.0
    %902 = vmatpush1.xpose.msra.mxu0 0.0
    %903 = vmatprep.subr.mxu0 0.0
    %904 = vmatpush1.xpose.msra.mxu0 0.0
    %905 = vmatprep.mubr.f32.mxu0 0.0
    %906 = vmatmul.mubr.f32.gmra.mrb[0].mxu0 %v837
    %v907 = vpop.f32.mrb[0].mxu0
    %v908 = vadd.f32 0.0, %v907
    %v909 = vpop.f32.mrb[0].mxu0
    %910 = vdwg.mxu0
    %911 = vrot.lane.b32.xlu0 %v162, 120
    %v912 = vpop.permute.xlu0 %911
    %913 = vrot.lane.b32.xlu0 %v162, 88
    %v914 = vpop.permute.xlu0 %913
    %v915 = vsel %vm178, %v912, 0
    %v917 = vsel %vm178, %v914, 0
    %919 = vmatprep.subr.mxu0 0.0
    %920 = vmatpush1.xpose.msra.mxu0 %v917
    %921 = vmatprep.subr.mxu0 0.0
    %922 = vmatpush1.xpose.msra.mxu0 0.0
    %923 = vmatprep.subr.mxu0 0.0
    %924 = vmatpush1.xpose.msra.mxu0 0.0
    %925 = vmatprep.subr.mxu0 0.0
    %926 = vmatpush1.xpose.msra.mxu0 0.0
    %927 = vmatprep.subr.mxu0 0.0
    %928 = vmatpush1.xpose.msra.mxu0 0.0
    %929 = vmatprep.subr.mxu0 0.0
    %930 = vmatpush1.xpose.msra.mxu0 0.0
    %931 = vmatprep.subr.mxu0 0.0
    %932 = vmatpush1.xpose.msra.mxu0 0.0
    %933 = vmatprep.subr.mxu0 0.0
    %934 = vmatpush1.xpose.msra.mxu0 0.0
    %935 = vmatprep.subr.mxu0 0.0
    %936 = vmatpush1.xpose.msra.mxu0 0.0
    %937 = vmatprep.subr.mxu0 0.0
    %938 = vmatpush1.xpose.msra.mxu0 0.0
    %939 = vmatprep.subr.mxu0 0.0
    %940 = vmatpush1.xpose.msra.mxu0 0.0
    %941 = vmatprep.subr.mxu0 0.0
    %942 = vmatpush1.xpose.msra.mxu0 0.0
    %943 = vmatprep.subr.mxu0 0.0
    %944 = vmatpush1.xpose.msra.mxu0 0.0
    %945 = vmatprep.subr.mxu0 0.0
    %946 = vmatpush1.xpose.msra.mxu0 0.0
    %947 = vmatprep.subr.mxu0 0.0
    %948 = vmatpush1.xpose.msra.mxu0 0.0
    %949 = vmatprep.subr.mxu0 0.0
    %950 = vmatpush1.xpose.msra.mxu0 0.0
    %951 = vmatprep.subr.mxu0 0.0
    %952 = vmatpush1.xpose.msra.mxu0 0.0
    %953 = vmatprep.subr.mxu0 0.0
    %954 = vmatpush1.xpose.msra.mxu0 0.0
    %955 = vmatprep.subr.mxu0 0.0
    %956 = vmatpush1.xpose.msra.mxu0 0.0
    %957 = vmatprep.subr.mxu0 0.0
    %958 = vmatpush1.xpose.msra.mxu0 0.0
    %959 = vmatprep.subr.mxu0 0.0
    %960 = vmatpush1.xpose.msra.mxu0 0.0
    %961 = vmatprep.subr.mxu0 0.0
    %962 = vmatpush1.xpose.msra.mxu0 0.0
    %963 = vmatprep.subr.mxu0 0.0
    %964 = vmatpush1.xpose.msra.mxu0 0.0
    %965 = vmatprep.subr.mxu0 0.0
    %966 = vmatpush1.xpose.msra.mxu0 0.0
    %967 = vmatprep.subr.mxu0 0.0
    %968 = vmatpush1.xpose.msra.mxu0 0.0
    %969 = vmatprep.subr.mxu0 0.0
    %970 = vmatpush1.xpose.msra.mxu0 0.0
    %971 = vmatprep.subr.mxu0 0.0
    %972 = vmatpush1.xpose.msra.mxu0 0.0
    %973 = vmatprep.subr.mxu0 0.0
    %974 = vmatpush1.xpose.msra.mxu0 0.0
    %975 = vmatprep.subr.mxu0 0.0
    %976 = vmatpush1.xpose.msra.mxu0 0.0
    %977 = vmatprep.subr.mxu0 0.0
    %978 = vmatpush1.xpose.msra.mxu0 0.0
    %979 = vmatprep.subr.mxu0 0.0
    %980 = vmatpush1.xpose.msra.mxu0 0.0
    %981 = vmatprep.subr.mxu0 0.0
    %982 = vmatpush1.xpose.msra.mxu0 0.0
    %983 = vmatprep.mubr.f32.mxu0 0.0
    %984 = vmatmul.mubr.f32.gmra.mrb[0].mxu0 %v915
    %v985 = vpop.f32.mrb[0].mxu0
    %v986 = vadd.f32 0.0, %v985
    %v987 = vpop.f32.mrb[0].mxu0
    %988 = vdwg.mxu0
    %989 = vrot.lane.b32.xlu0 %v167, 120
    %v990 = vpop.permute.xlu0 %989
    %991 = vrot.lane.b32.xlu0 %v167, 88
    %v992 = vpop.permute.xlu0 %991
    %v993 = vsel %vm178, %v990, 0
    %v995 = vsel %vm178, %v992, 0
    %997 = vmatprep.subr.mxu0 0.0
    %998 = vmatpush1.xpose.msra.mxu0 %v995
    %999 = vmatprep.subr.mxu0 0.0
    %1000 = vmatpush1.xpose.msra.mxu0 0.0
    %1001 = vmatprep.subr.mxu0 0.0
    %1002 = vmatpush1.xpose.msra.mxu0 0.0
    %1003 = vmatprep.subr.mxu0 0.0
    %1004 = vmatpush1.xpose.msra.mxu0 0.0
    %1005 = vmatprep.subr.mxu0 0.0
    %1006 = vmatpush1.xpose.msra.mxu0 0.0
    %1007 = vmatprep.subr.mxu0 0.0
    %1008 = vmatpush1.xpose.msra.mxu0 0.0
    %1009 = vmatprep.subr.mxu0 0.0
    %1010 = vmatpush1.xpose.msra.mxu0 0.0
    %1011 = vmatprep.subr.mxu0 0.0
    %1012 = vmatpush1.xpose.msra.mxu0 0.0
    %1013 = vmatprep.subr.mxu0 0.0
    %1014 = vmatpush1.xpose.msra.mxu0 0.0
    %1015 = vmatprep.subr.mxu0 0.0
    %1016 = vmatpush1.xpose.msra.mxu0 0.0
    %1017 = vmatprep.subr.mxu0 0.0
    %1018 = vmatpush1.xpose.msra.mxu0 0.0
    %1019 = vmatprep.subr.mxu0 0.0
    %1020 = vmatpush1.xpose.msra.mxu0 0.0
    %1021 = vmatprep.subr.mxu0 0.0
    %1022 = vmatpush1.xpose.msra.mxu0 0.0
    %1023 = vmatprep.subr.mxu0 0.0
    %1024 = vmatpush1.xpose.msra.mxu0 0.0
    %1025 = vmatprep.subr.mxu0 0.0
    %1026 = vmatpush1.xpose.msra.mxu0 0.0
    %1027 = vmatprep.subr.mxu0 0.0
    %1028 = vmatpush1.xpose.msra.mxu0 0.0
    %1029 = vmatprep.subr.mxu0 0.0
    %1030 = vmatpush1.xpose.msra.mxu0 0.0
    %1031 = vmatprep.subr.mxu0 0.0
    %1032 = vmatpush1.xpose.msra.mxu0 0.0
    %1033 = vmatprep.subr.mxu0 0.0
    %1034 = vmatpush1.xpose.msra.mxu0 0.0
    %1035 = vmatprep.subr.mxu0 0.0
    %1036 = vmatpush1.xpose.msra.mxu0 0.0
    %1037 = vmatprep.subr.mxu0 0.0
    %1038 = vmatpush1.xpose.msra.mxu0 0.0
    %1039 = vmatprep.subr.mxu0 0.0
    %1040 = vmatpush1.xpose.msra.mxu0 0.0
    %1041 = vmatprep.subr.mxu0 0.0
    %1042 = vmatpush1.xpose.msra.mxu0 0.0
    %1043 = vmatprep.subr.mxu0 0.0
    %1044 = vmatpush1.xpose.msra.mxu0 0.0
    %1045 = vmatprep.subr.mxu0 0.0
    %1046 = vmatpush1.xpose.msra.mxu0 0.0
    %1047 = vmatprep.subr.mxu0 0.0
    %1048 = vmatpush1.xpose.msra.mxu0 0.0
    %1049 = vmatprep.subr.mxu0 0.0
    %1050 = vmatpush1.xpose.msra.mxu0 0.0
    %1051 = vmatprep.subr.mxu0 0.0
    %1052 = vmatpush1.xpose.msra.mxu0 0.0
    %1053 = vmatprep.subr.mxu0 0.0
    %1054 = vmatpush1.xpose.msra.mxu0 0.0
    %1055 = vmatprep.subr.mxu0 0.0
    %1056 = vmatpush1.xpose.msra.mxu0 0.0
    %1057 = vmatprep.subr.mxu0 0.0
    %1058 = vmatpush1.xpose.msra.mxu0 0.0
    %1059 = vmatprep.subr.mxu0 0.0
    %1060 = vmatpush1.xpose.msra.mxu0 0.0
    %1061 = vmatprep.mubr.f32.mxu0 0.0
    %1062 = vmatmul.mubr.f32.gmra.mrb[0].mxu0 %v993
    %v1063 = vpop.f32.mrb[0].mxu0
    %v1064 = vadd.f32 0.0, %v1063
    %v1065 = vpop.f32.mrb[0].mxu0
    %1066 = vdwg.mxu0
    %1067 = vrot.lane.b32.xlu0 %v172, 120
    %v1068 = vpop.permute.xlu0 %1067
    %1069 = vrot.lane.b32.xlu0 %v172, 88
    %v1070 = vpop.permute.xlu0 %1069
    %v1071 = vsel %vm178, %v1068, 0
    %v1073 = vsel %vm178, %v1070, 0
    %1075 = vmatprep.subr.mxu0 0.0
    %1076 = vmatpush1.xpose.msra.mxu0 %v1073
    %1077 = vmatprep.subr.mxu0 0.0
    %1078 = vmatpush1.xpose.msra.mxu0 0.0
    %1079 = vmatprep.subr.mxu0 0.0
    %1080 = vmatpush1.xpose.msra.mxu0 0.0
    %1081 = vmatprep.subr.mxu0 0.0
    %1082 = vmatpush1.xpose.msra.mxu0 0.0
    %1083 = vmatprep.subr.mxu0 0.0
    %1084 = vmatpush1.xpose.msra.mxu0 0.0
    %1085 = vmatprep.subr.mxu0 0.0
    %1086 = vmatpush1.xpose.msra.mxu0 0.0
    %1087 = vmatprep.subr.mxu0 0.0
    %1088 = vmatpush1.xpose.msra.mxu0 0.0
    %1089 = vmatprep.subr.mxu0 0.0
    %1090 = vmatpush1.xpose.msra.mxu0 0.0
    %1091 = vmatprep.subr.mxu0 0.0
    %1092 = vmatpush1.xpose.msra.mxu0 0.0
    %1093 = vmatprep.subr.mxu0 0.0
    %1094 = vmatpush1.xpose.msra.mxu0 0.0
    %1095 = vmatprep.subr.mxu0 0.0
    %1096 = vmatpush1.xpose.msra.mxu0 0.0
    %1097 = vmatprep.subr.mxu0 0.0
    %1098 = vmatpush1.xpose.msra.mxu0 0.0
    %1099 = vmatprep.subr.mxu0 0.0
    %1100 = vmatpush1.xpose.msra.mxu0 0.0
    %1101 = vmatprep.subr.mxu0 0.0
    %1102 = vmatpush1.xpose.msra.mxu0 0.0
    %1103 = vmatprep.subr.mxu0 0.0
    %1104 = vmatpush1.xpose.msra.mxu0 0.0
    %1105 = vmatprep.subr.mxu0 0.0
    %1106 = vmatpush1.xpose.msra.mxu0 0.0
    %1107 = vmatprep.subr.mxu0 0.0
    %1108 = vmatpush1.xpose.msra.mxu0 0.0
    %1109 = vmatprep.subr.mxu0 0.0
    %1110 = vmatpush1.xpose.msra.mxu0 0.0
    %1111 = vmatprep.subr.mxu0 0.0
    %1112 = vmatpush1.xpose.msra.mxu0 0.0
    %1113 = vmatprep.subr.mxu0 0.0
    %1114 = vmatpush1.xpose.msra.mxu0 0.0
    %1115 = vmatprep.subr.mxu0 0.0
    %1116 = vmatpush1.xpose.msra.mxu0 0.0
    %1117 = vmatprep.subr.mxu0 0.0
    %1118 = vmatpush1.xpose.msra.mxu0 0.0
    %1119 = vmatprep.subr.mxu0 0.0
    %1120 = vmatpush1.xpose.msra.mxu0 0.0
    %1121 = vmatprep.subr.mxu0 0.0
    %1122 = vmatpush1.xpose.msra.mxu0 0.0
    %1123 = vmatprep.subr.mxu0 0.0
    %1124 = vmatpush1.xpose.msra.mxu0 0.0
    %1125 = vmatprep.subr.mxu0 0.0
    %1126 = vmatpush1.xpose.msra.mxu0 0.0
    %1127 = vmatprep.subr.mxu0 0.0
    %1128 = vmatpush1.xpose.msra.mxu0 0.0
    %1129 = vmatprep.subr.mxu0 0.0
    %1130 = vmatpush1.xpose.msra.mxu0 0.0
    %1131 = vmatprep.subr.mxu0 0.0
    %1132 = vmatpush1.xpose.msra.mxu0 0.0
    %1133 = vmatprep.subr.mxu0 0.0
    %1134 = vmatpush1.xpose.msra.mxu0 0.0
    %1135 = vmatprep.subr.mxu0 0.0
    %1136 = vmatpush1.xpose.msra.mxu0 0.0
    %1137 = vmatprep.subr.mxu0 0.0
    %1138 = vmatpush1.xpose.msra.mxu0 0.0
    %1139 = vmatprep.mubr.f32.mxu0 0.0
    %1140 = vmatmul.mubr.f32.gmra.mrb[0].mxu0 %v1071
    %v1141 = vpop.f32.mrb[0].mxu0
    %v1142 = vadd.f32 0.0, %v1141
    %v1143 = vpop.f32.mrb[0].mxu0
    %1144 = vdwg.mxu0
    %v1145 = vsel %vm178, %v908, -inf
    %1146 = vmax.xlane.f32.xlu0 %v1145
    %v1147 = vpop.xlane.xlu0 %1146
    %v1148 = vsel %vm178, %v986, -inf
    %1149 = vmax.xlane.f32.xlu0 %v1148
    %v1150 = vpop.xlane.xlu0 %1149
    %v1151 = vsel %vm178, %v1064, -inf
    %1152 = vmax.xlane.f32.xlu0 %v1151
    %v1153 = vpop.xlane.xlu0 %1152
    %v1154 = vsel %vm178, %v1142, -inf
    %1155 = vmax.xlane.f32.xlu0 %v1154
    %v1156 = vpop.xlane.xlu0 %1155
    %v1157 = vsub.f32 %v908, %v1147
    %v1158 = vsub.f32 %v986, %v1150
    %v1159 = vsub.f32 %v1064, %v1153
    %v1160 = vsub.f32 %v1142, %v1156
    %v1161 = vmul.f32 %v1157, 1.442695
    %v1162 = vpow.pop %v1161
    %v1163 = vmul.f32 %v1158, 1.442695
    %v1164 = vpow.pop %v1163
    %v1165 = vmul.f32 %v1159, 1.442695
    %v1166 = vpow.pop %v1165
    %v1167 = vmul.f32 %v1160, 1.442695
    %v1168 = vpow.pop %v1167
    %v1169 = vsel %vm178, %v1162, 0.0
    %1170 = vadd.xlane.f32.xlu0 %v1169
    %v1171 = vpop.xlane.xlu0 %1170
    %v1172 = vsel %vm178, %v1164, 0.0
    %1173 = vadd.xlane.f32.xlu0 %v1172
    %v1174 = vpop.xlane.xlu0 %1173
    %v1175 = vsel %vm178, %v1166, 0.0
    %1176 = vadd.xlane.f32.xlu0 %v1175
    %v1177 = vpop.xlane.xlu0 %1176
    %v1178 = vsel %vm178, %v1168, 0.0
    %1179 = vadd.xlane.f32.xlu0 %v1178
    %v1180 = vpop.xlane.xlu0 %1179
    %v1181 = vrcp.pop %v1171
    %v1182 = vrcp.pop %v1174
    %v1183 = vrcp.pop %v1177
    %v1184 = vrcp.pop %v1180
    %1185 = vrot.lane.b32.xlu0 %v157, 56
    %v1186 = vpop.permute.xlu0 %1185
    %v1189 = vsel %vm178, %v1162, 0
    %1191 = vmatprep.subr.mxu0 0.0
    %1192 = vmatpush1.msra.mxu0 %v1186
    %1193 = vmatprep.subr.mxu0 0.0
    %1194 = vmatpush1.msra.mxu0 0.0
    %1195 = vmatprep.subr.mxu0 0.0
    %1196 = vmatpush1.msra.mxu0 0.0
    %1197 = vmatprep.subr.mxu0 0.0
    %1198 = vmatpush1.msra.mxu0 0.0
    %1199 = vmatprep.subr.mxu0 0.0
    %1200 = vmatpush1.msra.mxu0 0.0
    %1201 = vmatprep.subr.mxu0 0.0
    %1202 = vmatpush1.msra.mxu0 0.0
    %1203 = vmatprep.subr.mxu0 0.0
    %1204 = vmatpush1.msra.mxu0 0.0
    %1205 = vmatprep.subr.mxu0 0.0
    %1206 = vmatpush1.msra.mxu0 0.0
    %1207 = vmatprep.subr.mxu0 0.0
    %1208 = vmatpush1.msra.mxu0 0.0
    %1209 = vmatprep.subr.mxu0 0.0
    %1210 = vmatpush1.msra.mxu0 0.0
    %1211 = vmatprep.subr.mxu0 0.0
    %1212 = vmatpush1.msra.mxu0 0.0
    %1213 = vmatprep.subr.mxu0 0.0
    %1214 = vmatpush1.msra.mxu0 0.0
    %1215 = vmatprep.subr.mxu0 0.0
    %1216 = vmatpush1.msra.mxu0 0.0
    %1217 = vmatprep.subr.mxu0 0.0
    %1218 = vmatpush1.msra.mxu0 0.0
    %1219 = vmatprep.subr.mxu0 0.0
    %1220 = vmatpush1.msra.mxu0 0.0
    %1221 = vmatprep.subr.mxu0 0.0
    %1222 = vmatpush1.msra.mxu0 0.0
    %1223 = vmatprep.subr.mxu0 0.0
    %1224 = vmatpush1.msra.mxu0 0.0
    %1225 = vmatprep.subr.mxu0 0.0
    %1226 = vmatpush1.msra.mxu0 0.0
    %1227 = vmatprep.subr.mxu0 0.0
    %1228 = vmatpush1.msra.mxu0 0.0
    %1229 = vmatprep.subr.mxu0 0.0
    %1230 = vmatpush1.msra.mxu0 0.0
    %1231 = vmatprep.subr.mxu0 0.0
    %1232 = vmatpush1.msra.mxu0 0.0
    %1233 = vmatprep.subr.mxu0 0.0
    %1234 = vmatpush1.msra.mxu0 0.0
    %1235 = vmatprep.subr.mxu0 0.0
    %1236 = vmatpush1.msra.mxu0 0.0
    %1237 = vmatprep.subr.mxu0 0.0
    %1238 = vmatpush1.msra.mxu0 0.0
    %1239 = vmatprep.subr.mxu0 0.0
    %1240 = vmatpush1.msra.mxu0 0.0
    %1241 = vmatprep.subr.mxu0 0.0
    %1242 = vmatpush1.msra.mxu0 0.0
    %1243 = vmatprep.subr.mxu0 0.0
    %1244 = vmatpush1.msra.mxu0 0.0
    %1245 = vmatprep.subr.mxu0 0.0
    %1246 = vmatpush1.msra.mxu0 0.0
    %1247 = vmatprep.subr.mxu0 0.0
    %1248 = vmatpush1.msra.mxu0 0.0
    %1249 = vmatprep.subr.mxu0 0.0
    %1250 = vmatpush1.msra.mxu0 0.0
    %1251 = vmatprep.subr.mxu0 0.0
    %1252 = vmatpush1.msra.mxu0 0.0
    %1253 = vmatprep.subr.mxu0 0.0
    %1254 = vmatpush1.msra.mxu0 0.0
    %1255 = vmatprep.mubr.f32.mxu0 0.0
    %1256 = vmatmul.mubr.f32.gmra.mrb[0].mxu0 %v1189
    %v1257 = vpop.f32.mrb[0].mxu0
    %v1258 = vadd.f32 0.0, %v1257
    %v1259 = vpop.f32.mrb[0].mxu0
    %1260 = vdwg.mxu0
    %1261 = vrot.lane.b32.xlu0 %v162, 56
    %v1262 = vpop.permute.xlu0 %1261
    %v1265 = vsel %vm178, %v1164, 0
    %1267 = vmatprep.subr.mxu0 0.0
    %1268 = vmatpush1.msra.mxu0 %v1262
    %1269 = vmatprep.subr.mxu0 0.0
    %1270 = vmatpush1.msra.mxu0 0.0
    %1271 = vmatprep.subr.mxu0 0.0
    %1272 = vmatpush1.msra.mxu0 0.0
    %1273 = vmatprep.subr.mxu0 0.0
    %1274 = vmatpush1.msra.mxu0 0.0
    %1275 = vmatprep.subr.mxu0 0.0
    %1276 = vmatpush1.msra.mxu0 0.0
    %1277 = vmatprep.subr.mxu0 0.0
    %1278 = vmatpush1.msra.mxu0 0.0
    %1279 = vmatprep.subr.mxu0 0.0
    %1280 = vmatpush1.msra.mxu0 0.0
    %1281 = vmatprep.subr.mxu0 0.0
    %1282 = vmatpush1.msra.mxu0 0.0
    %1283 = vmatprep.subr.mxu0 0.0
    %1284 = vmatpush1.msra.mxu0 0.0
    %1285 = vmatprep.subr.mxu0 0.0
    %1286 = vmatpush1.msra.mxu0 0.0
    %1287 = vmatprep.subr.mxu0 0.0
    %1288 = vmatpush1.msra.mxu0 0.0
    %1289 = vmatprep.subr.mxu0 0.0
    %1290 = vmatpush1.msra.mxu0 0.0
    %1291 = vmatprep.subr.mxu0 0.0
    %1292 = vmatpush1.msra.mxu0 0.0
    %1293 = vmatprep.subr.mxu0 0.0
    %1294 = vmatpush1.msra.mxu0 0.0
    %1295 = vmatprep.subr.mxu0 0.0
    %1296 = vmatpush1.msra.mxu0 0.0
    %1297 = vmatprep.subr.mxu0 0.0
    %1298 = vmatpush1.msra.mxu0 0.0
    %1299 = vmatprep.subr.mxu0 0.0
    %1300 = vmatpush1.msra.mxu0 0.0
    %1301 = vmatprep.subr.mxu0 0.0
    %1302 = vmatpush1.msra.mxu0 0.0
    %1303 = vmatprep.subr.mxu0 0.0
    %1304 = vmatpush1.msra.mxu0 0.0
    %1305 = vmatprep.subr.mxu0 0.0
    %1306 = vmatpush1.msra.mxu0 0.0
    %1307 = vmatprep.subr.mxu0 0.0
    %1308 = vmatpush1.msra.mxu0 0.0
    %1309 = vmatprep.subr.mxu0 0.0
    %1310 = vmatpush1.msra.mxu0 0.0
    %1311 = vmatprep.subr.mxu0 0.0
    %1312 = vmatpush1.msra.mxu0 0.0
    %1313 = vmatprep.subr.mxu0 0.0
    %1314 = vmatpush1.msra.mxu0 0.0
    %1315 = vmatprep.subr.mxu0 0.0
    %1316 = vmatpush1.msra.mxu0 0.0
    %1317 = vmatprep.subr.mxu0 0.0
    %1318 = vmatpush1.msra.mxu0 0.0
    %1319 = vmatprep.subr.mxu0 0.0
    %1320 = vmatpush1.msra.mxu0 0.0
    %1321 = vmatprep.subr.mxu0 0.0
    %1322 = vmatpush1.msra.mxu0 0.0
    %1323 = vmatprep.subr.mxu0 0.0
    %1324 = vmatpush1.msra.mxu0 0.0
    %1325 = vmatprep.subr.mxu0 0.0
    %1326 = vmatpush1.msra.mxu0 0.0
    %1327 = vmatprep.subr.mxu0 0.0
    %1328 = vmatpush1.msra.mxu0 0.0
    %1329 = vmatprep.subr.mxu0 0.0
    %1330 = vmatpush1.msra.mxu0 0.0
    %1331 = vmatprep.mubr.f32.mxu0 0.0
    %1332 = vmatmul.mubr.f32.gmra.mrb[0].mxu0 %v1265
    %v1333 = vpop.f32.mrb[0].mxu0
    %v1334 = vadd.f32 0.0, %v1333
    %v1335 = vpop.f32.mrb[0].mxu0
    %1336 = vdwg.mxu0
    %1337 = vrot.lane.b32.xlu0 %v167, 56
    %v1338 = vpop.permute.xlu0 %1337
    %v1341 = vsel %vm178, %v1166, 0
    %1343 = vmatprep.subr.mxu0 0.0
    %1344 = vmatpush1.msra.mxu0 %v1338
    %1345 = vmatprep.subr.mxu0 0.0
    %1346 = vmatpush1.msra.mxu0 0.0
    %1347 = vmatprep.subr.mxu0 0.0
    %1348 = vmatpush1.msra.mxu0 0.0
    %1349 = vmatprep.subr.mxu0 0.0
    %1350 = vmatpush1.msra.mxu0 0.0
    %1351 = vmatprep.subr.mxu0 0.0
    %1352 = vmatpush1.msra.mxu0 0.0
    %1353 = vmatprep.subr.mxu0 0.0
    %1354 = vmatpush1.msra.mxu0 0.0
    %1355 = vmatprep.subr.mxu0 0.0
    %1356 = vmatpush1.msra.mxu0 0.0
    %1357 = vmatprep.subr.mxu0 0.0
    %1358 = vmatpush1.msra.mxu0 0.0
    %1359 = vmatprep.subr.mxu0 0.0
    %1360 = vmatpush1.msra.mxu0 0.0
    %1361 = vmatprep.subr.mxu0 0.0
    %1362 = vmatpush1.msra.mxu0 0.0
    %1363 = vmatprep.subr.mxu0 0.0
    %1364 = vmatpush1.msra.mxu0 0.0
    %1365 = vmatprep.subr.mxu0 0.0
    %1366 = vmatpush1.msra.mxu0 0.0
    %1367 = vmatprep.subr.mxu0 0.0
    %1368 = vmatpush1.msra.mxu0 0.0
    %1369 = vmatprep.subr.mxu0 0.0
    %1370 = vmatpush1.msra.mxu0 0.0
    %1371 = vmatprep.subr.mxu0 0.0
    %1372 = vmatpush1.msra.mxu0 0.0
    %1373 = vmatprep.subr.mxu0 0.0
    %1374 = vmatpush1.msra.mxu0 0.0
    %1375 = vmatprep.subr.mxu0 0.0
    %1376 = vmatpush1.msra.mxu0 0.0
    %1377 = vmatprep.subr.mxu0 0.0
    %1378 = vmatpush1.msra.mxu0 0.0
    %1379 = vmatprep.subr.mxu0 0.0
    %1380 = vmatpush1.msra.mxu0 0.0
    %1381 = vmatprep.subr.mxu0 0.0
    %1382 = vmatpush1.msra.mxu0 0.0
    %1383 = vmatprep.subr.mxu0 0.0
    %1384 = vmatpush1.msra.mxu0 0.0
    %1385 = vmatprep.subr.mxu0 0.0
    %1386 = vmatpush1.msra.mxu0 0.0
    %1387 = vmatprep.subr.mxu0 0.0
    %1388 = vmatpush1.msra.mxu0 0.0
    %1389 = vmatprep.subr.mxu0 0.0
    %1390 = vmatpush1.msra.mxu0 0.0
    %1391 = vmatprep.subr.mxu0 0.0
    %1392 = vmatpush1.msra.mxu0 0.0
    %1393 = vmatprep.subr.mxu0 0.0
    %1394 = vmatpush1.msra.mxu0 0.0
    %1395 = vmatprep.subr.mxu0 0.0
    %1396 = vmatpush1.msra.mxu0 0.0
    %1397 = vmatprep.subr.mxu0 0.0
    %1398 = vmatpush1.msra.mxu0 0.0
    %1399 = vmatprep.subr.mxu0 0.0
    %1400 = vmatpush1.msra.mxu0 0.0
    %1401 = vmatprep.subr.mxu0 0.0
    %1402 = vmatpush1.msra.mxu0 0.0
    %1403 = vmatprep.subr.mxu0 0.0
    %1404 = vmatpush1.msra.mxu0 0.0
    %1405 = vmatprep.subr.mxu0 0.0
    %1406 = vmatpush1.msra.mxu0 0.0
    %1407 = vmatprep.mubr.f32.mxu0 0.0
    %1408 = vmatmul.mubr.f32.gmra.mrb[0].mxu0 %v1341
    %v1409 = vpop.f32.mrb[0].mxu0
    %v1410 = vadd.f32 0.0, %v1409
    %v1411 = vpop.f32.mrb[0].mxu0
    %1412 = vdwg.mxu0
    %1413 = vrot.lane.b32.xlu0 %v172, 56
    %v1414 = vpop.permute.xlu0 %1413
    %v1417 = vsel %vm178, %v1168, 0
    %1419 = vmatprep.subr.mxu0 0.0
    %1420 = vmatpush1.msra.mxu0 %v1414
    %1421 = vmatprep.subr.mxu0 0.0
    %1422 = vmatpush1.msra.mxu0 0.0
    %1423 = vmatprep.subr.mxu0 0.0
    %1424 = vmatpush1.msra.mxu0 0.0
    %1425 = vmatprep.subr.mxu0 0.0
    %1426 = vmatpush1.msra.mxu0 0.0
    %1427 = vmatprep.subr.mxu0 0.0
    %1428 = vmatpush1.msra.mxu0 0.0
    %1429 = vmatprep.subr.mxu0 0.0
    %1430 = vmatpush1.msra.mxu0 0.0
    %1431 = vmatprep.subr.mxu0 0.0
    %1432 = vmatpush1.msra.mxu0 0.0
    %1433 = vmatprep.subr.mxu0 0.0
    %1434 = vmatpush1.msra.mxu0 0.0
    %1435 = vmatprep.subr.mxu0 0.0
    %1436 = vmatpush1.msra.mxu0 0.0
    %1437 = vmatprep.subr.mxu0 0.0
    %1438 = vmatpush1.msra.mxu0 0.0
    %1439 = vmatprep.subr.mxu0 0.0
    %1440 = vmatpush1.msra.mxu0 0.0
    %1441 = vmatprep.subr.mxu0 0.0
    %1442 = vmatpush1.msra.mxu0 0.0
    %1443 = vmatprep.subr.mxu0 0.0
    %1444 = vmatpush1.msra.mxu0 0.0
    %1445 = vmatprep.subr.mxu0 0.0
    %1446 = vmatpush1.msra.mxu0 0.0
    %1447 = vmatprep.subr.mxu0 0.0
    %1448 = vmatpush1.msra.mxu0 0.0
    %1449 = vmatprep.subr.mxu0 0.0
    %1450 = vmatpush1.msra.mxu0 0.0
    %1451 = vmatprep.subr.mxu0 0.0
    %1452 = vmatpush1.msra.mxu0 0.0
    %1453 = vmatprep.subr.mxu0 0.0
    %1454 = vmatpush1.msra.mxu0 0.0
    %1455 = vmatprep.subr.mxu0 0.0
    %1456 = vmatpush1.msra.mxu0 0.0
    %1457 = vmatprep.subr.mxu0 0.0
    %1458 = vmatpush1.msra.mxu0 0.0
    %1459 = vmatprep.subr.mxu0 0.0
    %1460 = vmatpush1.msra.mxu0 0.0
    %1461 = vmatprep.subr.mxu0 0.0
    %1462 = vmatpush1.msra.mxu0 0.0
    %1463 = vmatprep.subr.mxu0 0.0
    %1464 = vmatpush1.msra.mxu0 0.0
    %1465 = vmatprep.subr.mxu0 0.0
    %1466 = vmatpush1.msra.mxu0 0.0
    %1467 = vmatprep.subr.mxu0 0.0
    %1468 = vmatpush1.msra.mxu0 0.0
    %1469 = vmatprep.subr.mxu0 0.0
    %1470 = vmatpush1.msra.mxu0 0.0
    %1471 = vmatprep.subr.mxu0 0.0
    %1472 = vmatpush1.msra.mxu0 0.0
    %1473 = vmatprep.subr.mxu0 0.0
    %1474 = vmatpush1.msra.mxu0 0.0
    %1475 = vmatprep.subr.mxu0 0.0
    %1476 = vmatpush1.msra.mxu0 0.0
    %1477 = vmatprep.subr.mxu0 0.0
    %1478 = vmatpush1.msra.mxu0 0.0
    %1479 = vmatprep.subr.mxu0 0.0
    %1480 = vmatpush1.msra.mxu0 0.0
    %1481 = vmatprep.subr.mxu0 0.0
    %1482 = vmatpush1.msra.mxu0 0.0
    %1483 = vmatprep.mubr.f32.mxu0 0.0
    %1484 = vmatmul.mubr.f32.gmra.mrb[0].mxu0 %v1417
    %v1485 = vpop.f32.mrb[0].mxu0
    %v1486 = vadd.f32 0.0, %v1485
    %v1487 = vpop.f32.mrb[0].mxu0
    %1488 = vdwg.mxu0
    %v1489 = vmul.f32 %v1258, %v1181
    %v1490 = vmul.f32 %v1334, %v1182
    %v1491 = vmul.f32 %v1410, %v1183
    %v1492 = vmul.f32 %v1486, %v1184
    %v1493 = vld [vmem:[#allocation7 + $0x8] sm:$0xff]
    %v1495 = vsel %vm178, %v1489, 0
    %v1498 = vsel %vm178, %v1490, 0
    %v1501 = vsel %vm178, %v1491, 0
    %v1504 = vsel %vm178, %v1492, 0
    %1506 = vmatprep.subr.mxu0 0.0
    %1507 = vmatpush1.msra.mxu0 %v1493
    %1508 = vmatprep.subr.mxu0 0.0
    %1509 = vmatpush1.msra.mxu0 0.0
    %1510 = vmatprep.subr.mxu0 0.0
    %1511 = vmatpush1.msra.mxu0 0.0
    %1512 = vmatprep.subr.mxu0 0.0
    %1513 = vmatpush1.msra.mxu0 0.0
    %1514 = vmatprep.subr.mxu0 0.0
    %1515 = vmatpush1.msra.mxu0 0.0
    %1516 = vmatprep.subr.mxu0 0.0
    %1517 = vmatpush1.msra.mxu0 0.0
    %1518 = vmatprep.subr.mxu0 0.0
    %1519 = vmatpush1.msra.mxu0 0.0
    %1520 = vmatprep.subr.mxu0 0.0
    %1521 = vmatpush1.msra.mxu0 0.0
    %1522 = vmatprep.subr.mxu0 0.0
    %1523 = vmatpush1.msra.mxu0 0.0
    %1524 = vmatprep.subr.mxu0 0.0
    %1525 = vmatpush1.msra.mxu0 0.0
    %1526 = vmatprep.subr.mxu0 0.0
    %1527 = vmatpush1.msra.mxu0 0.0
    %1528 = vmatprep.subr.mxu0 0.0
    %1529 = vmatpush1.msra.mxu0 0.0
    %1530 = vmatprep.subr.mxu0 0.0
    %1531 = vmatpush1.msra.mxu0 0.0
    %1532 = vmatprep.subr.mxu0 0.0
    %1533 = vmatpush1.msra.mxu0 0.0
    %1534 = vmatprep.subr.mxu0 0.0
    %1535 = vmatpush1.msra.mxu0 0.0
    %1536 = vmatprep.subr.mxu0 0.0
    %1537 = vmatpush1.msra.mxu0 0.0
    %1538 = vmatprep.subr.mxu0 0.0
    %1539 = vmatpush1.msra.mxu0 0.0
    %1540 = vmatprep.subr.mxu0 0.0
    %1541 = vmatpush1.msra.mxu0 0.0
    %1542 = vmatprep.subr.mxu0 0.0
    %1543 = vmatpush1.msra.mxu0 0.0
    %1544 = vmatprep.subr.mxu0 0.0
    %1545 = vmatpush1.msra.mxu0 0.0
    %1546 = vmatprep.subr.mxu0 0.0
    %1547 = vmatpush1.msra.mxu0 0.0
    %1548 = vmatprep.subr.mxu0 0.0
    %1549 = vmatpush1.msra.mxu0 0.0
    %1550 = vmatprep.subr.mxu0 0.0
    %1551 = vmatpush1.msra.mxu0 0.0
    %1552 = vmatprep.subr.mxu0 0.0
    %1553 = vmatpush1.msra.mxu0 0.0
    %1554 = vmatprep.subr.mxu0 0.0
    %1555 = vmatpush1.msra.mxu0 0.0
    %1556 = vmatprep.subr.mxu0 0.0
    %1557 = vmatpush1.msra.mxu0 0.0
    %1558 = vmatprep.subr.mxu0 0.0
    %1559 = vmatpush1.msra.mxu0 0.0
    %1560 = vmatprep.subr.mxu0 0.0
    %1561 = vmatpush1.msra.mxu0 0.0
    %1562 = vmatprep.subr.mxu0 0.0
    %1563 = vmatpush1.msra.mxu0 0.0
    %1564 = vmatprep.subr.mxu0 0.0
    %1565 = vmatpush1.msra.mxu0 0.0
    %1566 = vmatprep.subr.mxu0 0.0
    %1567 = vmatpush1.msra.mxu0 0.0
    %1568 = vmatprep.subr.mxu0 0.0
    %1569 = vmatpush1.msra.mxu0 0.0
    %1570 = vmatprep.mubr.f32.mxu0 0.0
    %1571 = vmatmul.mubr.f32.gmra.mrb[0].mxu0 %v1495
    %v1572 = vpop.f32.mrb[0].mxu0
    %v1573 = vadd.f32 0.0, %v1572
    %v1574 = vpop.f32.mrb[0].mxu0
    %1575 = vmatprep.mubr.f32.mxu0 0.0
    %1576 = vmatmul.mubr.f32.gmra.mrb[0].mxu0 %v1498
    %v1577 = vpop.f32.mrb[0].mxu0
    %v1578 = vadd.f32 0.0, %v1577
    %v1579 = vpop.f32.mrb[0].mxu0
    %1580 = vmatprep.mubr.f32.mxu0 0.0
    %1581 = vmatmul.mubr.f32.gmra.mrb[0].mxu0 %v1501
    %v1582 = vpop.f32.mrb[0].mxu0
    %v1583 = vadd.f32 0.0, %v1582
    %v1584 = vpop.f32.mrb[0].mxu0
    %1585 = vmatprep.mubr.f32.mxu0 0.0
    %1586 = vmatmul.mubr.f32.gmra.mrb[0].mxu0 %v1504
    %v1587 = vpop.f32.mrb[0].mxu0
    %v1588 = vadd.f32 0.0, %v1587
    %v1589 = vpop.f32.mrb[0].mxu0
    %1590 = vdwg.mxu0
    %v1592 = vsel %vm178, %v828, 0
    %v1595 = vsel %vm178, %v829, 0
    %v1598 = vsel %vm178, %v830, 0
    %v1601 = vsel %vm178, %v831, 0
    %1603 = vmatprep.subr.mxu0 0.0
    %1604 = vmatpush1.msra.mxu0 %v832
    %1605 = vmatprep.subr.mxu0 0.0
    %1606 = vmatpush1.msra.mxu0 0.0
    %1607 = vmatprep.subr.mxu0 0.0
    %1608 = vmatpush1.msra.mxu0 0.0
    %1609 = vmatprep.subr.mxu0 0.0
    %1610 = vmatpush1.msra.mxu0 0.0
    %1611 = vmatprep.subr.mxu0 0.0
    %1612 = vmatpush1.msra.mxu0 0.0
    %1613 = vmatprep.subr.mxu0 0.0
    %1614 = vmatpush1.msra.mxu0 0.0
    %1615 = vmatprep.subr.mxu0 0.0
    %1616 = vmatpush1.msra.mxu0 0.0
    %1617 = vmatprep.subr.mxu0 0.0
    %1618 = vmatpush1.msra.mxu0 0.0
    %1619 = vmatprep.subr.mxu0 0.0
    %1620 = vmatpush1.msra.mxu0 0.0
    %1621 = vmatprep.subr.mxu0 0.0
    %1622 = vmatpush1.msra.mxu0 0.0
    %1623 = vmatprep.subr.mxu0 0.0
    %1624 = vmatpush1.msra.mxu0 0.0
    %1625 = vmatprep.subr.mxu0 0.0
    %1626 = vmatpush1.msra.mxu0 0.0
    %1627 = vmatprep.subr.mxu0 0.0
    %1628 = vmatpush1.msra.mxu0 0.0
    %1629 = vmatprep.subr.mxu0 0.0
    %1630 = vmatpush1.msra.mxu0 0.0
    %1631 = vmatprep.subr.mxu0 0.0
    %1632 = vmatpush1.msra.mxu0 0.0
    %1633 = vmatprep.subr.mxu0 0.0
    %1634 = vmatpush1.msra.mxu0 0.0
    %1635 = vmatprep.subr.mxu0 0.0
    %1636 = vmatpush1.msra.mxu0 0.0
    %1637 = vmatprep.subr.mxu0 0.0
    %1638 = vmatpush1.msra.mxu0 0.0
    %1639 = vmatprep.subr.mxu0 0.0
    %1640 = vmatpush1.msra.mxu0 0.0
    %1641 = vmatprep.subr.mxu0 0.0
    %1642 = vmatpush1.msra.mxu0 0.0
    %1643 = vmatprep.subr.mxu0 0.0
    %1644 = vmatpush1.msra.mxu0 0.0
    %1645 = vmatprep.subr.mxu0 0.0
    %1646 = vmatpush1.msra.mxu0 0.0
    %1647 = vmatprep.subr.mxu0 0.0
    %1648 = vmatpush1.msra.mxu0 0.0
    %1649 = vmatprep.subr.mxu0 0.0
    %1650 = vmatpush1.msra.mxu0 0.0
    %1651 = vmatprep.subr.mxu0 0.0
    %1652 = vmatpush1.msra.mxu0 0.0
    %1653 = vmatprep.subr.mxu0 0.0
    %1654 = vmatpush1.msra.mxu0 0.0
    %1655 = vmatprep.subr.mxu0 0.0
    %1656 = vmatpush1.msra.mxu0 0.0
    %1657 = vmatprep.subr.mxu0 0.0
    %1658 = vmatpush1.msra.mxu0 0.0
    %1659 = vmatprep.subr.mxu0 0.0
    %1660 = vmatpush1.msra.mxu0 0.0
    %1661 = vmatprep.subr.mxu0 0.0
    %1662 = vmatpush1.msra.mxu0 0.0
    %1663 = vmatprep.subr.mxu0 0.0
    %1664 = vmatpush1.msra.mxu0 0.0
    %1665 = vmatprep.subr.mxu0 0.0
    %1666 = vmatpush1.msra.mxu0 0.0
    %1667 = vmatprep.mubr.f32.mxu0 0.0
    %1668 = vmatmul.mubr.f32.gmra.mrb[0].mxu0 %v1592
    %v1669 = vpop.f32.mrb[0].mxu0
    %v1670 = vadd.f32 %v1573, %v1669
    %v1671 = vpop.f32.mrb[0].mxu0
    %1672 = vmatprep.mubr.f32.mxu0 0.0
    %1673 = vmatmul.mubr.f32.gmra.mrb[0].mxu0 %v1595
    %v1674 = vpop.f32.mrb[0].mxu0
    %v1675 = vadd.f32 %v1578, %v1674
    %v1676 = vpop.f32.mrb[0].mxu0
    %1677 = vmatprep.mubr.f32.mxu0 0.0
    %1678 = vmatmul.mubr.f32.gmra.mrb[0].mxu0 %v1598
    %v1679 = vpop.f32.mrb[0].mxu0
    %v1680 = vadd.f32 %v1583, %v1679
    %v1681 = vpop.f32.mrb[0].mxu0
    %1682 = vmatprep.mubr.f32.mxu0 0.0
    %1683 = vmatmul.mubr.f32.gmra.mrb[0].mxu0 %v1601
    %v1684 = vpop.f32.mrb[0].mxu0
    %v1685 = vadd.f32 %v1588, %v1684
    %v1686 = vpop.f32.mrb[0].mxu0
    %1687 = vdwg.mxu0
    %1688 = vrot.lane.b32.xlu0 %v157, 112
    %v1689 = vpop.permute.xlu0 %1688
    %1690 = vrot.lane.b32.xlu0 %v157, 80
    %v1691 = vpop.permute.xlu0 %1690
    %v1692 = vsel %vm178, %v1689, 0
    %v1694 = vsel %vm178, %v1691, 0
    %1696 = vmatprep.subr.mxu0 0.0
    %1697 = vmatpush1.xpose.msra.mxu0 %v1694
    %1698 = vmatprep.subr.mxu0 0.0
    %1699 = vmatpush1.xpose.msra.mxu0 0.0
    %1700 = vmatprep.subr.mxu0 0.0
    %1701 = vmatpush1.xpose.msra.mxu0 0.0
    %1702 = vmatprep.subr.mxu0 0.0
    %1703 = vmatpush1.xpose.msra.mxu0 0.0
    %1704 = vmatprep.subr.mxu0 0.0
    %1705 = vmatpush1.xpose.msra.mxu0 0.0
    %1706 = vmatprep.subr.mxu0 0.0
    %1707 = vmatpush1.xpose.msra.mxu0 0.0
    %1708 = vmatprep.subr.mxu0 0.0
    %1709 = vmatpush1.xpose.msra.mxu0 0.0
    %1710 = vmatprep.subr.mxu0 0.0
    %1711 = vmatpush1.xpose.msra.mxu0 0.0
    %1712 = vmatprep.subr.mxu0 0.0
    %1713 = vmatpush1.xpose.msra.mxu0 0.0
    %1714 = vmatprep.subr.mxu0 0.0
    %1715 = vmatpush1.xpose.msra.mxu0 0.0
    %1716 = vmatprep.subr.mxu0 0.0
    %1717 = vmatpush1.xpose.msra.mxu0 0.0
    %1718 = vmatprep.subr.mxu0 0.0
    %1719 = vmatpush1.xpose.msra.mxu0 0.0
    %1720 = vmatprep.subr.mxu0 0.0
    %1721 = vmatpush1.xpose.msra.mxu0 0.0
    %1722 = vmatprep.subr.mxu0 0.0
    %1723 = vmatpush1.xpose.msra.mxu0 0.0
    %1724 = vmatprep.subr.mxu0 0.0
    %1725 = vmatpush1.xpose.msra.mxu0 0.0
    %1726 = vmatprep.subr.mxu0 0.0
    %1727 = vmatpush1.xpose.msra.mxu0 0.0
    %1728 = vmatprep.subr.mxu0 0.0
    %1729 = vmatpush1.xpose.msra.mxu0 0.0
    %1730 = vmatprep.subr.mxu0 0.0
    %1731 = vmatpush1.xpose.msra.mxu0 0.0
    %1732 = vmatprep.subr.mxu0 0.0
    %1733 = vmatpush1.xpose.msra.mxu0 0.0
    %1734 = vmatprep.subr.mxu0 0.0
    %1735 = vmatpush1.xpose.msra.mxu0 0.0
    %1736 = vmatprep.subr.mxu0 0.0
    %1737 = vmatpush1.xpose.msra.mxu0 0.0
    %1738 = vmatprep.subr.mxu0 0.0
    %1739 = vmatpush1.xpose.msra.mxu0 0.0
    %1740 = vmatprep.subr.mxu0 0.0
    %1741 = vmatpush1.xpose.msra.mxu0 0.0
    %1742 = vmatprep.subr.mxu0 0.0
    %1743 = vmatpush1.xpose.msra.mxu0 0.0
    %1744 = vmatprep.subr.mxu0 0.0
    %1745 = vmatpush1.xpose.msra.mxu0 0.0
    %1746 = vmatprep.subr.mxu0 0.0
    %1747 = vmatpush1.xpose.msra.mxu0 0.0
    %1748 = vmatprep.subr.mxu0 0.0
    %1749 = vmatpush1.xpose.msra.mxu0 0.0
    %1750 = vmatprep.subr.mxu0 0.0
    %1751 = vmatpush1.xpose.msra.mxu0 0.0
    %1752 = vmatprep.subr.mxu0 0.0
    %1753 = vmatpush1.xpose.msra.mxu0 0.0
    %1754 = vmatprep.subr.mxu0 0.0
    %1755 = vmatpush1.xpose.msra.mxu0 0.0
    %1756 = vmatprep.subr.mxu0 0.0
    %1757 = vmatpush1.xpose.msra.mxu0 0.0
    %1758 = vmatprep.subr.mxu0 0.0
    %1759 = vmatpush1.xpose.msra.mxu0 0.0
    %1760 = vmatprep.mubr.f32.mxu0 0.0
    %1761 = vmatmul.mubr.f32.gmra.mrb[0].mxu0 %v1692
    %v1762 = vpop.f32.mrb[0].mxu0
    %v1763 = vadd.f32 0.0, %v1762
    %v1764 = vpop.f32.mrb[0].mxu0
    %1765 = vdwg.mxu0
    %1766 = vrot.lane.b32.xlu0 %v162, 112
    %v1767 = vpop.permute.xlu0 %1766
    %1768 = vrot.lane.b32.xlu0 %v162, 80
    %v1769 = vpop.permute.xlu0 %1768
    %v1770 = vsel %vm178, %v1767, 0
    %v1772 = vsel %vm178, %v1769, 0
    %1774 = vmatprep.subr.mxu0 0.0
    %1775 = vmatpush1.xpose.msra.mxu0 %v1772
    %1776 = vmatprep.subr.mxu0 0.0
    %1777 = vmatpush1.xpose.msra.mxu0 0.0
    %1778 = vmatprep.subr.mxu0 0.0
    %1779 = vmatpush1.xpose.msra.mxu0 0.0
    %1780 = vmatprep.subr.mxu0 0.0
    %1781 = vmatpush1.xpose.msra.mxu0 0.0
    %1782 = vmatprep.subr.mxu0 0.0
    %1783 = vmatpush1.xpose.msra.mxu0 0.0
    %1784 = vmatprep.subr.mxu0 0.0
    %1785 = vmatpush1.xpose.msra.mxu0 0.0
    %1786 = vmatprep.subr.mxu0 0.0
    %1787 = vmatpush1.xpose.msra.mxu0 0.0
    %1788 = vmatprep.subr.mxu0 0.0
    %1789 = vmatpush1.xpose.msra.mxu0 0.0
    %1790 = vmatprep.subr.mxu0 0.0
    %1791 = vmatpush1.xpose.msra.mxu0 0.0
    %1792 = vmatprep.subr.mxu0 0.0
    %1793 = vmatpush1.xpose.msra.mxu0 0.0
    %1794 = vmatprep.subr.mxu0 0.0
    %1795 = vmatpush1.xpose.msra.mxu0 0.0
    %1796 = vmatprep.subr.mxu0 0.0
    %1797 = vmatpush1.xpose.msra.mxu0 0.0
    %1798 = vmatprep.subr.mxu0 0.0
    %1799 = vmatpush1.xpose.msra.mxu0 0.0
    %1800 = vmatprep.subr.mxu0 0.0
    %1801 = vmatpush1.xpose.msra.mxu0 0.0
    %1802 = vmatprep.subr.mxu0 0.0
    %1803 = vmatpush1.xpose.msra.mxu0 0.0
    %1804 = vmatprep.subr.mxu0 0.0
    %1805 = vmatpush1.xpose.msra.mxu0 0.0
    %1806 = vmatprep.subr.mxu0 0.0
    %1807 = vmatpush1.xpose.msra.mxu0 0.0
    %1808 = vmatprep.subr.mxu0 0.0
    %1809 = vmatpush1.xpose.msra.mxu0 0.0
    %1810 = vmatprep.subr.mxu0 0.0
    %1811 = vmatpush1.xpose.msra.mxu0 0.0
    %1812 = vmatprep.subr.mxu0 0.0
    %1813 = vmatpush1.xpose.msra.mxu0 0.0
    %1814 = vmatprep.subr.mxu0 0.0
    %1815 = vmatpush1.xpose.msra.mxu0 0.0
    %1816 = vmatprep.subr.mxu0 0.0
    %1817 = vmatpush1.xpose.msra.mxu0 0.0
    %1818 = vmatprep.subr.mxu0 0.0
    %1819 = vmatpush1.xpose.msra.mxu0 0.0
    %1820 = vmatprep.subr.mxu0 0.0
    %1821 = vmatpush1.xpose.msra.mxu0 0.0
    %1822 = vmatprep.subr.mxu0 0.0
    %1823 = vmatpush1.xpose.msra.mxu0 0.0
    %1824 = vmatprep.subr.mxu0 0.0
    %1825 = vmatpush1.xpose.msra.mxu0 0.0
    %1826 = vmatprep.subr.mxu0 0.0
    %1827 = vmatpush1.xpose.msra.mxu0 0.0
    %1828 = vmatprep.subr.mxu0 0.0
    %1829 = vmatpush1.xpose.msra.mxu0 0.0
    %1830 = vmatprep.subr.mxu0 0.0
    %1831 = vmatpush1.xpose.msra.mxu0 0.0
    %1832 = vmatprep.subr.mxu0 0.0
    %1833 = vmatpush1.xpose.msra.mxu0 0.0
    %1834 = vmatprep.subr.mxu0 0.0
    %1835 = vmatpush1.xpose.msra.mxu0 0.0
    %1836 = vmatprep.subr.mxu0 0.0
    %1837 = vmatpush1.xpose.msra.mxu0 0.0
    %1838 = vmatprep.mubr.f32.mxu0 0.0
    %1839 = vmatmul.mubr.f32.gmra.mrb[0].mxu0 %v1770
    %v1840 = vpop.f32.mrb[0].mxu0
    %v1841 = vadd.f32 0.0, %v1840
    %v1842 = vpop.f32.mrb[0].mxu0
    %1843 = vdwg.mxu0
    %1844 = vrot.lane.b32.xlu0 %v167, 112
    %v1845 = vpop.permute.xlu0 %1844
    %1846 = vrot.lane.b32.xlu0 %v167, 80
    %v1847 = vpop.permute.xlu0 %1846
    %v1848 = vsel %vm178, %v1845, 0
    %v1850 = vsel %vm178, %v1847, 0
    %1852 = vmatprep.subr.mxu0 0.0
    %1853 = vmatpush1.xpose.msra.mxu0 %v1850
    %1854 = vmatprep.subr.mxu0 0.0
    %1855 = vmatpush1.xpose.msra.mxu0 0.0
    %1856 = vmatprep.subr.mxu0 0.0
    %1857 = vmatpush1.xpose.msra.mxu0 0.0
    %1858 = vmatprep.subr.mxu0 0.0
    %1859 = vmatpush1.xpose.msra.mxu0 0.0
    %1860 = vmatprep.subr.mxu0 0.0
    %1861 = vmatpush1.xpose.msra.mxu0 0.0
    %1862 = vmatprep.subr.mxu0 0.0
    %1863 = vmatpush1.xpose.msra.mxu0 0.0
    %1864 = vmatprep.subr.mxu0 0.0
    %1865 = vmatpush1.xpose.msra.mxu0 0.0
    %1866 = vmatprep.subr.mxu0 0.0
    %1867 = vmatpush1.xpose.msra.mxu0 0.0
    %1868 = vmatprep.subr.mxu0 0.0
    %1869 = vmatpush1.xpose.msra.mxu0 0.0
    %1870 = vmatprep.subr.mxu0 0.0
    %1871 = vmatpush1.xpose.msra.mxu0 0.0
    %1872 = vmatprep.subr.mxu0 0.0
    %1873 = vmatpush1.xpose.msra.mxu0 0.0
    %1874 = vmatprep.subr.mxu0 0.0
    %1875 = vmatpush1.xpose.msra.mxu0 0.0
    %1876 = vmatprep.subr.mxu0 0.0
    %1877 = vmatpush1.xpose.msra.mxu0 0.0
    %1878 = vmatprep.subr.mxu0 0.0
    %1879 = vmatpush1.xpose.msra.mxu0 0.0
    %1880 = vmatprep.subr.mxu0 0.0
    %1881 = vmatpush1.xpose.msra.mxu0 0.0
    %1882 = vmatprep.subr.mxu0 0.0
    %1883 = vmatpush1.xpose.msra.mxu0 0.0
    %1884 = vmatprep.subr.mxu0 0.0
    %1885 = vmatpush1.xpose.msra.mxu0 0.0
    %1886 = vmatprep.subr.mxu0 0.0
    %1887 = vmatpush1.xpose.msra.mxu0 0.0
    %1888 = vmatprep.subr.mxu0 0.0
    %1889 = vmatpush1.xpose.msra.mxu0 0.0
    %1890 = vmatprep.subr.mxu0 0.0
    %1891 = vmatpush1.xpose.msra.mxu0 0.0
    %1892 = vmatprep.subr.mxu0 0.0
    %1893 = vmatpush1.xpose.msra.mxu0 0.0
    %1894 = vmatprep.subr.mxu0 0.0
    %1895 = vmatpush1.xpose.msra.mxu0 0.0
    %1896 = vmatprep.subr.mxu0 0.0
    %1897 = vmatpush1.xpose.msra.mxu0 0.0
    %1898 = vmatprep.subr.mxu0 0.0
    %1899 = vmatpush1.xpose.msra.mxu0 0.0
    %1900 = vmatprep.subr.mxu0 0.0
    %1901 = vmatpush1.xpose.msra.mxu0 0.0
    %1902 = vmatprep.subr.mxu0 0.0
    %1903 = vmatpush1.xpose.msra.mxu0 0.0
    %1904 = vmatprep.subr.mxu0 0.0
    %1905 = vmatpush1.xpose.msra.mxu0 0.0
    %1906 = vmatprep.subr.mxu0 0.0
    %1907 = vmatpush1.xpose.msra.mxu0 0.0
    %1908 = vmatprep.subr.mxu0 0.0
    %1909 = vmatpush1.xpose.msra.mxu0 0.0
    %1910 = vmatprep.subr.mxu0 0.0
    %1911 = vmatpush1.xpose.msra.mxu0 0.0
    %1912 = vmatprep.subr.mxu0 0.0
    %1913 = vmatpush1.xpose.msra.mxu0 0.0
    %1914 = vmatprep.subr.mxu0 0.0
    %1915 = vmatpush1.xpose.msra.mxu0 0.0
    %1916 = vmatprep.mubr.f32.mxu0 0.0
    %1917 = vmatmul.mubr.f32.gmra.mrb[0].mxu0 %v1848
    %v1918 = vpop.f32.mrb[0].mxu0
    %v1919 = vadd.f32 0.0, %v1918
    %v1920 = vpop.f32.mrb[0].mxu0
    %1921 = vdwg.mxu0
    %1922 = vrot.lane.b32.xlu0 %v172, 112
    %v1923 = vpop.permute.xlu0 %1922
    %1924 = vrot.lane.b32.xlu0 %v172, 80
    %v1925 = vpop.permute.xlu0 %1924
    %v1926 = vsel %vm178, %v1923, 0
    %v1928 = vsel %vm178, %v1925, 0
    %1930 = vmatprep.subr.mxu0 0.0
    %1931 = vmatpush1.xpose.msra.mxu0 %v1928
    %1932 = vmatprep.subr.mxu0 0.0
    %1933 = vmatpush1.xpose.msra.mxu0 0.0
    %1934 = vmatprep.subr.mxu0 0.0
    %1935 = vmatpush1.xpose.msra.mxu0 0.0
    %1936 = vmatprep.subr.mxu0 0.0
    %1937 = vmatpush1.xpose.msra.mxu0 0.0
    %1938 = vmatprep.subr.mxu0 0.0
    %1939 = vmatpush1.xpose.msra.mxu0 0.0
    %1940 = vmatprep.subr.mxu0 0.0
    %1941 = vmatpush1.xpose.msra.mxu0 0.0
    %1942 = vmatprep.subr.mxu0 0.0
    %1943 = vmatpush1.xpose.msra.mxu0 0.0
    %1944 = vmatprep.subr.mxu0 0.0
    %1945 = vmatpush1.xpose.msra.mxu0 0.0
    %1946 = vmatprep.subr.mxu0 0.0
    %1947 = vmatpush1.xpose.msra.mxu0 0.0
    %1948 = vmatprep.subr.mxu0 0.0
    %1949 = vmatpush1.xpose.msra.mxu0 0.0
    %1950 = vmatprep.subr.mxu0 0.0
    %1951 = vmatpush1.xpose.msra.mxu0 0.0
    %1952 = vmatprep.subr.mxu0 0.0
    %1953 = vmatpush1.xpose.msra.mxu0 0.0
    %1954 = vmatprep.subr.mxu0 0.0
    %1955 = vmatpush1.xpose.msra.mxu0 0.0
    %1956 = vmatprep.subr.mxu0 0.0
    %1957 = vmatpush1.xpose.msra.mxu0 0.0
    %1958 = vmatprep.subr.mxu0 0.0
    %1959 = vmatpush1.xpose.msra.mxu0 0.0
    %1960 = vmatprep.subr.mxu0 0.0
    %1961 = vmatpush1.xpose.msra.mxu0 0.0
    %1962 = vmatprep.subr.mxu0 0.0
    %1963 = vmatpush1.xpose.msra.mxu0 0.0
    %1964 = vmatprep.subr.mxu0 0.0
    %1965 = vmatpush1.xpose.msra.mxu0 0.0
    %1966 = vmatprep.subr.mxu0 0.0
    %1967 = vmatpush1.xpose.msra.mxu0 0.0
    %1968 = vmatprep.subr.mxu0 0.0
    %1969 = vmatpush1.xpose.msra.mxu0 0.0
    %1970 = vmatprep.subr.mxu0 0.0
    %1971 = vmatpush1.xpose.msra.mxu0 0.0
    %1972 = vmatprep.subr.mxu0 0.0
    %1973 = vmatpush1.xpose.msra.mxu0 0.0
    %1974 = vmatprep.subr.mxu0 0.0
    %1975 = vmatpush1.xpose.msra.mxu0 0.0
    %1976 = vmatprep.subr.mxu0 0.0
    %1977 = vmatpush1.xpose.msra.mxu0 0.0
    %1978 = vmatprep.subr.mxu0 0.0
    %1979 = vmatpush1.xpose.msra.mxu0 0.0
    %1980 = vmatprep.subr.mxu0 0.0
    %1981 = vmatpush1.xpose.msra.mxu0 0.0
    %1982 = vmatprep.subr.mxu0 0.0
    %1983 = vmatpush1.xpose.msra.mxu0 0.0
    %1984 = vmatprep.subr.mxu0 0.0
    %1985 = vmatpush1.xpose.msra.mxu0 0.0
    %1986 = vmatprep.subr.mxu0 0.0
    %1987 = vmatpush1.xpose.msra.mxu0 0.0
    %1988 = vmatprep.subr.mxu0 0.0
    %1989 = vmatpush1.xpose.msra.mxu0 0.0
    %1990 = vmatprep.subr.mxu0 0.0
    %1991 = vmatpush1.xpose.msra.mxu0 0.0
    %1992 = vmatprep.subr.mxu0 0.0
    %1993 = vmatpush1.xpose.msra.mxu0 0.0
    %1994 = vmatprep.mubr.f32.mxu0 0.0
    %1995 = vmatmul.mubr.f32.gmra.mrb[0].mxu0 %v1926
    %v1996 = vpop.f32.mrb[0].mxu0
    %v1997 = vadd.f32 0.0, %v1996
    %v1998 = vpop.f32.mrb[0].mxu0
    %1999 = vdwg.mxu0
    %v2000 = vsel %vm178, %v1763, -inf
    %2001 = vmax.xlane.f32.xlu0 %v2000
    %v2002 = vpop.xlane.xlu0 %2001
    %v2003 = vsel %vm178, %v1841, -inf
    %2004 = vmax.xlane.f32.xlu0 %v2003
    %v2005 = vpop.xlane.xlu0 %2004
    %v2006 = vsel %vm178, %v1919, -inf
    %2007 = vmax.xlane.f32.xlu0 %v2006
    %v2008 = vpop.xlane.xlu0 %2007
    %v2009 = vsel %vm178, %v1997, -inf
    %2010 = vmax.xlane.f32.xlu0 %v2009
    %v2011 = vpop.xlane.xlu0 %2010
    %v2012 = vsub.f32 %v1763, %v2002
    %v2013 = vsub.f32 %v1841, %v2005
    %v2014 = vsub.f32 %v1919, %v2008
    %v2015 = vsub.f32 %v1997, %v2011
    %v2016 = vmul.f32 %v2012, 1.442695
    %v2017 = vpow.pop %v2016
    %v2018 = vmul.f32 %v2013, 1.442695
    %v2019 = vpow.pop %v2018
    %v2020 = vmul.f32 %v2014, 1.442695
    %v2021 = vpow.pop %v2020
    %v2022 = vmul.f32 %v2015, 1.442695
    %v2023 = vpow.pop %v2022
    %v2024 = vsel %vm178, %v2017, 0.0
    %2025 = vadd.xlane.f32.xlu0 %v2024
    %v2026 = vpop.xlane.xlu0 %2025
    %v2027 = vsel %vm178, %v2019, 0.0
    %2028 = vadd.xlane.f32.xlu0 %v2027
    %v2029 = vpop.xlane.xlu0 %2028
    %v2030 = vsel %vm178, %v2021, 0.0
    %2031 = vadd.xlane.f32.xlu0 %v2030
    %v2032 = vpop.xlane.xlu0 %2031
    %v2033 = vsel %vm178, %v2023, 0.0
    %2034 = vadd.xlane.f32.xlu0 %v2033
    %v2035 = vpop.xlane.xlu0 %2034
    %v2036 = vrcp.pop %v2026
    %v2037 = vrcp.pop %v2029
    %v2038 = vrcp.pop %v2032
    %v2039 = vrcp.pop %v2035
    %2040 = vrot.lane.b32.xlu0 %v157, 48
    %v2041 = vpop.permute.xlu0 %2040
    %v2044 = vsel %vm178, %v2017, 0
    %2046 = vmatprep.subr.mxu0 0.0
    %2047 = vmatpush1.msra.mxu0 %v2041
    %2048 = vmatprep.subr.mxu0 0.0
    %2049 = vmatpush1.msra.mxu0 0.0
    %2050 = vmatprep.subr.mxu0 0.0
    %2051 = vmatpush1.msra.mxu0 0.0
    %2052 = vmatprep.subr.mxu0 0.0
    %2053 = vmatpush1.msra.mxu0 0.0
    %2054 = vmatprep.subr.mxu0 0.0
    %2055 = vmatpush1.msra.mxu0 0.0
    %2056 = vmatprep.subr.mxu0 0.0
    %2057 = vmatpush1.msra.mxu0 0.0
    %2058 = vmatprep.subr.mxu0 0.0
    %2059 = vmatpush1.msra.mxu0 0.0
    %2060 = vmatprep.subr.mxu0 0.0
    %2061 = vmatpush1.msra.mxu0 0.0
    %2062 = vmatprep.subr.mxu0 0.0
    %2063 = vmatpush1.msra.mxu0 0.0
    %2064 = vmatprep.subr.mxu0 0.0
    %2065 = vmatpush1.msra.mxu0 0.0
    %2066 = vmatprep.subr.mxu0 0.0
    %2067 = vmatpush1.msra.mxu0 0.0
    %2068 = vmatprep.subr.mxu0 0.0
    %2069 = vmatpush1.msra.mxu0 0.0
    %2070 = vmatprep.subr.mxu0 0.0
    %2071 = vmatpush1.msra.mxu0 0.0
    %2072 = vmatprep.subr.mxu0 0.0
    %2073 = vmatpush1.msra.mxu0 0.0
    %2074 = vmatprep.subr.mxu0 0.0
    %2075 = vmatpush1.msra.mxu0 0.0
    %2076 = vmatprep.subr.mxu0 0.0
    %2077 = vmatpush1.msra.mxu0 0.0
    %2078 = vmatprep.subr.mxu0 0.0
    %2079 = vmatpush1.msra.mxu0 0.0
    %2080 = vmatprep.subr.mxu0 0.0
    %2081 = vmatpush1.msra.mxu0 0.0
    %2082 = vmatprep.subr.mxu0 0.0
    %2083 = vmatpush1.msra.mxu0 0.0
    %2084 = vmatprep.subr.mxu0 0.0
    %2085 = vmatpush1.msra.mxu0 0.0
    %2086 = vmatprep.subr.mxu0 0.0
    %2087 = vmatpush1.msra.mxu0 0.0
    %2088 = vmatprep.subr.mxu0 0.0
    %2089 = vmatpush1.msra.mxu0 0.0
    %2090 = vmatprep.subr.mxu0 0.0
    %2091 = vmatpush1.msra.mxu0 0.0
    %2092 = vmatprep.subr.mxu0 0.0
    %2093 = vmatpush1.msra.mxu0 0.0
    %2094 = vmatprep.subr.mxu0 0.0
    %2095 = vmatpush1.msra.mxu0 0.0
    %2096 = vmatprep.subr.mxu0 0.0
    %2097 = vmatpush1.msra.mxu0 0.0
    %2098 = vmatprep.subr.mxu0 0.0
    %2099 = vmatpush1.msra.mxu0 0.0
    %2100 = vmatprep.subr.mxu0 0.0
    %2101 = vmatpush1.msra.mxu0 0.0
    %2102 = vmatprep.subr.mxu0 0.0
    %2103 = vmatpush1.msra.mxu0 0.0
    %2104 = vmatprep.subr.mxu0 0.0
    %2105 = vmatpush1.msra.mxu0 0.0
    %2106 = vmatprep.subr.mxu0 0.0
    %2107 = vmatpush1.msra.mxu0 0.0
    %2108 = vmatprep.subr.mxu0 0.0
    %2109 = vmatpush1.msra.mxu0 0.0
    %2110 = vmatprep.mubr.f32.mxu0 0.0
    %2111 = vmatmul.mubr.f32.gmra.mrb[0].mxu0 %v2044
    %v2112 = vpop.f32.mrb[0].mxu0
    %v2113 = vadd.f32 0.0, %v2112
    %v2114 = vpop.f32.mrb[0].mxu0
    %2115 = vdwg.mxu0
    %2116 = vrot.lane.b32.xlu0 %v162, 48
    %v2117 = vpop.permute.xlu0 %2116
    %v2120 = vsel %vm178, %v2019, 0
    %2122 = vmatprep.subr.mxu0 0.0
    %2123 = vmatpush1.msra.mxu0 %v2117
    %2124 = vmatprep.subr.mxu0 0.0
    %2125 = vmatpush1.msra.mxu0 0.0
    %2126 = vmatprep.subr.mxu0 0.0
    %2127 = vmatpush1.msra.mxu0 0.0
    %2128 = vmatprep.subr.mxu0 0.0
    %2129 = vmatpush1.msra.mxu0 0.0
    %2130 = vmatprep.subr.mxu0 0.0
    %2131 = vmatpush1.msra.mxu0 0.0
    %2132 = vmatprep.subr.mxu0 0.0
    %2133 = vmatpush1.msra.mxu0 0.0
    %2134 = vmatprep.subr.mxu0 0.0
    %2135 = vmatpush1.msra.mxu0 0.0
    %2136 = vmatprep.subr.mxu0 0.0
    %2137 = vmatpush1.msra.mxu0 0.0
    %2138 = vmatprep.subr.mxu0 0.0
    %2139 = vmatpush1.msra.mxu0 0.0
    %2140 = vmatprep.subr.mxu0 0.0
    %2141 = vmatpush1.msra.mxu0 0.0
    %2142 = vmatprep.subr.mxu0 0.0
    %2143 = vmatpush1.msra.mxu0 0.0
    %2144 = vmatprep.subr.mxu0 0.0
    %2145 = vmatpush1.msra.mxu0 0.0
    %2146 = vmatprep.subr.mxu0 0.0
    %2147 = vmatpush1.msra.mxu0 0.0
    %2148 = vmatprep.subr.mxu0 0.0
    %2149 = vmatpush1.msra.mxu0 0.0
    %2150 = vmatprep.subr.mxu0 0.0
    %2151 = vmatpush1.msra.mxu0 0.0
    %2152 = vmatprep.subr.mxu0 0.0
    %2153 = vmatpush1.msra.mxu0 0.0
    %2154 = vmatprep.subr.mxu0 0.0
    %2155 = vmatpush1.msra.mxu0 0.0
    %2156 = vmatprep.subr.mxu0 0.0
    %2157 = vmatpush1.msra.mxu0 0.0
    %2158 = vmatprep.subr.mxu0 0.0
    %2159 = vmatpush1.msra.mxu0 0.0
    %2160 = vmatprep.subr.mxu0 0.0
    %2161 = vmatpush1.msra.mxu0 0.0
    %2162 = vmatprep.subr.mxu0 0.0
    %2163 = vmatpush1.msra.mxu0 0.0
    %2164 = vmatprep.subr.mxu0 0.0
    %2165 = vmatpush1.msra.mxu0 0.0
    %2166 = vmatprep.subr.mxu0 0.0
    %2167 = vmatpush1.msra.mxu0 0.0
    %2168 = vmatprep.subr.mxu0 0.0
    %2169 = vmatpush1.msra.mxu0 0.0
    %2170 = vmatprep.subr.mxu0 0.0
    %2171 = vmatpush1.msra.mxu0 0.0
    %2172 = vmatprep.subr.mxu0 0.0
    %2173 = vmatpush1.msra.mxu0 0.0
    %2174 = vmatprep.subr.mxu0 0.0
    %2175 = vmatpush1.msra.mxu0 0.0
    %2176 = vmatprep.subr.mxu0 0.0
    %2177 = vmatpush1.msra.mxu0 0.0
    %2178 = vmatprep.subr.mxu0 0.0
    %2179 = vmatpush1.msra.mxu0 0.0
    %2180 = vmatprep.subr.mxu0 0.0
    %2181 = vmatpush1.msra.mxu0 0.0
    %2182 = vmatprep.subr.mxu0 0.0
    %2183 = vmatpush1.msra.mxu0 0.0
    %2184 = vmatprep.subr.mxu0 0.0
    %2185 = vmatpush1.msra.mxu0 0.0
    %2186 = vmatprep.mubr.f32.mxu0 0.0
    %2187 = vmatmul.mubr.f32.gmra.mrb[0].mxu0 %v2120
    %v2188 = vpop.f32.mrb[0].mxu0
    %v2189 = vadd.f32 0.0, %v2188
    %v2190 = vpop.f32.mrb[0].mxu0
    %2191 = vdwg.mxu0
    %2192 = vrot.lane.b32.xlu0 %v167, 48
    %v2193 = vpop.permute.xlu0 %2192
    %v2196 = vsel %vm178, %v2021, 0
    %2198 = vmatprep.subr.mxu0 0.0
    %2199 = vmatpush1.msra.mxu0 %v2193
    %2200 = vmatprep.subr.mxu0 0.0
    %2201 = vmatpush1.msra.mxu0 0.0
    %2202 = vmatprep.subr.mxu0 0.0
    %2203 = vmatpush1.msra.mxu0 0.0
    %2204 = vmatprep.subr.mxu0 0.0
    %2205 = vmatpush1.msra.mxu0 0.0
    %2206 = vmatprep.subr.mxu0 0.0
    %2207 = vmatpush1.msra.mxu0 0.0
    %2208 = vmatprep.subr.mxu0 0.0
    %2209 = vmatpush1.msra.mxu0 0.0
    %2210 = vmatprep.subr.mxu0 0.0
    %2211 = vmatpush1.msra.mxu0 0.0
    %2212 = vmatprep.subr.mxu0 0.0
    %2213 = vmatpush1.msra.mxu0 0.0
    %2214 = vmatprep.subr.mxu0 0.0
    %2215 = vmatpush1.msra.mxu0 0.0
    %2216 = vmatprep.subr.mxu0 0.0
    %2217 = vmatpush1.msra.mxu0 0.0
    %2218 = vmatprep.subr.mxu0 0.0
    %2219 = vmatpush1.msra.mxu0 0.0
    %2220 = vmatprep.subr.mxu0 0.0
    %2221 = vmatpush1.msra.mxu0 0.0
    %2222 = vmatprep.subr.mxu0 0.0
    %2223 = vmatpush1.msra.mxu0 0.0
    %2224 = vmatprep.subr.mxu0 0.0
    %2225 = vmatpush1.msra.mxu0 0.0
    %2226 = vmatprep.subr.mxu0 0.0
    %2227 = vmatpush1.msra.mxu0 0.0
    %2228 = vmatprep.subr.mxu0 0.0
    %2229 = vmatpush1.msra.mxu0 0.0
    %2230 = vmatprep.subr.mxu0 0.0
    %2231 = vmatpush1.msra.mxu0 0.0
    %2232 = vmatprep.subr.mxu0 0.0
    %2233 = vmatpush1.msra.mxu0 0.0
    %2234 = vmatprep.subr.mxu0 0.0
    %2235 = vmatpush1.msra.mxu0 0.0
    %2236 = vmatprep.subr.mxu0 0.0
    %2237 = vmatpush1.msra.mxu0 0.0
    %2238 = vmatprep.subr.mxu0 0.0
    %2239 = vmatpush1.msra.mxu0 0.0
    %2240 = vmatprep.subr.mxu0 0.0
    %2241 = vmatpush1.msra.mxu0 0.0
    %2242 = vmatprep.subr.mxu0 0.0
    %2243 = vmatpush1.msra.mxu0 0.0
    %2244 = vmatprep.subr.mxu0 0.0
    %2245 = vmatpush1.msra.mxu0 0.0
    %2246 = vmatprep.subr.mxu0 0.0
    %2247 = vmatpush1.msra.mxu0 0.0
    %2248 = vmatprep.subr.mxu0 0.0
    %2249 = vmatpush1.msra.mxu0 0.0
    %2250 = vmatprep.subr.mxu0 0.0
    %2251 = vmatpush1.msra.mxu0 0.0
    %2252 = vmatprep.subr.mxu0 0.0
    %2253 = vmatpush1.msra.mxu0 0.0
    %2254 = vmatprep.subr.mxu0 0.0
    %2255 = vmatpush1.msra.mxu0 0.0
    %2256 = vmatprep.subr.mxu0 0.0
    %2257 = vmatpush1.msra.mxu0 0.0
    %2258 = vmatprep.subr.mxu0 0.0
    %2259 = vmatpush1.msra.mxu0 0.0
    %2260 = vmatprep.subr.mxu0 0.0
    %2261 = vmatpush1.msra.mxu0 0.0
    %2262 = vmatprep.mubr.f32.mxu0 0.0
    %2263 = vmatmul.mubr.f32.gmra.mrb[0].mxu0 %v2196
    %v2264 = vpop.f32.mrb[0].mxu0
    %v2265 = vadd.f32 0.0, %v2264
    %v2266 = vpop.f32.mrb[0].mxu0
    %2267 = vdwg.mxu0
    %2268 = vrot.lane.b32.xlu0 %v172, 48
    %v2269 = vpop.permute.xlu0 %2268
    %v2272 = vsel %vm178, %v2023, 0
    %2274 = vmatprep.subr.mxu0 0.0
    %2275 = vmatpush1.msra.mxu0 %v2269
    %2276 = vmatprep.subr.mxu0 0.0
    %2277 = vmatpush1.msra.mxu0 0.0
    %2278 = vmatprep.subr.mxu0 0.0
    %2279 = vmatpush1.msra.mxu0 0.0
    %2280 = vmatprep.subr.mxu0 0.0
    %2281 = vmatpush1.msra.mxu0 0.0
    %2282 = vmatprep.subr.mxu0 0.0
    %2283 = vmatpush1.msra.mxu0 0.0
    %2284 = vmatprep.subr.mxu0 0.0
    %2285 = vmatpush1.msra.mxu0 0.0
    %2286 = vmatprep.subr.mxu0 0.0
    %2287 = vmatpush1.msra.mxu0 0.0
    %2288 = vmatprep.subr.mxu0 0.0
    %2289 = vmatpush1.msra.mxu0 0.0
    %2290 = vmatprep.subr.mxu0 0.0
    %2291 = vmatpush1.msra.mxu0 0.0
    %2292 = vmatprep.subr.mxu0 0.0
    %2293 = vmatpush1.msra.mxu0 0.0
    %2294 = vmatprep.subr.mxu0 0.0
    %2295 = vmatpush1.msra.mxu0 0.0
    %2296 = vmatprep.subr.mxu0 0.0
    %2297 = vmatpush1.msra.mxu0 0.0
    %2298 = vmatprep.subr.mxu0 0.0
    %2299 = vmatpush1.msra.mxu0 0.0
    %2300 = vmatprep.subr.mxu0 0.0
    %2301 = vmatpush1.msra.mxu0 0.0
    %2302 = vmatprep.subr.mxu0 0.0
    %2303 = vmatpush1.msra.mxu0 0.0
    %2304 = vmatprep.subr.mxu0 0.0
    %2305 = vmatpush1.msra.mxu0 0.0
    %2306 = vmatprep.subr.mxu0 0.0
    %2307 = vmatpush1.msra.mxu0 0.0
    %2308 = vmatprep.subr.mxu0 0.0
    %2309 = vmatpush1.msra.mxu0 0.0
    %2310 = vmatprep.subr.mxu0 0.0
    %2311 = vmatpush1.msra.mxu0 0.0
    %2312 = vmatprep.subr.mxu0 0.0
    %2313 = vmatpush1.msra.mxu0 0.0
    %2314 = vmatprep.subr.mxu0 0.0
    %2315 = vmatpush1.msra.mxu0 0.0
    %2316 = vmatprep.subr.mxu0 0.0
    %2317 = vmatpush1.msra.mxu0 0.0
    %2318 = vmatprep.subr.mxu0 0.0
    %2319 = vmatpush1.msra.mxu0 0.0
    %2320 = vmatprep.subr.mxu0 0.0
    %2321 = vmatpush1.msra.mxu0 0.0
    %2322 = vmatprep.subr.mxu0 0.0
    %2323 = vmatpush1.msra.mxu0 0.0
    %2324 = vmatprep.subr.mxu0 0.0
    %2325 = vmatpush1.msra.mxu0 0.0
    %2326 = vmatprep.subr.mxu0 0.0
    %2327 = vmatpush1.msra.mxu0 0.0
    %2328 = vmatprep.subr.mxu0 0.0
    %2329 = vmatpush1.msra.mxu0 0.0
    %2330 = vmatprep.subr.mxu0 0.0
    %2331 = vmatpush1.msra.mxu0 0.0
    %2332 = vmatprep.subr.mxu0 0.0
    %2333 = vmatpush1.msra.mxu0 0.0
    %2334 = vmatprep.subr.mxu0 0.0
    %2335 = vmatpush1.msra.mxu0 0.0
    %2336 = vmatprep.subr.mxu0 0.0
    %2337 = vmatpush1.msra.mxu0 0.0
    %2338 = vmatprep.mubr.f32.mxu0 0.0
    %2339 = vmatmul.mubr.f32.gmra.mrb[0].mxu0 %v2272
    %v2340 = vpop.f32.mrb[0].mxu0
    %v2341 = vadd.f32 0.0, %v2340
    %v2342 = vpop.f32.mrb[0].mxu0
    %2343 = vdwg.mxu0
    %v2344 = vmul.f32 %v2113, %v2036
    %v2345 = vmul.f32 %v2189, %v2037
    %v2346 = vmul.f32 %v2265, %v2038
    %v2347 = vmul.f32 %v2341, %v2039
    %v2348 = vld [vmem:[#allocation7 + $0x10] sm:$0xff]
    %v2350 = vsel %vm178, %v2344, 0
    %v2353 = vsel %vm178, %v2345, 0
    %v2356 = vsel %vm178, %v2346, 0
    %v2359 = vsel %vm178, %v2347, 0
    %2361 = vmatprep.subr.mxu0 0.0
    %2362 = vmatpush1.msra.mxu0 %v2348
    %2363 = vmatprep.subr.mxu0 0.0
    %2364 = vmatpush1.msra.mxu0 0.0
    %2365 = vmatprep.subr.mxu0 0.0
    %2366 = vmatpush1.msra.mxu0 0.0
    %2367 = vmatprep.subr.mxu0 0.0
    %2368 = vmatpush1.msra.mxu0 0.0
    %2369 = vmatprep.subr.mxu0 0.0
    %2370 = vmatpush1.msra.mxu0 0.0
    %2371 = vmatprep.subr.mxu0 0.0
    %2372 = vmatpush1.msra.mxu0 0.0
    %2373 = vmatprep.subr.mxu0 0.0
    %2374 = vmatpush1.msra.mxu0 0.0
    %2375 = vmatprep.subr.mxu0 0.0
    %2376 = vmatpush1.msra.mxu0 0.0
    %2377 = vmatprep.subr.mxu0 0.0
    %2378 = vmatpush1.msra.mxu0 0.0
    %2379 = vmatprep.subr.mxu0 0.0
    %2380 = vmatpush1.msra.mxu0 0.0
    %2381 = vmatprep.subr.mxu0 0.0
    %2382 = vmatpush1.msra.mxu0 0.0
    %2383 = vmatprep.subr.mxu0 0.0
    %2384 = vmatpush1.msra.mxu0 0.0
    %2385 = vmatprep.subr.mxu0 0.0
    %2386 = vmatpush1.msra.mxu0 0.0
    %2387 = vmatprep.subr.mxu0 0.0
    %2388 = vmatpush1.msra.mxu0 0.0
    %2389 = vmatprep.subr.mxu0 0.0
    %2390 = vmatpush1.msra.mxu0 0.0
    %2391 = vmatprep.subr.mxu0 0.0
    %2392 = vmatpush1.msra.mxu0 0.0
    %2393 = vmatprep.subr.mxu0 0.0
    %2394 = vmatpush1.msra.mxu0 0.0
    %2395 = vmatprep.subr.mxu0 0.0
    %2396 = vmatpush1.msra.mxu0 0.0
    %2397 = vmatprep.subr.mxu0 0.0
    %2398 = vmatpush1.msra.mxu0 0.0
    %2399 = vmatprep.subr.mxu0 0.0
    %2400 = vmatpush1.msra.mxu0 0.0
    %2401 = vmatprep.subr.mxu0 0.0
    %2402 = vmatpush1.msra.mxu0 0.0
    %2403 = vmatprep.subr.mxu0 0.0
    %2404 = vmatpush1.msra.mxu0 0.0
    %2405 = vmatprep.subr.mxu0 0.0
    %2406 = vmatpush1.msra.mxu0 0.0
    %2407 = vmatprep.subr.mxu0 0.0
    %2408 = vmatpush1.msra.mxu0 0.0
    %2409 = vmatprep.subr.mxu0 0.0
    %2410 = vmatpush1.msra.mxu0 0.0
    %2411 = vmatprep.subr.mxu0 0.0
    %2412 = vmatpush1.msra.mxu0 0.0
    %2413 = vmatprep.subr.mxu0 0.0
    %2414 = vmatpush1.msra.mxu0 0.0
    %2415 = vmatprep.subr.mxu0 0.0
    %2416 = vmatpush1.msra.mxu0 0.0
    %2417 = vmatprep.subr.mxu0 0.0
    %2418 = vmatpush1.msra.mxu0 0.0
    %2419 = vmatprep.subr.mxu0 0.0
    %2420 = vmatpush1.msra.mxu0 0.0
    %2421 = vmatprep.subr.mxu0 0.0
    %2422 = vmatpush1.msra.mxu0 0.0
    %2423 = vmatprep.subr.mxu0 0.0
    %2424 = vmatpush1.msra.mxu0 0.0
    %2425 = vmatprep.mubr.f32.mxu0 0.0
    %2426 = vmatmul.mubr.f32.gmra.mrb[0].mxu0 %v2350
    %v2427 = vpop.f32.mrb[0].mxu0
    %v2428 = vadd.f32 0.0, %v2427
    %v2429 = vpop.f32.mrb[0].mxu0
    %2430 = vmatprep.mubr.f32.mxu0 0.0
    %2431 = vmatmul.mubr.f32.gmra.mrb[0].mxu0 %v2353
    %v2432 = vpop.f32.mrb[0].mxu0
    %v2433 = vadd.f32 0.0, %v2432
    %v2434 = vpop.f32.mrb[0].mxu0
    %2435 = vmatprep.mubr.f32.mxu0 0.0
    %2436 = vmatmul.mubr.f32.gmra.mrb[0].mxu0 %v2356
    %v2437 = vpop.f32.mrb[0].mxu0
    %v2438 = vadd.f32 0.0, %v2437
    %v2439 = vpop.f32.mrb[0].mxu0
    %2440 = vmatprep.mubr.f32.mxu0 0.0
    %2441 = vmatmul.mubr.f32.gmra.mrb[0].mxu0 %v2359
    %v2442 = vpop.f32.mrb[0].mxu0
    %v2443 = vadd.f32 0.0, %v2442
    %v2444 = vpop.f32.mrb[0].mxu0
    %2445 = vdwg.mxu0
    %v2446 = vadd.f32 %v1670, %v2428
    %v2447 = vadd.f32 %v1675, %v2433
    %v2448 = vadd.f32 %v1680, %v2438
    %v2449 = vadd.f32 %v1685, %v2443
    %2450 = vrot.lane.b32.xlu0 %v157, 104
    %v2451 = vpop.permute.xlu0 %2450
    %2452 = vrot.lane.b32.xlu0 %v157, 72
    %v2453 = vpop.permute.xlu0 %2452
    %v2454 = vsel %vm178, %v2451, 0
    %v2456 = vsel %vm178, %v2453, 0
    %2458 = vmatprep.subr.mxu0 0.0
    %2459 = vmatpush1.xpose.msra.mxu0 %v2456
    %2460 = vmatprep.subr.mxu0 0.0
    %2461 = vmatpush1.xpose.msra.mxu0 0.0
    %2462 = vmatprep.subr.mxu0 0.0
    %2463 = vmatpush1.xpose.msra.mxu0 0.0
    %2464 = vmatprep.subr.mxu0 0.0
    %2465 = vmatpush1.xpose.msra.mxu0 0.0
    %2466 = vmatprep.subr.mxu0 0.0
    %2467 = vmatpush1.xpose.msra.mxu0 0.0
    %2468 = vmatprep.subr.mxu0 0.0
    %2469 = vmatpush1.xpose.msra.mxu0 0.0
    %2470 = vmatprep.subr.mxu0 0.0
    %2471 = vmatpush1.xpose.msra.mxu0 0.0
    %2472 = vmatprep.subr.mxu0 0.0
    %2473 = vmatpush1.xpose.msra.mxu0 0.0
    %2474 = vmatprep.subr.mxu0 0.0
    %2475 = vmatpush1.xpose.msra.mxu0 0.0
    %2476 = vmatprep.subr.mxu0 0.0
    %2477 = vmatpush1.xpose.msra.mxu0 0.0
    %2478 = vmatprep.subr.mxu0 0.0
    %2479 = vmatpush1.xpose.msra.mxu0 0.0
    %2480 = vmatprep.subr.mxu0 0.0
    %2481 = vmatpush1.xpose.msra.mxu0 0.0
    %2482 = vmatprep.subr.mxu0 0.0
    %2483 = vmatpush1.xpose.msra.mxu0 0.0
    %2484 = vmatprep.subr.mxu0 0.0
    %2485 = vmatpush1.xpose.msra.mxu0 0.0
    %2486 = vmatprep.subr.mxu0 0.0
    %2487 = vmatpush1.xpose.msra.mxu0 0.0
    %2488 = vmatprep.subr.mxu0 0.0
    %2489 = vmatpush1.xpose.msra.mxu0 0.0
    %2490 = vmatprep.subr.mxu0 0.0
    %2491 = vmatpush1.xpose.msra.mxu0 0.0
    %2492 = vmatprep.subr.mxu0 0.0
    %2493 = vmatpush1.xpose.msra.mxu0 0.0
    %2494 = vmatprep.subr.mxu0 0.0
    %2495 = vmatpush1.xpose.msra.mxu0 0.0
    %2496 = vmatprep.subr.mxu0 0.0
    %2497 = vmatpush1.xpose.msra.mxu0 0.0
    %2498 = vmatprep.subr.mxu0 0.0
    %2499 = vmatpush1.xpose.msra.mxu0 0.0
    %2500 = vmatprep.subr.mxu0 0.0
    %2501 = vmatpush1.xpose.msra.mxu0 0.0
    %2502 = vmatprep.subr.mxu0 0.0
    %2503 = vmatpush1.xpose.msra.mxu0 0.0
    %2504 = vmatprep.subr.mxu0 0.0
    %2505 = vmatpush1.xpose.msra.mxu0 0.0
    %2506 = vmatprep.subr.mxu0 0.0
    %2507 = vmatpush1.xpose.msra.mxu0 0.0
    %2508 = vmatprep.subr.mxu0 0.0
    %2509 = vmatpush1.xpose.msra.mxu0 0.0
    %2510 = vmatprep.subr.mxu0 0.0
    %2511 = vmatpush1.xpose.msra.mxu0 0.0
    %2512 = vmatprep.subr.mxu0 0.0
    %2513 = vmatpush1.xpose.msra.mxu0 0.0
    %2514 = vmatprep.subr.mxu0 0.0
    %2515 = vmatpush1.xpose.msra.mxu0 0.0
    %2516 = vmatprep.subr.mxu0 0.0
    %2517 = vmatpush1.xpose.msra.mxu0 0.0
    %2518 = vmatprep.subr.mxu0 0.0
    %2519 = vmatpush1.xpose.msra.mxu0 0.0
    %2520 = vmatprep.subr.mxu0 0.0
    %2521 = vmatpush1.xpose.msra.mxu0 0.0
    %2522 = vmatprep.mubr.f32.mxu0 0.0
    %2523 = vmatmul.mubr.f32.gmra.mrb[0].mxu0 %v2454
    %v2524 = vpop.f32.mrb[0].mxu0
    %v2525 = vadd.f32 0.0, %v2524
    %v2526 = vpop.f32.mrb[0].mxu0
    %2527 = vdwg.mxu0
    %2528 = vrot.lane.b32.xlu0 %v162, 104
    %v2529 = vpop.permute.xlu0 %2528
    %2530 = vrot.lane.b32.xlu0 %v162, 72
    %v2531 = vpop.permute.xlu0 %2530
    %v2532 = vsel %vm178, %v2529, 0
    %v2534 = vsel %vm178, %v2531, 0
    %2536 = vmatprep.subr.mxu0 0.0
    %2537 = vmatpush1.xpose.msra.mxu0 %v2534
    %2538 = vmatprep.subr.mxu0 0.0
    %2539 = vmatpush1.xpose.msra.mxu0 0.0
    %2540 = vmatprep.subr.mxu0 0.0
    %2541 = vmatpush1.xpose.msra.mxu0 0.0
    %2542 = vmatprep.subr.mxu0 0.0
    %2543 = vmatpush1.xpose.msra.mxu0 0.0
    %2544 = vmatprep.subr.mxu0 0.0
    %2545 = vmatpush1.xpose.msra.mxu0 0.0
    %2546 = vmatprep.subr.mxu0 0.0
    %2547 = vmatpush1.xpose.msra.mxu0 0.0
    %2548 = vmatprep.subr.mxu0 0.0
    %2549 = vmatpush1.xpose.msra.mxu0 0.0
    %2550 = vmatprep.subr.mxu0 0.0
    %2551 = vmatpush1.xpose.msra.mxu0 0.0
    %2552 = vmatprep.subr.mxu0 0.0
    %2553 = vmatpush1.xpose.msra.mxu0 0.0
    %2554 = vmatprep.subr.mxu0 0.0
    %2555 = vmatpush1.xpose.msra.mxu0 0.0
    %2556 = vmatprep.subr.mxu0 0.0
    %2557 = vmatpush1.xpose.msra.mxu0 0.0
    %2558 = vmatprep.subr.mxu0 0.0
    %2559 = vmatpush1.xpose.msra.mxu0 0.0
    %2560 = vmatprep.subr.mxu0 0.0
    %2561 = vmatpush1.xpose.msra.mxu0 0.0
    %2562 = vmatprep.subr.mxu0 0.0
    %2563 = vmatpush1.xpose.msra.mxu0 0.0
    %2564 = vmatprep.subr.mxu0 0.0
    %2565 = vmatpush1.xpose.msra.mxu0 0.0
    %2566 = vmatprep.subr.mxu0 0.0
    %2567 = vmatpush1.xpose.msra.mxu0 0.0
    %2568 = vmatprep.subr.mxu0 0.0
    %2569 = vmatpush1.xpose.msra.mxu0 0.0
    %2570 = vmatprep.subr.mxu0 0.0
    %2571 = vmatpush1.xpose.msra.mxu0 0.0
    %2572 = vmatprep.subr.mxu0 0.0
    %2573 = vmatpush1.xpose.msra.mxu0 0.0
    %2574 = vmatprep.subr.mxu0 0.0
    %2575 = vmatpush1.xpose.msra.mxu0 0.0
    %2576 = vmatprep.subr.mxu0 0.0
    %2577 = vmatpush1.xpose.msra.mxu0 0.0
    %2578 = vmatprep.subr.mxu0 0.0
    %2579 = vmatpush1.xpose.msra.mxu0 0.0
    %2580 = vmatprep.subr.mxu0 0.0
    %2581 = vmatpush1.xpose.msra.mxu0 0.0
    %2582 = vmatprep.subr.mxu0 0.0
    %2583 = vmatpush1.xpose.msra.mxu0 0.0
    %2584 = vmatprep.subr.mxu0 0.0
    %2585 = vmatpush1.xpose.msra.mxu0 0.0
    %2586 = vmatprep.subr.mxu0 0.0
    %2587 = vmatpush1.xpose.msra.mxu0 0.0
    %2588 = vmatprep.subr.mxu0 0.0
    %2589 = vmatpush1.xpose.msra.mxu0 0.0
    %2590 = vmatprep.subr.mxu0 0.0
    %2591 = vmatpush1.xpose.msra.mxu0 0.0
    %2592 = vmatprep.subr.mxu0 0.0
    %2593 = vmatpush1.xpose.msra.mxu0 0.0
    %2594 = vmatprep.subr.mxu0 0.0
    %2595 = vmatpush1.xpose.msra.mxu0 0.0
    %2596 = vmatprep.subr.mxu0 0.0
    %2597 = vmatpush1.xpose.msra.mxu0 0.0
    %2598 = vmatprep.subr.mxu0 0.0
    %2599 = vmatpush1.xpose.msra.mxu0 0.0
    %2600 = vmatprep.mubr.f32.mxu0 0.0
    %2601 = vmatmul.mubr.f32.gmra.mrb[0].mxu0 %v2532
    %v2602 = vpop.f32.mrb[0].mxu0
    %v2603 = vadd.f32 0.0, %v2602
    %v2604 = vpop.f32.mrb[0].mxu0
    %2605 = vdwg.mxu0
    %2606 = vrot.lane.b32.xlu0 %v167, 104
    %v2607 = vpop.permute.xlu0 %2606
    %2608 = vrot.lane.b32.xlu0 %v167, 72
    %v2609 = vpop.permute.xlu0 %2608
    %v2610 = vsel %vm178, %v2607, 0
    %v2612 = vsel %vm178, %v2609, 0
    %2614 = vmatprep.subr.mxu0 0.0
    %2615 = vmatpush1.xpose.msra.mxu0 %v2612
    %2616 = vmatprep.subr.mxu0 0.0
    %2617 = vmatpush1.xpose.msra.mxu0 0.0
    %2618 = vmatprep.subr.mxu0 0.0
    %2619 = vmatpush1.xpose.msra.mxu0 0.0
    %2620 = vmatprep.subr.mxu0 0.0
    %2621 = vmatpush1.xpose.msra.mxu0 0.0
    %2622 = vmatprep.subr.mxu0 0.0
    %2623 = vmatpush1.xpose.msra.mxu0 0.0
    %2624 = vmatprep.subr.mxu0 0.0
    %2625 = vmatpush1.xpose.msra.mxu0 0.0
    %2626 = vmatprep.subr.mxu0 0.0
    %2627 = vmatpush1.xpose.msra.mxu0 0.0
    %2628 = vmatprep.subr.mxu0 0.0
    %2629 = vmatpush1.xpose.msra.mxu0 0.0
    %2630 = vmatprep.subr.mxu0 0.0
    %2631 = vmatpush1.xpose.msra.mxu0 0.0
    %2632 = vmatprep.subr.mxu0 0.0
    %2633 = vmatpush1.xpose.msra.mxu0 0.0
    %2634 = vmatprep.subr.mxu0 0.0
    %2635 = vmatpush1.xpose.msra.mxu0 0.0
    %2636 = vmatprep.subr.mxu0 0.0
    %2637 = vmatpush1.xpose.msra.mxu0 0.0
    %2638 = vmatprep.subr.mxu0 0.0
    %2639 = vmatpush1.xpose.msra.mxu0 0.0
    %2640 = vmatprep.subr.mxu0 0.0
    %2641 = vmatpush1.xpose.msra.mxu0 0.0
    %2642 = vmatprep.subr.mxu0 0.0
    %2643 = vmatpush1.xpose.msra.mxu0 0.0
    %2644 = vmatprep.subr.mxu0 0.0
    %2645 = vmatpush1.xpose.msra.mxu0 0.0
    %2646 = vmatprep.subr.mxu0 0.0
    %2647 = vmatpush1.xpose.msra.mxu0 0.0
    %2648 = vmatprep.subr.mxu0 0.0
    %2649 = vmatpush1.xpose.msra.mxu0 0.0
    %2650 = vmatprep.subr.mxu0 0.0
    %2651 = vmatpush1.xpose.msra.mxu0 0.0
    %2652 = vmatprep.subr.mxu0 0.0
    %2653 = vmatpush1.xpose.msra.mxu0 0.0
    %2654 = vmatprep.subr.mxu0 0.0
    %2655 = vmatpush1.xpose.msra.mxu0 0.0
    %2656 = vmatprep.subr.mxu0 0.0
    %2657 = vmatpush1.xpose.msra.mxu0 0.0
    %2658 = vmatprep.subr.mxu0 0.0
    %2659 = vmatpush1.xpose.msra.mxu0 0.0
    %2660 = vmatprep.subr.mxu0 0.0
    %2661 = vmatpush1.xpose.msra.mxu0 0.0
    %2662 = vmatprep.subr.mxu0 0.0
    %2663 = vmatpush1.xpose.msra.mxu0 0.0
    %2664 = vmatprep.subr.mxu0 0.0
    %2665 = vmatpush1.xpose.msra.mxu0 0.0
    %2666 = vmatprep.subr.mxu0 0.0
    %2667 = vmatpush1.xpose.msra.mxu0 0.0
    %2668 = vmatprep.subr.mxu0 0.0
    %2669 = vmatpush1.xpose.msra.mxu0 0.0
    %2670 = vmatprep.subr.mxu0 0.0
    %2671 = vmatpush1.xpose.msra.mxu0 0.0
    %2672 = vmatprep.subr.mxu0 0.0
    %2673 = vmatpush1.xpose.msra.mxu0 0.0
    %2674 = vmatprep.subr.mxu0 0.0
    %2675 = vmatpush1.xpose.msra.mxu0 0.0
    %2676 = vmatprep.subr.mxu0 0.0
    %2677 = vmatpush1.xpose.msra.mxu0 0.0
    %2678 = vmatprep.mubr.f32.mxu0 0.0
    %2679 = vmatmul.mubr.f32.gmra.mrb[0].mxu0 %v2610
    %v2680 = vpop.f32.mrb[0].mxu0
    %v2681 = vadd.f32 0.0, %v2680
    %v2682 = vpop.f32.mrb[0].mxu0
    %2683 = vdwg.mxu0
    %2684 = vrot.lane.b32.xlu0 %v172, 104
    %v2685 = vpop.permute.xlu0 %2684
    %2686 = vrot.lane.b32.xlu0 %v172, 72
    %v2687 = vpop.permute.xlu0 %2686
    %v2688 = vsel %vm178, %v2685, 0
    %v2690 = vsel %vm178, %v2687, 0
    %2692 = vmatprep.subr.mxu0 0.0
    %2693 = vmatpush1.xpose.msra.mxu0 %v2690
    %2694 = vmatprep.subr.mxu0 0.0
    %2695 = vmatpush1.xpose.msra.mxu0 0.0
    %2696 = vmatprep.subr.mxu0 0.0
    %2697 = vmatpush1.xpose.msra.mxu0 0.0
    %2698 = vmatprep.subr.mxu0 0.0
    %2699 = vmatpush1.xpose.msra.mxu0 0.0
    %2700 = vmatprep.subr.mxu0 0.0
    %2701 = vmatpush1.xpose.msra.mxu0 0.0
    %2702 = vmatprep.subr.mxu0 0.0
    %2703 = vmatpush1.xpose.msra.mxu0 0.0
    %2704 = vmatprep.subr.mxu0 0.0
    %2705 = vmatpush1.xpose.msra.mxu0 0.0
    %2706 = vmatprep.subr.mxu0 0.0
    %2707 = vmatpush1.xpose.msra.mxu0 0.0
    %2708 = vmatprep.subr.mxu0 0.0
    %2709 = vmatpush1.xpose.msra.mxu0 0.0
    %2710 = vmatprep.subr.mxu0 0.0
    %2711 = vmatpush1.xpose.msra.mxu0 0.0
    %2712 = vmatprep.subr.mxu0 0.0
    %2713 = vmatpush1.xpose.msra.mxu0 0.0
    %2714 = vmatprep.subr.mxu0 0.0
    %2715 = vmatpush1.xpose.msra.mxu0 0.0
    %2716 = vmatprep.subr.mxu0 0.0
    %2717 = vmatpush1.xpose.msra.mxu0 0.0
    %2718 = vmatprep.subr.mxu0 0.0
    %2719 = vmatpush1.xpose.msra.mxu0 0.0
    %2720 = vmatprep.subr.mxu0 0.0
    %2721 = vmatpush1.xpose.msra.mxu0 0.0
    %2722 = vmatprep.subr.mxu0 0.0
    %2723 = vmatpush1.xpose.msra.mxu0 0.0
    %2724 = vmatprep.subr.mxu0 0.0
    %2725 = vmatpush1.xpose.msra.mxu0 0.0
    %2726 = vmatprep.subr.mxu0 0.0
    %2727 = vmatpush1.xpose.msra.mxu0 0.0
    %2728 = vmatprep.subr.mxu0 0.0
    %2729 = vmatpush1.xpose.msra.mxu0 0.0
    %2730 = vmatprep.subr.mxu0 0.0
    %2731 = vmatpush1.xpose.msra.mxu0 0.0
    %2732 = vmatprep.subr.mxu0 0.0
    %2733 = vmatpush1.xpose.msra.mxu0 0.0
    %2734 = vmatprep.subr.mxu0 0.0
    %2735 = vmatpush1.xpose.msra.mxu0 0.0
    %2736 = vmatprep.subr.mxu0 0.0
    %2737 = vmatpush1.xpose.msra.mxu0 0.0
    %2738 = vmatprep.subr.mxu0 0.0
    %2739 = vmatpush1.xpose.msra.mxu0 0.0
    %2740 = vmatprep.subr.mxu0 0.0
    %2741 = vmatpush1.xpose.msra.mxu0 0.0
    %2742 = vmatprep.subr.mxu0 0.0
    %2743 = vmatpush1.xpose.msra.mxu0 0.0
    %2744 = vmatprep.subr.mxu0 0.0
    %2745 = vmatpush1.xpose.msra.mxu0 0.0
    %2746 = vmatprep.subr.mxu0 0.0
    %2747 = vmatpush1.xpose.msra.mxu0 0.0
    %2748 = vmatprep.subr.mxu0 0.0
    %2749 = vmatpush1.xpose.msra.mxu0 0.0
    %2750 = vmatprep.subr.mxu0 0.0
    %2751 = vmatpush1.xpose.msra.mxu0 0.0
    %2752 = vmatprep.subr.mxu0 0.0
    %2753 = vmatpush1.xpose.msra.mxu0 0.0
    %2754 = vmatprep.subr.mxu0 0.0
    %2755 = vmatpush1.xpose.msra.mxu0 0.0
    %2756 = vmatprep.mubr.f32.mxu0 0.0
    %2757 = vmatmul.mubr.f32.gmra.mrb[0].mxu0 %v2688
    %v2758 = vpop.f32.mrb[0].mxu0
    %v2759 = vadd.f32 0.0, %v2758
    %v2760 = vpop.f32.mrb[0].mxu0
    %2761 = vdwg.mxu0
    %v2762 = vsel %vm178, %v2525, -inf
    %2763 = vmax.xlane.f32.xlu0 %v2762
    %v2764 = vpop.xlane.xlu0 %2763
    %v2765 = vsel %vm178, %v2603, -inf
    %2766 = vmax.xlane.f32.xlu0 %v2765
    %v2767 = vpop.xlane.xlu0 %2766
    %v2768 = vsel %vm178, %v2681, -inf
    %2769 = vmax.xlane.f32.xlu0 %v2768
    %v2770 = vpop.xlane.xlu0 %2769
    %v2771 = vsel %vm178, %v2759, -inf
    %2772 = vmax.xlane.f32.xlu0 %v2771
    %v2773 = vpop.xlane.xlu0 %2772
    %v2774 = vsub.f32 %v2525, %v2764
    %v2775 = vsub.f32 %v2603, %v2767
    %v2776 = vsub.f32 %v2681, %v2770
    %v2777 = vsub.f32 %v2759, %v2773
    %v2778 = vmul.f32 %v2774, 1.442695
    %v2779 = vpow.pop %v2778
    %v2780 = vmul.f32 %v2775, 1.442695
    %v2781 = vpow.pop %v2780
    %v2782 = vmul.f32 %v2776, 1.442695
    %v2783 = vpow.pop %v2782
    %v2784 = vmul.f32 %v2777, 1.442695
    %v2785 = vpow.pop %v2784
    %v2786 = vsel %vm178, %v2779, 0.0
    %2787 = vadd.xlane.f32.xlu0 %v2786
    %v2788 = vpop.xlane.xlu0 %2787
    %v2789 = vsel %vm178, %v2781, 0.0
    %2790 = vadd.xlane.f32.xlu0 %v2789
    %v2791 = vpop.xlane.xlu0 %2790
    %v2792 = vsel %vm178, %v2783, 0.0
    %2793 = vadd.xlane.f32.xlu0 %v2792
    %v2794 = vpop.xlane.xlu0 %2793
    %v2795 = vsel %vm178, %v2785, 0.0
    %2796 = vadd.xlane.f32.xlu0 %v2795
    %v2797 = vpop.xlane.xlu0 %2796
    %v2798 = vrcp.pop %v2788
    %v2799 = vrcp.pop %v2791
    %v2800 = vrcp.pop %v2794
    %v2801 = vrcp.pop %v2797
    %2802 = vrot.lane.b32.xlu0 %v157, 40
    %v2803 = vpop.permute.xlu0 %2802
    %v2806 = vsel %vm178, %v2779, 0
    %2808 = vmatprep.subr.mxu0 0.0
    %2809 = vmatpush1.msra.mxu0 %v2803
    %2810 = vmatprep.subr.mxu0 0.0
    %2811 = vmatpush1.msra.mxu0 0.0
    %2812 = vmatprep.subr.mxu0 0.0
    %2813 = vmatpush1.msra.mxu0 0.0
    %2814 = vmatprep.subr.mxu0 0.0
    %2815 = vmatpush1.msra.mxu0 0.0
    %2816 = vmatprep.subr.mxu0 0.0
    %2817 = vmatpush1.msra.mxu0 0.0
    %2818 = vmatprep.subr.mxu0 0.0
    %2819 = vmatpush1.msra.mxu0 0.0
    %2820 = vmatprep.subr.mxu0 0.0
    %2821 = vmatpush1.msra.mxu0 0.0
    %2822 = vmatprep.subr.mxu0 0.0
    %2823 = vmatpush1.msra.mxu0 0.0
    %2824 = vmatprep.subr.mxu0 0.0
    %2825 = vmatpush1.msra.mxu0 0.0
    %2826 = vmatprep.subr.mxu0 0.0
    %2827 = vmatpush1.msra.mxu0 0.0
    %2828 = vmatprep.subr.mxu0 0.0
    %2829 = vmatpush1.msra.mxu0 0.0
    %2830 = vmatprep.subr.mxu0 0.0
    %2831 = vmatpush1.msra.mxu0 0.0
    %2832 = vmatprep.subr.mxu0 0.0
    %2833 = vmatpush1.msra.mxu0 0.0
    %2834 = vmatprep.subr.mxu0 0.0
    %2835 = vmatpush1.msra.mxu0 0.0
    %2836 = vmatprep.subr.mxu0 0.0
    %2837 = vmatpush1.msra.mxu0 0.0
    %2838 = vmatprep.subr.mxu0 0.0
    %2839 = vmatpush1.msra.mxu0 0.0
    %2840 = vmatprep.subr.mxu0 0.0
    %2841 = vmatpush1.msra.mxu0 0.0
    %2842 = vmatprep.subr.mxu0 0.0
    %2843 = vmatpush1.msra.mxu0 0.0
    %2844 = vmatprep.subr.mxu0 0.0
    %2845 = vmatpush1.msra.mxu0 0.0
    %2846 = vmatprep.subr.mxu0 0.0
    %2847 = vmatpush1.msra.mxu0 0.0
    %2848 = vmatprep.subr.mxu0 0.0
    %2849 = vmatpush1.msra.mxu0 0.0
    %2850 = vmatprep.subr.mxu0 0.0
    %2851 = vmatpush1.msra.mxu0 0.0
    %2852 = vmatprep.subr.mxu0 0.0
    %2853 = vmatpush1.msra.mxu0 0.0
    %2854 = vmatprep.subr.mxu0 0.0
    %2855 = vmatpush1.msra.mxu0 0.0
    %2856 = vmatprep.subr.mxu0 0.0
    %2857 = vmatpush1.msra.mxu0 0.0
    %2858 = vmatprep.subr.mxu0 0.0
    %2859 = vmatpush1.msra.mxu0 0.0
    %2860 = vmatprep.subr.mxu0 0.0
    %2861 = vmatpush1.msra.mxu0 0.0
    %2862 = vmatprep.subr.mxu0 0.0
    %2863 = vmatpush1.msra.mxu0 0.0
    %2864 = vmatprep.subr.mxu0 0.0
    %2865 = vmatpush1.msra.mxu0 0.0
    %2866 = vmatprep.subr.mxu0 0.0
    %2867 = vmatpush1.msra.mxu0 0.0
    %2868 = vmatprep.subr.mxu0 0.0
    %2869 = vmatpush1.msra.mxu0 0.0
    %2870 = vmatprep.subr.mxu0 0.0
    %2871 = vmatpush1.msra.mxu0 0.0
    %2872 = vmatprep.mubr.f32.mxu0 0.0
    %2873 = vmatmul.mubr.f32.gmra.mrb[0].mxu0 %v2806
    %v2874 = vpop.f32.mrb[0].mxu0
    %v2875 = vadd.f32 0.0, %v2874
    %v2876 = vpop.f32.mrb[0].mxu0
    %2877 = vdwg.mxu0
    %2878 = vrot.lane.b32.xlu0 %v162, 40
    %v2879 = vpop.permute.xlu0 %2878
    %v2882 = vsel %vm178, %v2781, 0
    %2884 = vmatprep.subr.mxu0 0.0
    %2885 = vmatpush1.msra.mxu0 %v2879
    %2886 = vmatprep.subr.mxu0 0.0
    %2887 = vmatpush1.msra.mxu0 0.0
    %2888 = vmatprep.subr.mxu0 0.0
    %2889 = vmatpush1.msra.mxu0 0.0
    %2890 = vmatprep.subr.mxu0 0.0
    %2891 = vmatpush1.msra.mxu0 0.0
    %2892 = vmatprep.subr.mxu0 0.0
    %2893 = vmatpush1.msra.mxu0 0.0
    %2894 = vmatprep.subr.mxu0 0.0
    %2895 = vmatpush1.msra.mxu0 0.0
    %2896 = vmatprep.subr.mxu0 0.0
    %2897 = vmatpush1.msra.mxu0 0.0
    %2898 = vmatprep.subr.mxu0 0.0
    %2899 = vmatpush1.msra.mxu0 0.0
    %2900 = vmatprep.subr.mxu0 0.0
    %2901 = vmatpush1.msra.mxu0 0.0
    %2902 = vmatprep.subr.mxu0 0.0
    %2903 = vmatpush1.msra.mxu0 0.0
    %2904 = vmatprep.subr.mxu0 0.0
    %2905 = vmatpush1.msra.mxu0 0.0
    %2906 = vmatprep.subr.mxu0 0.0
    %2907 = vmatpush1.msra.mxu0 0.0
    %2908 = vmatprep.subr.mxu0 0.0
    %2909 = vmatpush1.msra.mxu0 0.0
    %2910 = vmatprep.subr.mxu0 0.0
    %2911 = vmatpush1.msra.mxu0 0.0
    %2912 = vmatprep.subr.mxu0 0.0
    %2913 = vmatpush1.msra.mxu0 0.0
    %2914 = vmatprep.subr.mxu0 0.0
    %2915 = vmatpush1.msra.mxu0 0.0
    %2916 = vmatprep.subr.mxu0 0.0
    %2917 = vmatpush1.msra.mxu0 0.0
    %2918 = vmatprep.subr.mxu0 0.0
    %2919 = vmatpush1.msra.mxu0 0.0
    %2920 = vmatprep.subr.mxu0 0.0
    %2921 = vmatpush1.msra.mxu0 0.0
    %2922 = vmatprep.subr.mxu0 0.0
    %2923 = vmatpush1.msra.mxu0 0.0
    %2924 = vmatprep.subr.mxu0 0.0
    %2925 = vmatpush1.msra.mxu0 0.0
    %2926 = vmatprep.subr.mxu0 0.0
    %2927 = vmatpush1.msra.mxu0 0.0
    %2928 = vmatprep.subr.mxu0 0.0
    %2929 = vmatpush1.msra.mxu0 0.0
    %2930 = vmatprep.subr.mxu0 0.0
    %2931 = vmatpush1.msra.mxu0 0.0
    %2932 = vmatprep.subr.mxu0 0.0
    %2933 = vmatpush1.msra.mxu0 0.0
    %2934 = vmatprep.subr.mxu0 0.0
    %2935 = vmatpush1.msra.mxu0 0.0
    %2936 = vmatprep.subr.mxu0 0.0
    %2937 = vmatpush1.msra.mxu0 0.0
    %2938 = vmatprep.subr.mxu0 0.0
    %2939 = vmatpush1.msra.mxu0 0.0
    %2940 = vmatprep.subr.mxu0 0.0
    %2941 = vmatpush1.msra.mxu0 0.0
    %2942 = vmatprep.subr.mxu0 0.0
    %2943 = vmatpush1.msra.mxu0 0.0
    %2944 = vmatprep.subr.mxu0 0.0
    %2945 = vmatpush1.msra.mxu0 0.0
    %2946 = vmatprep.subr.mxu0 0.0
    %2947 = vmatpush1.msra.mxu0 0.0
    %2948 = vmatprep.mubr.f32.mxu0 0.0
    %2949 = vmatmul.mubr.f32.gmra.mrb[0].mxu0 %v2882
    %v2950 = vpop.f32.mrb[0].mxu0
    %v2951 = vadd.f32 0.0, %v2950
    %v2952 = vpop.f32.mrb[0].mxu0
    %2953 = vdwg.mxu0
    %2954 = vrot.lane.b32.xlu0 %v167, 40
    %v2955 = vpop.permute.xlu0 %2954
    %v2958 = vsel %vm178, %v2783, 0
    %2960 = vmatprep.subr.mxu0 0.0
    %2961 = vmatpush1.msra.mxu0 %v2955
    %2962 = vmatprep.subr.mxu0 0.0
    %2963 = vmatpush1.msra.mxu0 0.0
    %2964 = vmatprep.subr.mxu0 0.0
    %2965 = vmatpush1.msra.mxu0 0.0
    %2966 = vmatprep.subr.mxu0 0.0
    %2967 = vmatpush1.msra.mxu0 0.0
    %2968 = vmatprep.subr.mxu0 0.0
    %2969 = vmatpush1.msra.mxu0 0.0
    %2970 = vmatprep.subr.mxu0 0.0
    %2971 = vmatpush1.msra.mxu0 0.0
    %2972 = vmatprep.subr.mxu0 0.0
    %2973 = vmatpush1.msra.mxu0 0.0
    %2974 = vmatprep.subr.mxu0 0.0
    %2975 = vmatpush1.msra.mxu0 0.0
    %2976 = vmatprep.subr.mxu0 0.0
    %2977 = vmatpush1.msra.mxu0 0.0
    %2978 = vmatprep.subr.mxu0 0.0
    %2979 = vmatpush1.msra.mxu0 0.0
    %2980 = vmatprep.subr.mxu0 0.0
    %2981 = vmatpush1.msra.mxu0 0.0
    %2982 = vmatprep.subr.mxu0 0.0
    %2983 = vmatpush1.msra.mxu0 0.0
    %2984 = vmatprep.subr.mxu0 0.0
    %2985 = vmatpush1.msra.mxu0 0.0
    %2986 = vmatprep.subr.mxu0 0.0
    %2987 = vmatpush1.msra.mxu0 0.0
    %2988 = vmatprep.subr.mxu0 0.0
    %2989 = vmatpush1.msra.mxu0 0.0
    %2990 = vmatprep.subr.mxu0 0.0
    %2991 = vmatpush1.msra.mxu0 0.0
    %2992 = vmatprep.subr.mxu0 0.0
    %2993 = vmatpush1.msra.mxu0 0.0
    %2994 = vmatprep.subr.mxu0 0.0
    %2995 = vmatpush1.msra.mxu0 0.0
    %2996 = vmatprep.subr.mxu0 0.0
    %2997 = vmatpush1.msra.mxu0 0.0
    %2998 = vmatprep.subr.mxu0 0.0
    %2999 = vmatpush1.msra.mxu0 0.0
    %3000 = vmatprep.subr.mxu0 0.0
    %3001 = vmatpush1.msra.mxu0 0.0
    %3002 = vmatprep.subr.mxu0 0.0
    %3003 = vmatpush1.msra.mxu0 0.0
    %3004 = vmatprep.subr.mxu0 0.0
    %3005 = vmatpush1.msra.mxu0 0.0
    %3006 = vmatprep.subr.mxu0 0.0
    %3007 = vmatpush1.msra.mxu0 0.0
    %3008 = vmatprep.subr.mxu0 0.0
    %3009 = vmatpush1.msra.mxu0 0.0
    %3010 = vmatprep.subr.mxu0 0.0
    %3011 = vmatpush1.msra.mxu0 0.0
    %3012 = vmatprep.subr.mxu0 0.0
    %3013 = vmatpush1.msra.mxu0 0.0
    %3014 = vmatprep.subr.mxu0 0.0
    %3015 = vmatpush1.msra.mxu0 0.0
    %3016 = vmatprep.subr.mxu0 0.0
    %3017 = vmatpush1.msra.mxu0 0.0
    %3018 = vmatprep.subr.mxu0 0.0
    %3019 = vmatpush1.msra.mxu0 0.0
    %3020 = vmatprep.subr.mxu0 0.0
    %3021 = vmatpush1.msra.mxu0 0.0
    %3022 = vmatprep.subr.mxu0 0.0
    %3023 = vmatpush1.msra.mxu0 0.0
    %3024 = vmatprep.mubr.f32.mxu0 0.0
    %3025 = vmatmul.mubr.f32.gmra.mrb[0].mxu0 %v2958
    %v3026 = vpop.f32.mrb[0].mxu0
    %v3027 = vadd.f32 0.0, %v3026
    %v3028 = vpop.f32.mrb[0].mxu0
    %3029 = vdwg.mxu0
    %3030 = vrot.lane.b32.xlu0 %v172, 40
    %v3031 = vpop.permute.xlu0 %3030
    %v3034 = vsel %vm178, %v2785, 0
    %3036 = vmatprep.subr.mxu0 0.0
    %3037 = vmatpush1.msra.mxu0 %v3031
    %3038 = vmatprep.subr.mxu0 0.0
    %3039 = vmatpush1.msra.mxu0 0.0
    %3040 = vmatprep.subr.mxu0 0.0
    %3041 = vmatpush1.msra.mxu0 0.0
    %3042 = vmatprep.subr.mxu0 0.0
    %3043 = vmatpush1.msra.mxu0 0.0
    %3044 = vmatprep.subr.mxu0 0.0
    %3045 = vmatpush1.msra.mxu0 0.0
    %3046 = vmatprep.subr.mxu0 0.0
    %3047 = vmatpush1.msra.mxu0 0.0
    %3048 = vmatprep.subr.mxu0 0.0
    %3049 = vmatpush1.msra.mxu0 0.0
    %3050 = vmatprep.subr.mxu0 0.0
    %3051 = vmatpush1.msra.mxu0 0.0
    %3052 = vmatprep.subr.mxu0 0.0
    %3053 = vmatpush1.msra.mxu0 0.0
    %3054 = vmatprep.subr.mxu0 0.0
    %3055 = vmatpush1.msra.mxu0 0.0
    %3056 = vmatprep.subr.mxu0 0.0
    %3057 = vmatpush1.msra.mxu0 0.0
    %3058 = vmatprep.subr.mxu0 0.0
    %3059 = vmatpush1.msra.mxu0 0.0
    %3060 = vmatprep.subr.mxu0 0.0
    %3061 = vmatpush1.msra.mxu0 0.0
    %3062 = vmatprep.subr.mxu0 0.0
    %3063 = vmatpush1.msra.mxu0 0.0
    %3064 = vmatprep.subr.mxu0 0.0
    %3065 = vmatpush1.msra.mxu0 0.0
    %3066 = vmatprep.subr.mxu0 0.0
    %3067 = vmatpush1.msra.mxu0 0.0
    %3068 = vmatprep.subr.mxu0 0.0
    %3069 = vmatpush1.msra.mxu0 0.0
    %3070 = vmatprep.subr.mxu0 0.0
    %3071 = vmatpush1.msra.mxu0 0.0
    %3072 = vmatprep.subr.mxu0 0.0
    %3073 = vmatpush1.msra.mxu0 0.0
    %3074 = vmatprep.subr.mxu0 0.0
    %3075 = vmatpush1.msra.mxu0 0.0
    %3076 = vmatprep.subr.mxu0 0.0
    %3077 = vmatpush1.msra.mxu0 0.0
    %3078 = vmatprep.subr.mxu0 0.0
    %3079 = vmatpush1.msra.mxu0 0.0
    %3080 = vmatprep.subr.mxu0 0.0
    %3081 = vmatpush1.msra.mxu0 0.0
    %3082 = vmatprep.subr.mxu0 0.0
    %3083 = vmatpush1.msra.mxu0 0.0
    %3084 = vmatprep.subr.mxu0 0.0
    %3085 = vmatpush1.msra.mxu0 0.0
    %3086 = vmatprep.subr.mxu0 0.0
    %3087 = vmatpush1.msra.mxu0 0.0
    %3088 = vmatprep.subr.mxu0 0.0
    %3089 = vmatpush1.msra.mxu0 0.0
    %3090 = vmatprep.subr.mxu0 0.0
    %3091 = vmatpush1.msra.mxu0 0.0
    %3092 = vmatprep.subr.mxu0 0.0
    %3093 = vmatpush1.msra.mxu0 0.0
    %3094 = vmatprep.subr.mxu0 0.0
    %3095 = vmatpush1.msra.mxu0 0.0
    %3096 = vmatprep.subr.mxu0 0.0
    %3097 = vmatpush1.msra.mxu0 0.0
    %3098 = vmatprep.subr.mxu0 0.0
    %3099 = vmatpush1.msra.mxu0 0.0
    %3100 = vmatprep.mubr.f32.mxu0 0.0
    %3101 = vmatmul.mubr.f32.gmra.mrb[0].mxu0 %v3034
    %v3102 = vpop.f32.mrb[0].mxu0
    %v3103 = vadd.f32 0.0, %v3102
    %v3104 = vpop.f32.mrb[0].mxu0
    %3105 = vdwg.mxu0
    %v3106 = vmul.f32 %v2875, %v2798
    %v3107 = vmul.f32 %v2951, %v2799
    %v3108 = vmul.f32 %v3027, %v2800
    %v3109 = vmul.f32 %v3103, %v2801
    %v3110 = vld [vmem:[#allocation7 + $0x18] sm:$0xff]
    %v3112 = vsel %vm178, %v3106, 0
    %v3115 = vsel %vm178, %v3107, 0
    %v3118 = vsel %vm178, %v3108, 0
    %v3121 = vsel %vm178, %v3109, 0
    %3123 = vmatprep.subr.mxu0 0.0
    %3124 = vmatpush1.msra.mxu0 %v3110
    %3125 = vmatprep.subr.mxu0 0.0
    %3126 = vmatpush1.msra.mxu0 0.0
    %3127 = vmatprep.subr.mxu0 0.0
    %3128 = vmatpush1.msra.mxu0 0.0
    %3129 = vmatprep.subr.mxu0 0.0
    %3130 = vmatpush1.msra.mxu0 0.0
    %3131 = vmatprep.subr.mxu0 0.0
    %3132 = vmatpush1.msra.mxu0 0.0
    %3133 = vmatprep.subr.mxu0 0.0
    %3134 = vmatpush1.msra.mxu0 0.0
    %3135 = vmatprep.subr.mxu0 0.0
    %3136 = vmatpush1.msra.mxu0 0.0
    %3137 = vmatprep.subr.mxu0 0.0
    %3138 = vmatpush1.msra.mxu0 0.0
    %3139 = vmatprep.subr.mxu0 0.0
    %3140 = vmatpush1.msra.mxu0 0.0
    %3141 = vmatprep.subr.mxu0 0.0
    %3142 = vmatpush1.msra.mxu0 0.0
    %3143 = vmatprep.subr.mxu0 0.0
    %3144 = vmatpush1.msra.mxu0 0.0
    %3145 = vmatprep.subr.mxu0 0.0
    %3146 = vmatpush1.msra.mxu0 0.0
    %3147 = vmatprep.subr.mxu0 0.0
    %3148 = vmatpush1.msra.mxu0 0.0
    %3149 = vmatprep.subr.mxu0 0.0
    %3150 = vmatpush1.msra.mxu0 0.0
    %3151 = vmatprep.subr.mxu0 0.0
    %3152 = vmatpush1.msra.mxu0 0.0
    %3153 = vmatprep.subr.mxu0 0.0
    %3154 = vmatpush1.msra.mxu0 0.0
    %3155 = vmatprep.subr.mxu0 0.0
    %3156 = vmatpush1.msra.mxu0 0.0
    %3157 = vmatprep.subr.mxu0 0.0
    %3158 = vmatpush1.msra.mxu0 0.0
    %3159 = vmatprep.subr.mxu0 0.0
    %3160 = vmatpush1.msra.mxu0 0.0
    %3161 = vmatprep.subr.mxu0 0.0
    %3162 = vmatpush1.msra.mxu0 0.0
    %3163 = vmatprep.subr.mxu0 0.0
    %3164 = vmatpush1.msra.mxu0 0.0
    %3165 = vmatprep.subr.mxu0 0.0
    %3166 = vmatpush1.msra.mxu0 0.0
    %3167 = vmatprep.subr.mxu0 0.0
    %3168 = vmatpush1.msra.mxu0 0.0
    %3169 = vmatprep.subr.mxu0 0.0
    %3170 = vmatpush1.msra.mxu0 0.0
    %3171 = vmatprep.subr.mxu0 0.0
    %3172 = vmatpush1.msra.mxu0 0.0
    %3173 = vmatprep.subr.mxu0 0.0
    %3174 = vmatpush1.msra.mxu0 0.0
    %3175 = vmatprep.subr.mxu0 0.0
    %3176 = vmatpush1.msra.mxu0 0.0
    %3177 = vmatprep.subr.mxu0 0.0
    %3178 = vmatpush1.msra.mxu0 0.0
    %3179 = vmatprep.subr.mxu0 0.0
    %3180 = vmatpush1.msra.mxu0 0.0
    %3181 = vmatprep.subr.mxu0 0.0
    %3182 = vmatpush1.msra.mxu0 0.0
    %3183 = vmatprep.subr.mxu0 0.0
    %3184 = vmatpush1.msra.mxu0 0.0
    %3185 = vmatprep.subr.mxu0 0.0
    %3186 = vmatpush1.msra.mxu0 0.0
    %3187 = vmatprep.mubr.f32.mxu0 0.0
    %3188 = vmatmul.mubr.f32.gmra.mrb[0].mxu0 %v3112
    %v3189 = vpop.f32.mrb[0].mxu0
    %v3190 = vadd.f32 0.0, %v3189
    %v3191 = vpop.f32.mrb[0].mxu0
    %3192 = vmatprep.mubr.f32.mxu0 0.0
    %3193 = vmatmul.mubr.f32.gmra.mrb[0].mxu0 %v3115
    %v3194 = vpop.f32.mrb[0].mxu0
    %v3195 = vadd.f32 0.0, %v3194
    %v3196 = vpop.f32.mrb[0].mxu0
    %3197 = vmatprep.mubr.f32.mxu0 0.0
    %3198 = vmatmul.mubr.f32.gmra.mrb[0].mxu0 %v3118
    %v3199 = vpop.f32.mrb[0].mxu0
    %v3200 = vadd.f32 0.0, %v3199
    %v3201 = vpop.f32.mrb[0].mxu0
    %3202 = vmatprep.mubr.f32.mxu0 0.0
    %3203 = vmatmul.mubr.f32.gmra.mrb[0].mxu0 %v3121
    %v3204 = vpop.f32.mrb[0].mxu0
    %v3205 = vadd.f32 0.0, %v3204
    %v3206 = vpop.f32.mrb[0].mxu0
    %3207 = vdwg.mxu0
    %v3208 = vadd.f32 %v2446, %v3190
    %v3209 = vadd.f32 %v2447, %v3195
    %v3210 = vadd.f32 %v2448, %v3200
    %v3211 = vadd.f32 %v2449, %v3205
    %v3212 = vld [vmem:[%s4] sm:$0x1]
    %v3214 = vlaneseq
    %v3215 = vshrl.u32 %v3214, 7
    %v3216 = vsub.s32 0, %v3215
    %v3217 = vrot.slane %v3212, %v3216
    %v3219 = vadd.f32 %v3208, %v3217
    %v3220 = vadd.f32 %v3209, %v3217
    %v3221 = vadd.f32 %v3210, %v3217
    %v3222 = vadd.f32 %v3211, %v3217
    %3223 = vst.msk [vmem:[#allocation8] sm:$0xff] %vm77, %v3219
    %3224 = vst.msk [vmem:[#allocation8 + $0x8] sm:$0xff] %vm77, %v3220
    %3225 = vst.msk [vmem:[#allocation8 + $0x10] sm:$0xff] %vm77, %v3221
    %3226 = vst.msk [vmem:[#allocation8 + $0x18] sm:$0xff] %vm77, %v3222
    // Predicated region
    $region34: #{tpu_custom_call.1} parent=1 // pred_check
      _
    $region35: #{tpu_custom_call.1} parent=1 // pred_check_branch
      %3228 = sbr.rel (0) target = $region37
    $region36: #{tpu_custom_call.1} parent=1 // pred_region
      %s3230 = ssub.s32 512, 512
      %3231 = vsyncadd [#allocation4], %s3230
      %s3232 = sshll.u32 [#allocation8], 4
      %s3233 = int_to_ptr.vmem [resolvable:$true] %s3232
      %3238 = dma.vmem_to_hbm [thread:$0]  %s3233, 512, %s5, [#allocation4], 128, 128, 8
    $region37: #{tpu_custom_call.1} parent=1 // pred_fallthru
      _
    // Predicated region
    $region38: #{tpu_custom_call.1} parent=1 // pred_check
      _
    $region39: #{tpu_custom_call.1} parent=1 // pred_check_branch
      %3240 = sbr.rel (0) target = $region41
    $region40: #{tpu_custom_call.1} parent=1 // pred_region
      %3241 = dma.done [#allocation4], 512
    $region41: #{tpu_custom_call.1} parent=1 // pred_fallthru
      _
    %3242 = vsyncpa [#allocation3], 1
    %3243 = vsyncpa [#allocation6], 1
    %3244 = vsyncpa [#allocation4], 1

</llo_original>
